<compile_context>
chip_gen: v7x
topology: tpu7x:2x2x1
jax: 0.10.0
libtpu: 0.0.40
codegen_flags: <defaults>
</compile_context>

<pallas_src>
import functools

import jax
import jax.numpy as jnp
from jax.experimental import pallas as pl
from jax.experimental.pallas import tpu as pltpu


def _round_up(x, m):
    return -(-x // m) * m


# --------------------------------------------------------------------------- #
# Kernel bodies
# --------------------------------------------------------------------------- #
def _conv_body(x_all, w_ref, b_ref, o_ref, *, k, th, wp, wo, cin, cout):
    """Shift-and-accumulate conv over a fused (rows*W, Cin) frame.

    x_all : (rows_flat, cin) activation window, rows_flat >= th*wp + (k-1)*(wp+1)
    w_ref : (k*k*cin, cout)  tap-major im2col weight
    b_ref : (1, cout)        bias (f32)
    o_ref : (1, th, wo*cout) lane-dense output block
    """
    nfr = th * wp                              # accumulator frame: p = oi*wp + oj
    w_all = w_ref[...]
    acc = jnp.zeros((nfr, cout), jnp.float32)
    for kh in range(k):
        for kw in range(k):
            t = kh * k + kw
            off = kh * wp + kw                 # contiguous sublane-offset slice
            acc = acc + jnp.dot(
                x_all[off:off + nfr, :],
                w_all[t * cin:(t + 1) * cin, :],
                preferred_element_type=jnp.float32)
    acc = acc + b_ref[...]
    # One relayout at the end: drop the k-1 garbage columns, fuse (Wo, Cout) lanes.
    out = acc.astype(o_ref.dtype).reshape(th, wp, cout)[:, :wo, :]
    o_ref[0] = out.reshape(th, wo * cout)


def _conv_kernel_block(x_ref, w_ref, b_ref, o_ref, *, k, th, wp, wo, cin, cout):
    """Single row-block per image: activation arrives via a normal Blocked spec."""
    _conv_body(x_ref[0], w_ref, b_ref, o_ref,
               k=k, th=th, wp=wp, wo=wo, cin=cin, cout=cout)


def _conv_kernel_manual(x_hbm, w_ref, b_ref, o_ref, xbuf, copy_sem, *,
                        k, th, wp, wo, cin, cout, rows_flat):
    """Row-tiled path: overlapping row windows are DMA'd from HBM (pl.ANY)."""
    b = pl.program_id(0)
    r = pl.program_id(1)
    row0 = pl.multiple_of(r * (th * wp), 8)
    cp = pltpu.make_async_copy(
        x_hbm.at[pl.ds(b, 1), pl.ds(row0, rows_flat), :], xbuf, copy_sem)
    cp.start()
    cp.wait()
    _conv_body(xbuf[0], w_ref, b_ref, o_ref,
               k=k, th=th, wp=wp, wo=wo, cin=cin, cout=cout)


# --------------------------------------------------------------------------- #
# Tiling / VMEM budget helpers
# --------------------------------------------------------------------------- #
def _vmem_budget():
    """Generation-aware working-set budget + explicit scoped-VMEM limit."""
    try:
        cap = int(pltpu.get_tpu_info().vmem_capacity_bytes)
    except Exception:
        cap = 64 << 20                      # conservative: v7x per-TC capacity
    budget = min(cap // 2, 48 << 20)        # v7x -> ~32 MiB, v5e/v6e -> 48 MiB
    limit = max(min(cap * 3 // 4, 112 << 20), budget + (8 << 20))
    return budget, limit


def _pick_row_tile(ho, wo, k, ws, cin, cout, in_isz, out_isz, budget):
    """Largest output-row tile whose VMEM working set stays under `budget`
    (lane padding of narrow channel axes is accounted for)."""
    cin_l = _round_up(max(cin, 1), 128)
    cout_l = _round_up(max(cout, 1), 128)
    out_l = _round_up(max(wo * cout, 1), 128)

    def footprint(th):
        rows_flat = th * ws + (k - 1) * (ws + 1)
        in_buf = rows_flat * cin_l * in_isz          # input window (or block)
        tap_tmp = th * ws * cin_l * in_isz           # one shifted tap copy
        acc = th * ws * cout_l * 4                   # f32 accumulator frame
        out_blk = 2 * th * out_l * out_isz           # double-buffered output
        extract = th * out_l * 4                     # wo-extraction temp
        return 2 * in_buf + tap_tmp + acc + out_blk + extract

    if footprint(ho) <= budget:
        return ho
    th = max(8, min(512, (ho // 8) * 8))
    while th > 8 and footprint(th) > budget:
        th -= 8
    return th


# --------------------------------------------------------------------------- #
# Public wrapper
# --------------------------------------------------------------------------- #
def convolutional_block(x_nchw, weight_oihw, bias, *, stride=1,
                        compute_dtype=jnp.bfloat16, out_dtype=None,
                        row_tile=None):
    """Forward pass of ConvolutionalBlock.

    x_nchw      : (N, Cin, H, W)     float32
    weight_oihw : (Cout, Cin, K, K)  float32 (PyTorch Conv2d layout)
    bias        : (Cout,)            float32
    compute_dtype: in-kernel activation/weight dtype (bf16 default; pass
                   jnp.float32 to match PyTorch f32 numerics exactly).
    out_dtype   : output dtype (default: x_nchw.dtype).
    returns     : (N, Cout, Ho, Wo)
    """
    n, cin, h, w = x_nchw.shape
    cout, cin_w, k, k2 = weight_oihw.shape
    assert cin == cin_w and k == k2
    s = int(stride)
    pad = k // 2
    assert pad < h and pad < w, "ReflectionPad2d requires pad < spatial dims"

    out_dtype = x_nchw.dtype if out_dtype is None else out_dtype
    in_isz = jnp.dtype(compute_dtype).itemsize
    out_isz = jnp.dtype(out_dtype).itemsize

    # ---- geometry: strided conv  ==  stride-1 conv on space-to-depth planes ----
    hp0, wp0 = h + 2 * pad, w + 2 * pad
    ho = (hp0 - k) // s + 1
    wo = (wp0 - k) // s + 1
    k_eff = -(-k // s)                    # ceil(k / s)
    hs = -(-hp0 // s)
    ws = -(-wp0 // s)
    cin_eff = s * s * cin

    # ---- glue (plain JAX): reflection pad + space-to-depth + lane-fused NHWC ----
    xc = x_nchw.astype(compute_dtype)
    x_p = jnp.pad(xc, ((0, 0), (0, 0), (pad, pad), (pad, pad)), mode="reflect")
    x_p = jnp.pad(x_p, ((0, 0), (0, 0), (0, hs * s - hp0), (0, ws * s - wp0)))
    x_p = x_p.reshape(n, cin, hs, s, ws, s)
    x_p = jnp.transpose(x_p, (0, 2, 4, 3, 5, 1)).reshape(n, hs, ws, cin_eff)

    # ---- row tile selection ----
    budget, vmem_limit = _vmem_budget()
    if row_tile is not None:
        th = min(int(row_tile), ho)
        if th < ho:
            th = max(8, (th // 8) * 8)
    else:
        th = _pick_row_tile(ho, wo, k_eff, ws, cin_eff, cout, in_isz, out_isz,
                            budget)
    nrb = pl.cdiv(ho, th)
    if n * nrb < 2 and ho > 8:
        # Single image, single block: split rows so both v7x TensorCores get work.
        th2 = _round_up(-(-ho // 2), 8)
        if th2 < ho:
            th = th2
            nrb = pl.cdiv(ho, th)
    if nrb == 1:
        th = ho

    # Pad rows so every (overlapping) window and the garbage tail rows of the last
    # block are addressable; padded values never reach valid outputs.
    h_pad = nrb * th + k_eff
    x_p = jnp.pad(x_p, ((0, 0), (0, h_pad - hs), (0, 0), (0, 0)))
    x_flat = x_p.reshape(n, h_pad * ws, cin_eff)

    # ---- weight: zero-pad taps to k_eff*s, fold stride phases into channels ----
    wk = jnp.pad(weight_oihw.astype(compute_dtype),
                 ((0, 0), (0, 0), (0, k_eff * s - k), (0, k_eff * s - k)))
    wk = wk.reshape(cout, cin, k_eff, s, k_eff, s)
    wk = jnp.transpose(wk, (2, 4, 3, 5, 1, 0))          # (kh, kw, ph, pw, Cin, Cout)
    w2 = wk.reshape(k_eff * k_eff * cin_eff, cout)
    b2 = bias.reshape(1, cout).astype(jnp.float32)

    rows_flat = th * ws + (k_eff - 1) * (ws + 1)
    common = dict(k=k_eff, th=th, wp=ws, wo=wo, cin=cin_eff, cout=cout)

    w_spec = pl.BlockSpec((k_eff * k_eff * cin_eff, cout), lambda bb, rr: (0, 0))
    b_spec = pl.BlockSpec((1, cout), lambda bb, rr: (0, 0))
    out_spec = pl.BlockSpec((1, th, wo * cout), lambda bb, rr: (bb, rr, 0))

    if nrb == 1:
        kern = functools.partial(_conv_kernel_block, **common)
        x_spec = pl.BlockSpec((1, h_pad * ws, cin_eff), lambda bb, rr: (bb, 0, 0))
        scratch = []
    else:
        kern = functools.partial(_conv_kernel_manual, rows_flat=rows_flat, **common)
        x_spec = pl.BlockSpec(memory_space=pl.ANY)
        scratch = [pltpu.VMEM((1, rows_flat, cin_eff), compute_dtype),
                   pltpu.SemaphoreType.DMA]

    flops = 2 * n * nrb * th * ws * k_eff * k_eff * cin_eff * cout
    bytes_accessed = int(x_flat.size * in_isz + w2.size * in_isz + b2.size * 4
                         + n * nrb * th * wo * cout * out_isz)

    out = pl.pallas_call(
        kern,
        out_shape=jax.ShapeDtypeStruct((n, nrb * th, wo * cout), out_dtype),
        grid_spec=pltpu.PrefetchScalarGridSpec(
            num_scalar_prefetch=0,
            grid=(n, nrb),
            in_specs=[x_spec, w_spec, b_spec],
            out_specs=out_spec,
            scratch_shapes=scratch),
        compiler_params=pltpu.CompilerParams(
            dimension_semantics=("parallel", "parallel"),
            vmem_limit_bytes=vmem_limit),
        cost_estimate=pl.CostEstimate(
            flops=flops, transcendentals=0, bytes_accessed=bytes_accessed),
    )(x_flat, w2, b2)

    out = out[:, :ho, :].reshape(n, ho, wo, cout)
    return jnp.transpose(out, (0, 3, 1, 2))


# --------------------------------------------------------------------------- #
# Reference + self-test
# --------------------------------------------------------------------------- #
def _reference(x_nchw, weight_oihw, bias, *, stride=1):
    """Pure-JAX reference (ReflectionPad2d + Conv2d) for correctness check."""
    k = weight_oihw.shape[-1]
    pad = k // 2
    x_pad = jnp.pad(x_nchw, ((0, 0), (0, 0), (pad, pad), (pad, pad)),
                    mode="reflect")
    out = jax.lax.conv_general_dilated(
        x_pad, weight_oihw, window_strides=(stride, stride), padding="VALID",
        dimension_numbers=("NCHW", "OIHW", "NCHW"))
    return out + bias.reshape(1, -1, 1, 1)


if __name__ == "__main__":
    key = jax.random.PRNGKey(0)
    kx, kw, kb, kx2, kx3 = jax.random.split(key, 5)

    N, Cin, H, W = 2, 4, 16, 16
    Cout, K = 8, 3
    x = jax.random.normal(kx, (N, Cin, H, W), dtype=jnp.float32)
    fan_in = Cin * K * K
    bound = 1.0 / (fan_in ** 0.5)
    weight = jax.random.uniform(kw, (Cout, Cin, K, K), jnp.float32, -bound, bound)
    bias = jax.random.uniform(kb, (Cout,), jnp.float32, -bound, bound)

    # 1) f32 compute, stride 1 (single-block Blocked path)
    out_f32 = jax.block_until_ready(
        convolutional_block(x, weight, bias, stride=1, compute_dtype=jnp.float32))
    ref_f32 = _reference(x, weight, bias, stride=1)
    assert out_f32.shape == ref_f32.shape == (N, Cout, H, W)
    assert jnp.allclose(out_f32, ref_f32, atol=1e-4, rtol=1e-4), "f32 mismatch"

    # 2) bf16 compute (default) -- compared at matched bf16 input precision
    out_bf = jax.block_until_ready(convolutional_block(x, weight, bias, stride=1))
    ref_bf = _reference(x.astype(jnp.bfloat16).astype(jnp.float32),
                        weight.astype(jnp.bfloat16).astype(jnp.float32),
                        bias, stride=1)
    assert out_bf.shape == (N, Cout, H, W)
    assert jnp.allclose(out_bf, ref_bf, atol=2e-3, rtol=2e-3), "bf16 mismatch"

    # 3) stride 2 (space-to-depth path), odd padded spatial dims
    x15 = jax.random.normal(kx2, (N, Cin, 15, 15), dtype=jnp.float32)
    out_s2 = jax.block_until_ready(
        convolutional_block(x15, weight, bias, stride=2, compute_dtype=jnp.float32))
    ref_s2 = _reference(x15, weight, bias, stride=2)
    assert out_s2.shape == ref_s2.shape
    assert jnp.allclose(out_s2, ref_s2, atol=1e-4, rtol=1e-4), "stride-2 mismatch"

    # 4) forced row tiling -> manual-DMA (pl.ANY) path with overlapping windows
    x32 = jax.random.normal(kx3, (N, Cin, 32, W), dtype=jnp.float32)
    out_rt = jax.block_until_ready(
        convolutional_block(x32, weight, bias, stride=1,
                            compute_dtype=jnp.float32, row_tile=8))
    ref_rt = _reference(x32, weight, bias, stride=1)
    assert out_rt.shape == ref_rt.shape
    assert jnp.allclose(out_rt, ref_rt, atol=1e-4, rtol=1e-4), "row-tiled mismatch"

    # 5) single image -> automatic even row-block split (both TCs on v7x)
    out_n1 = jax.block_until_ready(
        convolutional_block(x[:1], weight, bias, stride=1,
                            compute_dtype=jnp.float32))
    assert jnp.allclose(out_n1, ref_f32[:1], atol=1e-4, rtol=1e-4), "N=1 mismatch"

    print("KERNEL_OK")
</pallas_src>

<mosaic_0001>
module attributes {stable_mosaic.version = 11 : i64} {
  func.func @_conv_kernel_block(%arg0: i32, %arg1: i32, %arg2: memref<1x342x4xf32, #tpu.memory_space<vmem>>, %arg3: memref<36x8xf32, #tpu.memory_space<vmem>>, %arg4: memref<1x8xf32, #tpu.memory_space<vmem>>, %arg5: memref<1x16x128xf32, #tpu.memory_space<vmem>>) attributes {dimension_semantics = [#tpu.dimension_semantics<parallel>, #tpu.dimension_semantics<parallel>], iteration_bounds = array<i64: 2, 1>, scalar_prefetch = 0 : i64, scratch_operands = 0 : i64, tpu.core_type = #tpu.core_type<tc>, window_params = [{transform_indices = @transform_0, window_bounds = array<i64: 1, 342, 4>}, {pipeline_mode = #tpu.pipeline_mode<synchronous>, transform_indices = @transform_1, window_bounds = array<i64: 36, 8>}, {pipeline_mode = #tpu.pipeline_mode<synchronous>, transform_indices = @transform_2, window_bounds = array<i64: 1, 8>}, {transform_indices = @transform_3, window_bounds = array<i64: 1, 16, 128>}]} {
    %c0 = arith.constant 0 : index
    %c0_0 = arith.constant 0 : index
    %c0_1 = arith.constant 0 : index
    %0 = vector.load %arg2[%c0, %c0_0, %c0_1] : memref<1x342x4xf32, #tpu.memory_space<vmem>>, vector<1x342x4xf32>
    %1 = vector.shape_cast %0 : vector<1x342x4xf32> to vector<342x4xf32>
    %c0_2 = arith.constant 0 : index
    %c0_3 = arith.constant 0 : index
    %2 = vector.load %arg3[%c0_2, %c0_3] : memref<36x8xf32, #tpu.memory_space<vmem>>, vector<36x8xf32>
    %cst = arith.constant 0.000000e+00 : f32
    %3 = vector.broadcast %cst : f32 to vector<288x8xf32>
    %4 = vector.extract_strided_slice %1 {offsets = [0, 0], sizes = [288, 4], strides = [1, 1]} : vector<342x4xf32> to vector<288x4xf32>
    %5 = vector.extract_strided_slice %2 {offsets = [0, 0], sizes = [4, 8], strides = [1, 1]} : vector<36x8xf32> to vector<4x8xf32>
    %cst_4 = arith.constant dense<0.000000e+00> : vector<288x8xf32>
    %6 = tpu.matmul %4, %5, %cst_4 {dimension_numbers = #tpu.dot_dimension_numbers<[1], [0], [0], [1], [0, 0, 1, 1], [], []>} : vector<288x4xf32>, vector<4x8xf32>, vector<288x8xf32> -> vector<288x8xf32>
    %7 = arith.addf %3, %6 : vector<288x8xf32>
    %8 = vector.extract_strided_slice %1 {offsets = [1, 0], sizes = [288, 4], strides = [1, 1]} : vector<342x4xf32> to vector<288x4xf32>
    %9 = vector.extract_strided_slice %2 {offsets = [4, 0], sizes = [4, 8], strides = [1, 1]} : vector<36x8xf32> to vector<4x8xf32>
    %cst_5 = arith.constant dense<0.000000e+00> : vector<288x8xf32>
    %10 = tpu.matmul %8, %9, %cst_5 {dimension_numbers = #tpu.dot_dimension_numbers<[1], [0], [0], [1], [0, 0, 1, 1], [], []>} : vector<288x4xf32>, vector<4x8xf32>, vector<288x8xf32> -> vector<288x8xf32>
    %11 = arith.addf %7, %10 : vector<288x8xf32>
    %12 = vector.extract_strided_slice %1 {offsets = [2, 0], sizes = [288, 4], strides = [1, 1]} : vector<342x4xf32> to vector<288x4xf32>
    %13 = vector.extract_strided_slice %2 {offsets = [8, 0], sizes = [4, 8], strides = [1, 1]} : vector<36x8xf32> to vector<4x8xf32>
    %cst_6 = arith.constant dense<0.000000e+00> : vector<288x8xf32>
    %14 = tpu.matmul %12, %13, %cst_6 {dimension_numbers = #tpu.dot_dimension_numbers<[1], [0], [0], [1], [0, 0, 1, 1], [], []>} : vector<288x4xf32>, vector<4x8xf32>, vector<288x8xf32> -> vector<288x8xf32>
    %15 = arith.addf %11, %14 : vector<288x8xf32>
    %16 = vector.extract_strided_slice %1 {offsets = [18, 0], sizes = [288, 4], strides = [1, 1]} : vector<342x4xf32> to vector<288x4xf32>
    %17 = vector.extract_strided_slice %2 {offsets = [12, 0], sizes = [4, 8], strides = [1, 1]} : vector<36x8xf32> to vector<4x8xf32>
    %cst_7 = arith.constant dense<0.000000e+00> : vector<288x8xf32>
    %18 = tpu.matmul %16, %17, %cst_7 {dimension_numbers = #tpu.dot_dimension_numbers<[1], [0], [0], [1], [0, 0, 1, 1], [], []>} : vector<288x4xf32>, vector<4x8xf32>, vector<288x8xf32> -> vector<288x8xf32>
    %19 = arith.addf %15, %18 : vector<288x8xf32>
    %20 = vector.extract_strided_slice %1 {offsets = [19, 0], sizes = [288, 4], strides = [1, 1]} : vector<342x4xf32> to vector<288x4xf32>
    %21 = vector.extract_strided_slice %2 {offsets = [16, 0], sizes = [4, 8], strides = [1, 1]} : vector<36x8xf32> to vector<4x8xf32>
    %cst_8 = arith.constant dense<0.000000e+00> : vector<288x8xf32>
    %22 = tpu.matmul %20, %21, %cst_8 {dimension_numbers = #tpu.dot_dimension_numbers<[1], [0], [0], [1], [0, 0, 1, 1], [], []>} : vector<288x4xf32>, vector<4x8xf32>, vector<288x8xf32> -> vector<288x8xf32>
    %23 = arith.addf %19, %22 : vector<288x8xf32>
    %24 = vector.extract_strided_slice %1 {offsets = [20, 0], sizes = [288, 4], strides = [1, 1]} : vector<342x4xf32> to vector<288x4xf32>
    %25 = vector.extract_strided_slice %2 {offsets = [20, 0], sizes = [4, 8], strides = [1, 1]} : vector<36x8xf32> to vector<4x8xf32>
    %cst_9 = arith.constant dense<0.000000e+00> : vector<288x8xf32>
    %26 = tpu.matmul %24, %25, %cst_9 {dimension_numbers = #tpu.dot_dimension_numbers<[1], [0], [0], [1], [0, 0, 1, 1], [], []>} : vector<288x4xf32>, vector<4x8xf32>, vector<288x8xf32> -> vector<288x8xf32>
    %27 = arith.addf %23, %26 : vector<288x8xf32>
    %28 = vector.extract_strided_slice %1 {offsets = [36, 0], sizes = [288, 4], strides = [1, 1]} : vector<342x4xf32> to vector<288x4xf32>
    %29 = vector.extract_strided_slice %2 {offsets = [24, 0], sizes = [4, 8], strides = [1, 1]} : vector<36x8xf32> to vector<4x8xf32>
    %cst_10 = arith.constant dense<0.000000e+00> : vector<288x8xf32>
    %30 = tpu.matmul %28, %29, %cst_10 {dimension_numbers = #tpu.dot_dimension_numbers<[1], [0], [0], [1], [0, 0, 1, 1], [], []>} : vector<288x4xf32>, vector<4x8xf32>, vector<288x8xf32> -> vector<288x8xf32>
    %31 = arith.addf %27, %30 : vector<288x8xf32>
    %32 = vector.extract_strided_slice %1 {offsets = [37, 0], sizes = [288, 4], strides = [1, 1]} : vector<342x4xf32> to vector<288x4xf32>
    %33 = vector.extract_strided_slice %2 {offsets = [28, 0], sizes = [4, 8], strides = [1, 1]} : vector<36x8xf32> to vector<4x8xf32>
    %cst_11 = arith.constant dense<0.000000e+00> : vector<288x8xf32>
    %34 = tpu.matmul %32, %33, %cst_11 {dimension_numbers = #tpu.dot_dimension_numbers<[1], [0], [0], [1], [0, 0, 1, 1], [], []>} : vector<288x4xf32>, vector<4x8xf32>, vector<288x8xf32> -> vector<288x8xf32>
    %35 = arith.addf %31, %34 : vector<288x8xf32>
    %36 = vector.extract_strided_slice %1 {offsets = [38, 0], sizes = [288, 4], strides = [1, 1]} : vector<342x4xf32> to vector<288x4xf32>
    %37 = vector.extract_strided_slice %2 {offsets = [32, 0], sizes = [4, 8], strides = [1, 1]} : vector<36x8xf32> to vector<4x8xf32>
    %cst_12 = arith.constant dense<0.000000e+00> : vector<288x8xf32>
    %38 = tpu.matmul %36, %37, %cst_12 {dimension_numbers = #tpu.dot_dimension_numbers<[1], [0], [0], [1], [0, 0, 1, 1], [], []>} : vector<288x4xf32>, vector<4x8xf32>, vector<288x8xf32> -> vector<288x8xf32>
    %39 = arith.addf %35, %38 : vector<288x8xf32>
    %c0_13 = arith.constant 0 : index
    %c0_14 = arith.constant 0 : index
    %40 = vector.load %arg4[%c0_13, %c0_14] : memref<1x8xf32, #tpu.memory_space<vmem>>, vector<1x8xf32>
    %41 = vector.broadcast %40 : vector<1x8xf32> to vector<288x8xf32>
    %42 = arith.addf %39, %41 : vector<288x8xf32>
    %43 = vector.shape_cast %42 : vector<288x8xf32> to vector<16x18x8xf32>
    %44 = vector.extract_strided_slice %43 {offsets = [0, 0, 0], sizes = [16, 16, 8], strides = [1, 1, 1]} : vector<16x18x8xf32> to vector<16x16x8xf32>
    %45 = vector.shape_cast %44 : vector<16x16x8xf32> to vector<16x128xf32>
    %c0_15 = arith.constant 0 : index
    %c0_16 = arith.constant 0 : index
    %c0_17 = arith.constant 0 : index
    %46 = vector.load %arg5[%c0_15, %c0_16, %c0_17] : memref<1x16x128xf32, #tpu.memory_space<vmem>>, vector<1x16x128xf32>
    %47 = vector.shape_cast %46 : vector<1x16x128xf32> to vector<16x128xf32>
    %48 = vector.shape_cast %45 : vector<16x128xf32> to vector<1x16x128xf32>
    tpu.vector_store %arg5[%c0_15, %c0_16, %c0_17], %48 {strides = array<i32>} : memref<1x16x128xf32, #tpu.memory_space<vmem>>, vector<1x16x128xf32>,
    return
  }
  func.func @transform_0(%arg0: i32, %arg1: i32) -> (i32, i32, i32) {
    %c0_i32 = arith.constant 0 : i32
    %c0_i32_0 = arith.constant 0 : i32
    %c0_i32_1 = arith.constant 0 : i32
    return %arg0, %c0_i32, %c0_i32_0 : i32, i32, i32
  }
  func.func @transform_1(%arg0: i32, %arg1: i32) -> (i32, i32) {
    %c0_i32 = arith.constant 0 : i32
    %c0_i32_0 = arith.constant 0 : i32
    %c0_i32_1 = arith.constant 0 : i32
    return %c0_i32, %c0_i32_0 : i32, i32
  }
  func.func @transform_2(%arg0: i32, %arg1: i32) -> (i32, i32) {
    %c0_i32 = arith.constant 0 : i32
    %c0_i32_0 = arith.constant 0 : i32
    %c0_i32_1 = arith.constant 0 : i32
    return %c0_i32, %c0_i32_0 : i32, i32
  }
  func.func @transform_3(%arg0: i32, %arg1: i32) -> (i32, i32, i32) {
    %c0_i32 = arith.constant 0 : i32
    %c0_i32_0 = arith.constant 0 : i32
    return %arg0, %arg1, %c0_i32 : i32, i32, i32
  }
}

</mosaic_0001>

<llo_original>
// kernel: tpu_custom_call.1
$region0: #{tpu_custom_call.1}
  #allocation0 [shape = 'u32[]', space=smem, size = 0x4, offset = 0x4, fixed_abs, tag = 'smem constant byte address 0x4 - core index']
  #allocation1 [shape = 'u32[144,128]{1,0:T(1,128)}', space=vmem, size = 0x12000, scoped, tag = 'internal scratch']
  %s0 = inlined_call_operand.vmem [shape: f32[2,342,4], index: 0, kind: input, shape index: {}]
  %s1 = inlined_call_operand.vmem [shape: f32[36,8], index: 1, kind: input, shape index: {}]
  %s2 = inlined_call_operand.vmem [shape: f32[1,8], index: 2, kind: input, shape index: {}]
  %s3 = inlined_call_operand.hbm [shape: f32[2,16,128], index: 3, kind: output, shape index: {}]
  %s4 = sld [smem:[#allocation0]]
  $region45: #{tpu_custom_call.1} parent=0
    _
  %s6 = ssub.s32 1, %s4
  %s7 = scalar_select 0, %s6, %s4
  $region1: #{tpu_custom_call.1} parent=0
    #allocation2 [shape = 'u8[16384]{0}', space=vmem, size = 0x4000, scoped, tag = 'output window, operand 0']
    #allocation3 [shape = 's32[2]{0}', space=sflag, size = 0x8, scoped, tag = 'scoped memory for tpu_custom_call.1']
    %8 = vsyncpa [#allocation3], 0
    %s9 = scalar_lea.sflag [#allocation3], 1
    %10 = vsyncpa %s9, 0
    loop: start=0, step=1, limit=4
    $region2: #{tpu_custom_call.1} parent=1 // loop_pre_header
      _
    $region3: #{tpu_custom_call.1} parent=1 // loop_header
      %s12 = sphi 0, %s16
      %p13 = scmp.ge.s32.totalorder %s12, 4
      %s19 = sphi 0, %s31
      %s20 = sphi 0, %s27
      %s21 = sphi 0, %s19
      %s22 = sphi 0, %s20
      %s23 = sphi 0, %s21
      %s24 = sphi 0, %s22
      %s34 = sphi 0, %s36
      %s37 = sphi 0, %s34
      %s38 = sphi 0, %s37
      %s54 = sphi 0, %s38
      %s58 = sphi 0, %s58
      %s60 = sphi 0, %s58
      %s61 = sphi 0, %s60
      %s75 = sphi 0, %s61
      %s79 = sphi 0, %s79
      %s81 = sphi 0, %s79
      %s82 = sphi 0, %s81
      %s96 = sphi 0, %s82
      %s104 = sphi 0, %s106
      %s107 = sphi 0, %s104
      %s108 = sphi 0, %s107
      %s124 = sphi 0, %s108
    $region4: #{tpu_custom_call.1} parent=1 // loop_header_branch
      %15 = sbr.rel (%p13) target = $region8
    $region5: #{tpu_custom_call.1} parent=1 // loop_body
      %s17 = ssub.s32 %s12, 1
      %s18 = ssub.s32 %s12, 2
      %s25 = sadd.s32 1, %s20
      %p26 = scmp.ge.s32.totalorder %s25, 1
      %s27 = scalar_select %p26, 0, %s25
      %s28 = sadd.s32 1, %s19
      %s29 = scalar_select %p26, %s28, %s19
      %p30 = scmp.ge.s32.totalorder %s29, 2
      %s31 = scalar_select %p30, 0, %s29
      %s32 = ssub.s32 %s19, %s31
      %p33 = scmp.eq.s32.totalorder %s32, 0
      %s35 = sadd.s32 %s34, 1
      %s36 = scalar_select %p33, %s34, %s35
      %p39 = pneg %p33
      %p40 = scmp.eq.s32.totalorder %s12, 1
      %p41 = por %p39, %p40
      %p42 = scmp.ne.s32.totalorder %s34, %s37
      %p43 = scmp.eq.s32.totalorder %s12, 0
      %p44 = por %p42, %p43
      %p45 = scmp.ne.s32.totalorder %s34, %s37
      %p46 = scmp.eq.s32.totalorder %s17, 1
      %p47 = por %p45, %p46
      %p48 = scmp.ne.s32.totalorder %s37, %s38
      %p49 = scmp.eq.s32.totalorder %s17, 0
      %p50 = por %p48, %p49
      %p51 = scmp.ne.s32.totalorder %s37, %s38
      %p52 = scmp.eq.s32.totalorder %s18, 1
      %p53 = por %p51, %p52
      %p55 = scmp.ne.s32.totalorder %s38, %s54
      %p56 = scmp.eq.s32.totalorder %s18, 0
      %p57 = por %p55, %p56
      %s59 = sadd.s32 %s58, 1
      %p62 = scmp.eq.s32.totalorder %s12, 1
      %p63 = scmp.ne.s32.totalorder %s58, %s60
      %p64 = scmp.eq.s32.totalorder %s12, 0
      %p65 = por %p63, %p64
      %p66 = scmp.ne.s32.totalorder %s58, %s60
      %p67 = scmp.eq.s32.totalorder %s17, 1
      %p68 = por %p66, %p67
      %p69 = scmp.ne.s32.totalorder %s60, %s61
      %p70 = scmp.eq.s32.totalorder %s17, 0
      %p71 = por %p69, %p70
      %p72 = scmp.ne.s32.totalorder %s60, %s61
      %p73 = scmp.eq.s32.totalorder %s18, 1
      %p74 = por %p72, %p73
      %p76 = scmp.ne.s32.totalorder %s61, %s75
      %p77 = scmp.eq.s32.totalorder %s18, 0
      %p78 = por %p76, %p77
      %s80 = sadd.s32 %s79, 1
      %p83 = scmp.eq.s32.totalorder %s12, 1
      %p84 = scmp.ne.s32.totalorder %s79, %s81
      %p85 = scmp.eq.s32.totalorder %s12, 0
      %p86 = por %p84, %p85
      %p87 = scmp.ne.s32.totalorder %s79, %s81
      %p88 = scmp.eq.s32.totalorder %s17, 1
      %p89 = por %p87, %p88
      %p90 = scmp.ne.s32.totalorder %s81, %s82
      %p91 = scmp.eq.s32.totalorder %s17, 0
      %p92 = por %p90, %p91
      %p93 = scmp.ne.s32.totalorder %s81, %s82
      %p94 = scmp.eq.s32.totalorder %s18, 1
      %p95 = por %p93, %p94
      %p97 = scmp.ne.s32.totalorder %s82, %s96
      %p98 = scmp.eq.s32.totalorder %s18, 0
      %p99 = por %p97, %p98
      %s100 = ssub.s32 %s19, %s31
      %s101 = ssub.s32 %s20, %s27
      %s102 = sor.u32 %s100, %s101
      %p103 = scmp.eq.s32.totalorder %s102, 0
      %s105 = sadd.s32 %s104, 1
      %s106 = scalar_select %p103, %s104, %s105
      %p109 = pneg %p103
      %p110 = scmp.eq.s32.totalorder %s12, 1
      %p111 = por %p109, %p110
      %p112 = scmp.ne.s32.totalorder %s104, %s107
      %p113 = scmp.eq.s32.totalorder %s12, 0
      %p114 = por %p112, %p113
      %p115 = scmp.ne.s32.totalorder %s104, %s107
      %p116 = scmp.eq.s32.totalorder %s17, 1
      %p117 = por %p115, %p116
      %p118 = scmp.ne.s32.totalorder %s107, %s108
      %p119 = scmp.eq.s32.totalorder %s17, 0
      %p120 = por %p118, %p119
      %p121 = scmp.ne.s32.totalorder %s107, %s108
      %p122 = scmp.eq.s32.totalorder %s18, 1
      %p123 = por %p121, %p122
      %p125 = scmp.ne.s32.totalorder %s108, %s124
      %p126 = scmp.eq.s32.totalorder %s18, 0
      %p127 = por %p125, %p126
      %p128 = scmp.le.s32.totalorder 1, %s12
      %p129 = scmp.lt.s32.totalorder %s12, 3
      %p130 = pnand %p128, %p129
      %p131 = pneg %p130
      // Predicated region
      $region9: #{tpu_custom_call.1} parent=5 // pred_check
        _
      $region10: #{tpu_custom_call.1} parent=5 // pred_check_branch
        %133 = sbr.rel (%p130) target = $region12
      $region11: #{tpu_custom_call.1} parent=5 // pred_region
        %s134 = ssub.s32 %s12, 1
        // Predicated region
        $region13: #{tpu_custom_call.1} parent=11 // pred_check
          %p135 = pneg %p71
        $region14: #{tpu_custom_call.1} parent=11 // pred_check_branch
          %137 = sbr.rel (%p135) target = $region16
        $region15: #{tpu_custom_call.1} parent=11 // pred_region
          _
        $region16: #{tpu_custom_call.1} parent=11 // pred_fallthru
          _
        // Predicated region
        $region17: #{tpu_custom_call.1} parent=11 // pred_check
          %p138 = pneg %p92
        $region18: #{tpu_custom_call.1} parent=11 // pred_check_branch
          %140 = sbr.rel (%p138) target = $region20
        $region19: #{tpu_custom_call.1} parent=11 // pred_region
          _
        $region20: #{tpu_custom_call.1} parent=11 // pred_fallthru
          _
      $region12: #{tpu_custom_call.1} parent=5 // pred_fallthru
        _
      %p141 = scmp.lt.s32.totalorder %s12, 2
      // Predicated region
      $region21: #{tpu_custom_call.1} parent=5 // pred_check
        %p142 = pneg %p141
      $region22: #{tpu_custom_call.1} parent=5 // pred_check_branch
        %144 = sbr.rel (%p142) target = $region24
      $region23: #{tpu_custom_call.1} parent=5 // pred_region
        // Predicated region
        $region25: #{tpu_custom_call.1} parent=23 // pred_check
          %p145 = pneg %p44
        $region26: #{tpu_custom_call.1} parent=23 // pred_check_branch
          %147 = sbr.rel (%p145) target = $region28
        $region27: #{tpu_custom_call.1} parent=23 // pred_region
          %p148 = scmp.lt.s32.totalorder %s19, 1
          %s149 = scalar_select %p148, %s19, 1
          %s150 = smul.addr %s149, 43
          %s151 = smul.addr %s150, 8
          %s152 = scalar_lea.vmem %s0, %s151
        $region28: #{tpu_custom_call.1} parent=23 // pred_fallthru
          _
      $region24: #{tpu_custom_call.1} parent=5 // pred_fallthru
        _
      %p153 = scmp.le.s32.totalorder 1, %s12
      %p154 = scmp.lt.s32.totalorder %s12, 3
      %p155 = pnand %p153, %p154
      %p156 = pneg %p155
      // Predicated region
      $region29: #{tpu_custom_call.1} parent=5 // pred_check
        _
      $region30: #{tpu_custom_call.1} parent=5 // pred_check_branch
        %158 = sbr.rel (%p155) target = $region32
      $region31: #{tpu_custom_call.1} parent=5 // pred_region
        %s159 = ssub.s32 %s12, 1
        %p160 = scmp.lt.s32.totalorder %s21, 1
        %s161 = scalar_select %p160, %s21, 1
        %s162 = smul.addr %s161, 43
        %s163 = smul.addr %s162, 8
        %s164 = scalar_lea.vmem %s0, %s163
        %p165 = pneg %p50
        %p166 = pneg %p47
        %p167 = pneg %p71
        %p168 = pneg %p68
        %p169 = pneg %p92
        %p170 = pneg %p89
        %p171 = pneg %p120
        %p172 = pneg %p117
        %s173 = sand.u32 %s107, 1
        %s174 = scalar_lea.sflag [#allocation3], %s173
        %s175 = sand.u32 %s107, 1
        %s176 = smul.addr %s175, 16
        %s177 = scalar_lea.vmem [#allocation2], %s176
        %p178 = scmp.lt.s32.totalorder %s21, 1
        %s179 = scalar_select %p178, %s21, 1
        %s180 = smul.addr %s179, 43
        %s181 = smul.addr %s180, 8
        %s182 = scalar_lea.vmem %s0, %s181
        %s183 = smul.u32 2, %s22
        %v184 = vld [vmem:[%s182] sm:$0xff]
        %v185 = vld [vmem:[%s182 + $0x8] sm:$0xff]
        %v186 = vld [vmem:[%s182 + $0x10] sm:$0xff]
        %v187 = vld [vmem:[%s182 + $0x18] sm:$0xff]
        %v188 = vld [vmem:[%s182 + $0x20] sm:$0xff]
        %v189 = vld [vmem:[%s182 + $0x28] sm:$0xff]
        %v190 = vld [vmem:[%s182 + $0x30] sm:$0xff]
        %v191 = vld [vmem:[%s182 + $0x38] sm:$0xff]
        %v192 = vld [vmem:[%s182 + $0x40] sm:$0xff]
        %v193 = vld [vmem:[%s182 + $0x48] sm:$0xff]
        %v194 = vld [vmem:[%s182 + $0x50] sm:$0xff]
        %v195 = vld [vmem:[%s182 + $0x58] sm:$0xff]
        %v196 = vld [vmem:[%s182 + $0x60] sm:$0xff]
        %v197 = vld [vmem:[%s182 + $0x68] sm:$0xff]
        %v198 = vld [vmem:[%s182 + $0x70] sm:$0xff]
        %v199 = vld [vmem:[%s182 + $0x78] sm:$0xff]
        %v200 = vld [vmem:[%s182 + $0x80] sm:$0xff]
        %v201 = vld [vmem:[%s182 + $0x88] sm:$0xff]
        %v202 = vld [vmem:[%s182 + $0x90] sm:$0xff]
        %v203 = vld [vmem:[%s182 + $0x98] sm:$0xff]
        %v204 = vld [vmem:[%s182 + $0xa0] sm:$0xff]
        %v205 = vld [vmem:[%s182 + $0xa8] sm:$0xff]
        %v206 = vld [vmem:[%s182 + $0xb0] sm:$0xff]
        %v207 = vld [vmem:[%s182 + $0xb8] sm:$0xff]
        %v208 = vld [vmem:[%s182 + $0xc0] sm:$0xff]
        %v209 = vld [vmem:[%s182 + $0xc8] sm:$0xff]
        %v210 = vld [vmem:[%s182 + $0xd0] sm:$0xff]
        %v211 = vld [vmem:[%s182 + $0xd8] sm:$0xff]
        %v212 = vld [vmem:[%s182 + $0xe0] sm:$0xff]
        %v213 = vld [vmem:[%s182 + $0xe8] sm:$0xff]
        %v214 = vld [vmem:[%s182 + $0xf0] sm:$0xff]
        %v215 = vld [vmem:[%s182 + $0xf8] sm:$0xff]
        %v216 = vld [vmem:[%s182 + $0x100] sm:$0xff]
        %v217 = vld [vmem:[%s182 + $0x108] sm:$0xff]
        %v218 = vld [vmem:[%s182 + $0x110] sm:$0xff]
        %v219 = vld [vmem:[%s182 + $0x118] sm:$0xff]
        %v220 = vld [vmem:[%s182 + $0x120] sm:$0xff]
        %v221 = vld [vmem:[%s182 + $0x128] sm:$0xff]
        %v222 = vld [vmem:[%s182 + $0x130] sm:$0xff]
        %v223 = vld [vmem:[%s182 + $0x138] sm:$0xff]
        %v224 = vld [vmem:[%s182 + $0x140] sm:$0xff]
        %v225 = vld [vmem:[%s1] sm:$0xff]
        %v226 = vld [vmem:[%s1 + $0x8] sm:$0xff]
        %v227 = vld [vmem:[%s1 + $0x10] sm:$0xff]
        %v228 = vld [vmem:[%s1 + $0x18] sm:$0xff]
        %v229 = vld [vmem:[%s1 + $0x20] sm:$0xf]
        %vm267 = vcmask 1046528
        %v268 = vrot.slane %v184, 1
        %v269 = vrot.slane %v185, 1
        %v270 = vsel %vm267, %v268, %v269
        %v271 = vrot.slane %v186, 1
        %v272 = vsel %vm267, %v269, %v271
        %v273 = vrot.slane %v187, 1
        %v274 = vsel %vm267, %v271, %v273
        %v275 = vrot.slane %v188, 1
        %v276 = vsel %vm267, %v273, %v275
        %v277 = vrot.slane %v189, 1
        %v278 = vsel %vm267, %v275, %v277
        %v279 = vrot.slane %v190, 1
        %v280 = vsel %vm267, %v277, %v279
        %v281 = vrot.slane %v191, 1
        %v282 = vsel %vm267, %v279, %v281
        %v283 = vrot.slane %v192, 1
        %v284 = vsel %vm267, %v281, %v283
        %v285 = vrot.slane %v193, 1
        %v286 = vsel %vm267, %v283, %v285
        %v287 = vrot.slane %v194, 1
        %v288 = vsel %vm267, %v285, %v287
        %v289 = vrot.slane %v195, 1
        %v290 = vsel %vm267, %v287, %v289
        %v291 = vrot.slane %v196, 1
        %v292 = vsel %vm267, %v289, %v291
        %v293 = vrot.slane %v197, 1
        %v294 = vsel %vm267, %v291, %v293
        %v295 = vrot.slane %v198, 1
        %v296 = vsel %vm267, %v293, %v295
        %v297 = vrot.slane %v199, 1
        %v298 = vsel %vm267, %v295, %v297
        %v299 = vrot.slane %v200, 1
        %v300 = vsel %vm267, %v297, %v299
        %v301 = vrot.slane %v201, 1
        %v302 = vsel %vm267, %v299, %v301
        %v303 = vrot.slane %v202, 1
        %v304 = vsel %vm267, %v301, %v303
        %v305 = vrot.slane %v203, 1
        %v306 = vsel %vm267, %v303, %v305
        %v307 = vrot.slane %v204, 1
        %v308 = vsel %vm267, %v305, %v307
        %v309 = vrot.slane %v205, 1
        %v310 = vsel %vm267, %v307, %v309
        %v311 = vrot.slane %v206, 1
        %v312 = vsel %vm267, %v309, %v311
        %v313 = vrot.slane %v207, 1
        %v314 = vsel %vm267, %v311, %v313
        %v315 = vrot.slane %v208, 1
        %v316 = vsel %vm267, %v313, %v315
        %v317 = vrot.slane %v209, 1
        %v318 = vsel %vm267, %v315, %v317
        %v319 = vrot.slane %v210, 1
        %v320 = vsel %vm267, %v317, %v319
        %v321 = vrot.slane %v211, 1
        %v322 = vsel %vm267, %v319, %v321
        %v323 = vrot.slane %v212, 1
        %v324 = vsel %vm267, %v321, %v323
        %v325 = vrot.slane %v213, 1
        %v326 = vsel %vm267, %v323, %v325
        %v327 = vrot.slane %v214, 1
        %v328 = vsel %vm267, %v325, %v327
        %v329 = vrot.slane %v215, 1
        %v330 = vsel %vm267, %v327, %v329
        %v331 = vrot.slane %v216, 1
        %v332 = vsel %vm267, %v329, %v331
        %v333 = vrot.slane %v217, 1
        %v334 = vsel %vm267, %v331, %v333
        %v335 = vrot.slane %v218, 1
        %v336 = vsel %vm267, %v333, %v335
        %v337 = vrot.slane %v219, 1
        %v338 = vsel %vm267, %v335, %v337
        %v339 = vrot.slane %v220, 1
        %v340 = vsel %vm267, %v337, %v339
        %v342 = vrot.slane %v225, 4
        %vm343 = vcmask 31744
        %v344 = vsel %vm343, %v270, 0
        %v346 = vsel %vm343, %v272, 0
        %v348 = vsel %vm343, %v274, 0
        %v350 = vsel %vm343, %v276, 0
        %v352 = vsel %vm343, %v278, 0
        %v354 = vsel %vm343, %v280, 0
        %v356 = vsel %vm343, %v282, 0
        %v358 = vsel %vm343, %v284, 0
        %v360 = vsel %vm343, %v286, 0
        %v362 = vsel %vm343, %v288, 0
        %v364 = vsel %vm343, %v290, 0
        %v366 = vsel %vm343, %v292, 0
        %v368 = vsel %vm343, %v294, 0
        %v370 = vsel %vm343, %v296, 0
        %v372 = vsel %vm343, %v298, 0
        %v374 = vsel %vm343, %v300, 0
        %v376 = vsel %vm343, %v302, 0
        %v378 = vsel %vm343, %v304, 0
        %v380 = vsel %vm343, %v306, 0
        %v382 = vsel %vm343, %v308, 0
        %v384 = vsel %vm343, %v310, 0
        %v386 = vsel %vm343, %v312, 0
        %v388 = vsel %vm343, %v314, 0
        %v390 = vsel %vm343, %v316, 0
        %v392 = vsel %vm343, %v318, 0
        %v394 = vsel %vm343, %v320, 0
        %v396 = vsel %vm343, %v322, 0
        %v398 = vsel %vm343, %v324, 0
        %v400 = vsel %vm343, %v326, 0
        %v402 = vsel %vm343, %v328, 0
        %v404 = vsel %vm343, %v330, 0
        %v406 = vsel %vm343, %v332, 0
        %v408 = vsel %vm343, %v334, 0
        %v410 = vsel %vm343, %v336, 0
        %v412 = vsel %vm343, %v338, 0
        %v414 = vsel %vm343, %v340, 0
        %vm416 = vcmask 1043456
        %v417 = vsel %vm416, %v342, 0
        %419 = vmatprep.subr.mxu0 0.0
        %420 = vmatpush1.msra.mxu0 %v417
        %421 = vmatprep.subr.mxu0 0.0
        %422 = vmatpush1.msra.mxu0 0.0
        %423 = vmatprep.subr.mxu0 0.0
        %424 = vmatpush1.msra.mxu0 0.0
        %425 = vmatprep.subr.mxu0 0.0
        %426 = vmatpush1.msra.mxu0 0.0
        %427 = vmatprep.subr.mxu0 0.0
        %428 = vmatpush1.msra.mxu0 0.0
        %429 = vmatprep.subr.mxu0 0.0
        %430 = vmatpush1.msra.mxu0 0.0
        %431 = vmatprep.subr.mxu0 0.0
        %432 = vmatpush1.msra.mxu0 0.0
        %433 = vmatprep.subr.mxu0 0.0
        %434 = vmatpush1.msra.mxu0 0.0
        %435 = vmatprep.subr.mxu0 0.0
        %436 = vmatpush1.msra.mxu0 0.0
        %437 = vmatprep.subr.mxu0 0.0
        %438 = vmatpush1.msra.mxu0 0.0
        %439 = vmatprep.subr.mxu0 0.0
        %440 = vmatpush1.msra.mxu0 0.0
        %441 = vmatprep.subr.mxu0 0.0
        %442 = vmatpush1.msra.mxu0 0.0
        %443 = vmatprep.subr.mxu0 0.0
        %444 = vmatpush1.msra.mxu0 0.0
        %445 = vmatprep.subr.mxu0 0.0
        %446 = vmatpush1.msra.mxu0 0.0
        %447 = vmatprep.subr.mxu0 0.0
        %448 = vmatpush1.msra.mxu0 0.0
        %449 = vmatprep.subr.mxu0 0.0
        %450 = vmatpush1.msra.mxu0 0.0
        %451 = vmatprep.subr.mxu0 0.0
        %452 = vmatpush1.msra.mxu0 0.0
        %453 = vmatprep.subr.mxu0 0.0
        %454 = vmatpush1.msra.mxu0 0.0
        %455 = vmatprep.subr.mxu0 0.0
        %456 = vmatpush1.msra.mxu0 0.0
        %457 = vmatprep.subr.mxu0 0.0
        %458 = vmatpush1.msra.mxu0 0.0
        %459 = vmatprep.subr.mxu0 0.0
        %460 = vmatpush1.msra.mxu0 0.0
        %461 = vmatprep.subr.mxu0 0.0
        %462 = vmatpush1.msra.mxu0 0.0
        %463 = vmatprep.subr.mxu0 0.0
        %464 = vmatpush1.msra.mxu0 0.0
        %465 = vmatprep.subr.mxu0 0.0
        %466 = vmatpush1.msra.mxu0 0.0
        %467 = vmatprep.subr.mxu0 0.0
        %468 = vmatpush1.msra.mxu0 0.0
        %469 = vmatprep.subr.mxu0 0.0
        %470 = vmatpush1.msra.mxu0 0.0
        %471 = vmatprep.subr.mxu0 0.0
        %472 = vmatpush1.msra.mxu0 0.0
        %473 = vmatprep.subr.mxu0 0.0
        %474 = vmatpush1.msra.mxu0 0.0
        %475 = vmatprep.subr.mxu0 0.0
        %476 = vmatpush1.msra.mxu0 0.0
        %477 = vmatprep.subr.mxu0 0.0
        %478 = vmatpush1.msra.mxu0 0.0
        %479 = vmatprep.subr.mxu0 0.0
        %480 = vmatpush1.msra.mxu0 0.0
        %481 = vmatprep.subr.mxu0 0.0
        %482 = vmatpush1.msra.mxu0 0.0
        %483 = vmatprep.mubr.f32.mxu0 0.0
        %484 = vmatmul.mubr.f32.gmra.mrb[0].mxu0 %v344
        %v485 = vpop.f32.mrb[0].mxu0
        %v486 = vadd.f32 0.0, %v485
        %v487 = vpop.f32.mrb[0].mxu0
        %488 = vmatprep.mubr.f32.mxu0 0.0
        %489 = vmatmul.mubr.f32.gmra.mrb[0].mxu0 %v346
        %v490 = vpop.f32.mrb[0].mxu0
        %v491 = vadd.f32 0.0, %v490
        %v492 = vpop.f32.mrb[0].mxu0
        %493 = vmatprep.mubr.f32.mxu0 0.0
        %494 = vmatmul.mubr.f32.gmra.mrb[0].mxu0 %v348
        %v495 = vpop.f32.mrb[0].mxu0
        %v496 = vadd.f32 0.0, %v495
        %v497 = vpop.f32.mrb[0].mxu0
        %498 = vmatprep.mubr.f32.mxu0 0.0
        %499 = vmatmul.mubr.f32.gmra.mrb[0].mxu0 %v350
        %v500 = vpop.f32.mrb[0].mxu0
        %v501 = vadd.f32 0.0, %v500
        %v502 = vpop.f32.mrb[0].mxu0
        %503 = vmatprep.mubr.f32.mxu0 0.0
        %504 = vmatmul.mubr.f32.gmra.mrb[0].mxu0 %v352
        %v505 = vpop.f32.mrb[0].mxu0
        %v506 = vadd.f32 0.0, %v505
        %v507 = vpop.f32.mrb[0].mxu0
        %508 = vmatprep.mubr.f32.mxu0 0.0
        %509 = vmatmul.mubr.f32.gmra.mrb[0].mxu0 %v354
        %v510 = vpop.f32.mrb[0].mxu0
        %v511 = vadd.f32 0.0, %v510
        %v512 = vpop.f32.mrb[0].mxu0
        %513 = vmatprep.mubr.f32.mxu0 0.0
        %514 = vmatmul.mubr.f32.gmra.mrb[0].mxu0 %v356
        %v515 = vpop.f32.mrb[0].mxu0
        %v516 = vadd.f32 0.0, %v515
        %v517 = vpop.f32.mrb[0].mxu0
        %518 = vmatprep.mubr.f32.mxu0 0.0
        %519 = vmatmul.mubr.f32.gmra.mrb[0].mxu0 %v358
        %v520 = vpop.f32.mrb[0].mxu0
        %v521 = vadd.f32 0.0, %v520
        %v522 = vpop.f32.mrb[0].mxu0
        %523 = vmatprep.mubr.f32.mxu0 0.0
        %524 = vmatmul.mubr.f32.gmra.mrb[0].mxu0 %v360
        %v525 = vpop.f32.mrb[0].mxu0
        %v526 = vadd.f32 0.0, %v525
        %v527 = vpop.f32.mrb[0].mxu0
        %528 = vmatprep.mubr.f32.mxu0 0.0
        %529 = vmatmul.mubr.f32.gmra.mrb[0].mxu0 %v362
        %v530 = vpop.f32.mrb[0].mxu0
        %v531 = vadd.f32 0.0, %v530
        %v532 = vpop.f32.mrb[0].mxu0
        %533 = vmatprep.mubr.f32.mxu0 0.0
        %534 = vmatmul.mubr.f32.gmra.mrb[0].mxu0 %v364
        %v535 = vpop.f32.mrb[0].mxu0
        %v536 = vadd.f32 0.0, %v535
        %v537 = vpop.f32.mrb[0].mxu0
        %538 = vmatprep.mubr.f32.mxu0 0.0
        %539 = vmatmul.mubr.f32.gmra.mrb[0].mxu0 %v366
        %v540 = vpop.f32.mrb[0].mxu0
        %v541 = vadd.f32 0.0, %v540
        %v542 = vpop.f32.mrb[0].mxu0
        %543 = vmatprep.mubr.f32.mxu0 0.0
        %544 = vmatmul.mubr.f32.gmra.mrb[0].mxu0 %v368
        %v545 = vpop.f32.mrb[0].mxu0
        %v546 = vadd.f32 0.0, %v545
        %v547 = vpop.f32.mrb[0].mxu0
        %548 = vmatprep.mubr.f32.mxu0 0.0
        %549 = vmatmul.mubr.f32.gmra.mrb[0].mxu0 %v370
        %v550 = vpop.f32.mrb[0].mxu0
        %v551 = vadd.f32 0.0, %v550
        %v552 = vpop.f32.mrb[0].mxu0
        %553 = vmatprep.mubr.f32.mxu0 0.0
        %554 = vmatmul.mubr.f32.gmra.mrb[0].mxu0 %v372
        %v555 = vpop.f32.mrb[0].mxu0
        %v556 = vadd.f32 0.0, %v555
        %v557 = vpop.f32.mrb[0].mxu0
        %558 = vmatprep.mubr.f32.mxu0 0.0
        %559 = vmatmul.mubr.f32.gmra.mrb[0].mxu0 %v374
        %v560 = vpop.f32.mrb[0].mxu0
        %v561 = vadd.f32 0.0, %v560
        %v562 = vpop.f32.mrb[0].mxu0
        %563 = vmatprep.mubr.f32.mxu0 0.0
        %564 = vmatmul.mubr.f32.gmra.mrb[0].mxu0 %v376
        %v565 = vpop.f32.mrb[0].mxu0
        %v566 = vadd.f32 0.0, %v565
        %v567 = vpop.f32.mrb[0].mxu0
        %568 = vmatprep.mubr.f32.mxu0 0.0
        %569 = vmatmul.mubr.f32.gmra.mrb[0].mxu0 %v378
        %v570 = vpop.f32.mrb[0].mxu0
        %v571 = vadd.f32 0.0, %v570
        %v572 = vpop.f32.mrb[0].mxu0
        %573 = vmatprep.mubr.f32.mxu0 0.0
        %574 = vmatmul.mubr.f32.gmra.mrb[0].mxu0 %v380
        %v575 = vpop.f32.mrb[0].mxu0
        %v576 = vadd.f32 0.0, %v575
        %v577 = vpop.f32.mrb[0].mxu0
        %578 = vmatprep.mubr.f32.mxu0 0.0
        %579 = vmatmul.mubr.f32.gmra.mrb[0].mxu0 %v382
        %v580 = vpop.f32.mrb[0].mxu0
        %v581 = vadd.f32 0.0, %v580
        %v582 = vpop.f32.mrb[0].mxu0
        %583 = vmatprep.mubr.f32.mxu0 0.0
        %584 = vmatmul.mubr.f32.gmra.mrb[0].mxu0 %v384
        %v585 = vpop.f32.mrb[0].mxu0
        %v586 = vadd.f32 0.0, %v585
        %v587 = vpop.f32.mrb[0].mxu0
        %588 = vmatprep.mubr.f32.mxu0 0.0
        %589 = vmatmul.mubr.f32.gmra.mrb[0].mxu0 %v386
        %v590 = vpop.f32.mrb[0].mxu0
        %v591 = vadd.f32 0.0, %v590
        %v592 = vpop.f32.mrb[0].mxu0
        %593 = vmatprep.mubr.f32.mxu0 0.0
        %594 = vmatmul.mubr.f32.gmra.mrb[0].mxu0 %v388
        %v595 = vpop.f32.mrb[0].mxu0
        %v596 = vadd.f32 0.0, %v595
        %v597 = vpop.f32.mrb[0].mxu0
        %598 = vmatprep.mubr.f32.mxu0 0.0
        %599 = vmatmul.mubr.f32.gmra.mrb[0].mxu0 %v390
        %v600 = vpop.f32.mrb[0].mxu0
        %v601 = vadd.f32 0.0, %v600
        %v602 = vpop.f32.mrb[0].mxu0
        %603 = vmatprep.mubr.f32.mxu0 0.0
        %604 = vmatmul.mubr.f32.gmra.mrb[0].mxu0 %v392
        %v605 = vpop.f32.mrb[0].mxu0
        %v606 = vadd.f32 0.0, %v605
        %v607 = vpop.f32.mrb[0].mxu0
        %608 = vmatprep.mubr.f32.mxu0 0.0
        %609 = vmatmul.mubr.f32.gmra.mrb[0].mxu0 %v394
        %v610 = vpop.f32.mrb[0].mxu0
        %v611 = vadd.f32 0.0, %v610
        %v612 = vpop.f32.mrb[0].mxu0
        %613 = vmatprep.mubr.f32.mxu0 0.0
        %614 = vmatmul.mubr.f32.gmra.mrb[0].mxu0 %v396
        %v615 = vpop.f32.mrb[0].mxu0
        %v616 = vadd.f32 0.0, %v615
        %v617 = vpop.f32.mrb[0].mxu0
        %618 = vmatprep.mubr.f32.mxu0 0.0
        %619 = vmatmul.mubr.f32.gmra.mrb[0].mxu0 %v398
        %v620 = vpop.f32.mrb[0].mxu0
        %v621 = vadd.f32 0.0, %v620
        %v622 = vpop.f32.mrb[0].mxu0
        %623 = vmatprep.mubr.f32.mxu0 0.0
        %624 = vmatmul.mubr.f32.gmra.mrb[0].mxu0 %v400
        %v625 = vpop.f32.mrb[0].mxu0
        %v626 = vadd.f32 0.0, %v625
        %v627 = vpop.f32.mrb[0].mxu0
        %628 = vmatprep.mubr.f32.mxu0 0.0
        %629 = vmatmul.mubr.f32.gmra.mrb[0].mxu0 %v402
        %v630 = vpop.f32.mrb[0].mxu0
        %v631 = vadd.f32 0.0, %v630
        %v632 = vpop.f32.mrb[0].mxu0
        %633 = vmatprep.mubr.f32.mxu0 0.0
        %634 = vmatmul.mubr.f32.gmra.mrb[0].mxu0 %v404
        %v635 = vpop.f32.mrb[0].mxu0
        %v636 = vadd.f32 0.0, %v635
        %v637 = vpop.f32.mrb[0].mxu0
        %638 = vmatprep.mubr.f32.mxu0 0.0
        %639 = vmatmul.mubr.f32.gmra.mrb[0].mxu0 %v406
        %v640 = vpop.f32.mrb[0].mxu0
        %v641 = vadd.f32 0.0, %v640
        %v642 = vpop.f32.mrb[0].mxu0
        %643 = vmatprep.mubr.f32.mxu0 0.0
        %644 = vmatmul.mubr.f32.gmra.mrb[0].mxu0 %v408
        %v645 = vpop.f32.mrb[0].mxu0
        %v646 = vadd.f32 0.0, %v645
        %v647 = vpop.f32.mrb[0].mxu0
        %648 = vmatprep.mubr.f32.mxu0 0.0
        %649 = vmatmul.mubr.f32.gmra.mrb[0].mxu0 %v410
        %v650 = vpop.f32.mrb[0].mxu0
        %v651 = vadd.f32 0.0, %v650
        %v652 = vpop.f32.mrb[0].mxu0
        %653 = vmatprep.mubr.f32.mxu0 0.0
        %654 = vmatmul.mubr.f32.gmra.mrb[0].mxu0 %v412
        %v655 = vpop.f32.mrb[0].mxu0
        %v656 = vadd.f32 0.0, %v655
        %v657 = vpop.f32.mrb[0].mxu0
        %658 = vmatprep.mubr.f32.mxu0 0.0
        %659 = vmatmul.mubr.f32.gmra.mrb[0].mxu0 %v414
        %v660 = vpop.f32.mrb[0].mxu0
        %v661 = vadd.f32 0.0, %v660
        %v662 = vpop.f32.mrb[0].mxu0
        %663 = vdwg.mxu0
        %v664 = vsel %vm343, %v184, 0
        %v666 = vsel %vm343, %v185, 0
        %v668 = vsel %vm343, %v186, 0
        %v670 = vsel %vm343, %v187, 0
        %v672 = vsel %vm343, %v188, 0
        %v674 = vsel %vm343, %v189, 0
        %v676 = vsel %vm343, %v190, 0
        %v678 = vsel %vm343, %v191, 0
        %v680 = vsel %vm343, %v192, 0
        %v682 = vsel %vm343, %v193, 0
        %v684 = vsel %vm343, %v194, 0
        %v686 = vsel %vm343, %v195, 0
        %v688 = vsel %vm343, %v196, 0
        %v690 = vsel %vm343, %v197, 0
        %v692 = vsel %vm343, %v198, 0
        %v694 = vsel %vm343, %v199, 0
        %v696 = vsel %vm343, %v200, 0
        %v698 = vsel %vm343, %v201, 0
        %v700 = vsel %vm343, %v202, 0
        %v702 = vsel %vm343, %v203, 0
        %v704 = vsel %vm343, %v204, 0
        %v706 = vsel %vm343, %v205, 0
        %v708 = vsel %vm343, %v206, 0
        %v710 = vsel %vm343, %v207, 0
        %v712 = vsel %vm343, %v208, 0
        %v714 = vsel %vm343, %v209, 0
        %v716 = vsel %vm343, %v210, 0
        %v718 = vsel %vm343, %v211, 0
        %v720 = vsel %vm343, %v212, 0
        %v722 = vsel %vm343, %v213, 0
        %v724 = vsel %vm343, %v214, 0
        %v726 = vsel %vm343, %v215, 0
        %v728 = vsel %vm343, %v216, 0
        %v730 = vsel %vm343, %v217, 0
        %v732 = vsel %vm343, %v218, 0
        %v734 = vsel %vm343, %v219, 0
        %v736 = vsel %vm416, %v225, 0
        %738 = vmatprep.subr.mxu0 0.0
        %739 = vmatpush1.msra.mxu0 %v736
        %740 = vmatprep.subr.mxu0 0.0
        %741 = vmatpush1.msra.mxu0 0.0
        %742 = vmatprep.subr.mxu0 0.0
        %743 = vmatpush1.msra.mxu0 0.0
        %744 = vmatprep.subr.mxu0 0.0
        %745 = vmatpush1.msra.mxu0 0.0
        %746 = vmatprep.subr.mxu0 0.0
        %747 = vmatpush1.msra.mxu0 0.0
        %748 = vmatprep.subr.mxu0 0.0
        %749 = vmatpush1.msra.mxu0 0.0
        %750 = vmatprep.subr.mxu0 0.0
        %751 = vmatpush1.msra.mxu0 0.0
        %752 = vmatprep.subr.mxu0 0.0
        %753 = vmatpush1.msra.mxu0 0.0
        %754 = vmatprep.subr.mxu0 0.0
        %755 = vmatpush1.msra.mxu0 0.0
        %756 = vmatprep.subr.mxu0 0.0
        %757 = vmatpush1.msra.mxu0 0.0
        %758 = vmatprep.subr.mxu0 0.0
        %759 = vmatpush1.msra.mxu0 0.0
        %760 = vmatprep.subr.mxu0 0.0
        %761 = vmatpush1.msra.mxu0 0.0
        %762 = vmatprep.subr.mxu0 0.0
        %763 = vmatpush1.msra.mxu0 0.0
        %764 = vmatprep.subr.mxu0 0.0
        %765 = vmatpush1.msra.mxu0 0.0
        %766 = vmatprep.subr.mxu0 0.0
        %767 = vmatpush1.msra.mxu0 0.0
        %768 = vmatprep.subr.mxu0 0.0
        %769 = vmatpush1.msra.mxu0 0.0
        %770 = vmatprep.subr.mxu0 0.0
        %771 = vmatpush1.msra.mxu0 0.0
        %772 = vmatprep.subr.mxu0 0.0
        %773 = vmatpush1.msra.mxu0 0.0
        %774 = vmatprep.subr.mxu0 0.0
        %775 = vmatpush1.msra.mxu0 0.0
        %776 = vmatprep.subr.mxu0 0.0
        %777 = vmatpush1.msra.mxu0 0.0
        %778 = vmatprep.subr.mxu0 0.0
        %779 = vmatpush1.msra.mxu0 0.0
        %780 = vmatprep.subr.mxu0 0.0
        %781 = vmatpush1.msra.mxu0 0.0
        %782 = vmatprep.subr.mxu0 0.0
        %783 = vmatpush1.msra.mxu0 0.0
        %784 = vmatprep.subr.mxu0 0.0
        %785 = vmatpush1.msra.mxu0 0.0
        %786 = vmatprep.subr.mxu0 0.0
        %787 = vmatpush1.msra.mxu0 0.0
        %788 = vmatprep.subr.mxu0 0.0
        %789 = vmatpush1.msra.mxu0 0.0
        %790 = vmatprep.subr.mxu0 0.0
        %791 = vmatpush1.msra.mxu0 0.0
        %792 = vmatprep.subr.mxu0 0.0
        %793 = vmatpush1.msra.mxu0 0.0
        %794 = vmatprep.subr.mxu0 0.0
        %795 = vmatpush1.msra.mxu0 0.0
        %796 = vmatprep.subr.mxu0 0.0
        %797 = vmatpush1.msra.mxu0 0.0
        %798 = vmatprep.subr.mxu0 0.0
        %799 = vmatpush1.msra.mxu0 0.0
        %800 = vmatprep.subr.mxu0 0.0
        %801 = vmatpush1.msra.mxu0 0.0
        %802 = vmatprep.mubr.f32.mxu0 0.0
        %803 = vmatmul.mubr.f32.gmra.mrb[0].mxu0 %v664
        %v804 = vpop.f32.mrb[0].mxu0
        %v805 = vadd.f32 %v486, %v804
        %v806 = vpop.f32.mrb[0].mxu0
        %807 = vmatprep.mubr.f32.mxu0 0.0
        %808 = vmatmul.mubr.f32.gmra.mrb[0].mxu0 %v666
        %v809 = vpop.f32.mrb[0].mxu0
        %v810 = vadd.f32 %v491, %v809
        %v811 = vpop.f32.mrb[0].mxu0
        %812 = vmatprep.mubr.f32.mxu0 0.0
        %813 = vmatmul.mubr.f32.gmra.mrb[0].mxu0 %v668
        %v814 = vpop.f32.mrb[0].mxu0
        %v815 = vadd.f32 %v496, %v814
        %v816 = vpop.f32.mrb[0].mxu0
        %817 = vmatprep.mubr.f32.mxu0 0.0
        %818 = vmatmul.mubr.f32.gmra.mrb[0].mxu0 %v670
        %v819 = vpop.f32.mrb[0].mxu0
        %v820 = vadd.f32 %v501, %v819
        %v821 = vpop.f32.mrb[0].mxu0
        %822 = vmatprep.mubr.f32.mxu0 0.0
        %823 = vmatmul.mubr.f32.gmra.mrb[0].mxu0 %v672
        %v824 = vpop.f32.mrb[0].mxu0
        %v825 = vadd.f32 %v506, %v824
        %v826 = vpop.f32.mrb[0].mxu0
        %827 = vmatprep.mubr.f32.mxu0 0.0
        %828 = vmatmul.mubr.f32.gmra.mrb[0].mxu0 %v674
        %v829 = vpop.f32.mrb[0].mxu0
        %v830 = vadd.f32 %v511, %v829
        %v831 = vpop.f32.mrb[0].mxu0
        %832 = vmatprep.mubr.f32.mxu0 0.0
        %833 = vmatmul.mubr.f32.gmra.mrb[0].mxu0 %v676
        %v834 = vpop.f32.mrb[0].mxu0
        %v835 = vadd.f32 %v516, %v834
        %v836 = vpop.f32.mrb[0].mxu0
        %837 = vmatprep.mubr.f32.mxu0 0.0
        %838 = vmatmul.mubr.f32.gmra.mrb[0].mxu0 %v678
        %v839 = vpop.f32.mrb[0].mxu0
        %v840 = vadd.f32 %v521, %v839
        %v841 = vpop.f32.mrb[0].mxu0
        %842 = vmatprep.mubr.f32.mxu0 0.0
        %843 = vmatmul.mubr.f32.gmra.mrb[0].mxu0 %v680
        %v844 = vpop.f32.mrb[0].mxu0
        %v845 = vadd.f32 %v526, %v844
        %v846 = vpop.f32.mrb[0].mxu0
        %847 = vmatprep.mubr.f32.mxu0 0.0
        %848 = vmatmul.mubr.f32.gmra.mrb[0].mxu0 %v682
        %v849 = vpop.f32.mrb[0].mxu0
        %v850 = vadd.f32 %v531, %v849
        %v851 = vpop.f32.mrb[0].mxu0
        %852 = vmatprep.mubr.f32.mxu0 0.0
        %853 = vmatmul.mubr.f32.gmra.mrb[0].mxu0 %v684
        %v854 = vpop.f32.mrb[0].mxu0
        %v855 = vadd.f32 %v536, %v854
        %v856 = vpop.f32.mrb[0].mxu0
        %857 = vmatprep.mubr.f32.mxu0 0.0
        %858 = vmatmul.mubr.f32.gmra.mrb[0].mxu0 %v686
        %v859 = vpop.f32.mrb[0].mxu0
        %v860 = vadd.f32 %v541, %v859
        %v861 = vpop.f32.mrb[0].mxu0
        %862 = vmatprep.mubr.f32.mxu0 0.0
        %863 = vmatmul.mubr.f32.gmra.mrb[0].mxu0 %v688
        %v864 = vpop.f32.mrb[0].mxu0
        %v865 = vadd.f32 %v546, %v864
        %v866 = vpop.f32.mrb[0].mxu0
        %867 = vmatprep.mubr.f32.mxu0 0.0
        %868 = vmatmul.mubr.f32.gmra.mrb[0].mxu0 %v690
        %v869 = vpop.f32.mrb[0].mxu0
        %v870 = vadd.f32 %v551, %v869
        %v871 = vpop.f32.mrb[0].mxu0
        %872 = vmatprep.mubr.f32.mxu0 0.0
        %873 = vmatmul.mubr.f32.gmra.mrb[0].mxu0 %v692
        %v874 = vpop.f32.mrb[0].mxu0
        %v875 = vadd.f32 %v556, %v874
        %v876 = vpop.f32.mrb[0].mxu0
        %877 = vmatprep.mubr.f32.mxu0 0.0
        %878 = vmatmul.mubr.f32.gmra.mrb[0].mxu0 %v694
        %v879 = vpop.f32.mrb[0].mxu0
        %v880 = vadd.f32 %v561, %v879
        %v881 = vpop.f32.mrb[0].mxu0
        %882 = vmatprep.mubr.f32.mxu0 0.0
        %883 = vmatmul.mubr.f32.gmra.mrb[0].mxu0 %v696
        %v884 = vpop.f32.mrb[0].mxu0
        %v885 = vadd.f32 %v566, %v884
        %v886 = vpop.f32.mrb[0].mxu0
        %887 = vmatprep.mubr.f32.mxu0 0.0
        %888 = vmatmul.mubr.f32.gmra.mrb[0].mxu0 %v698
        %v889 = vpop.f32.mrb[0].mxu0
        %v890 = vadd.f32 %v571, %v889
        %v891 = vpop.f32.mrb[0].mxu0
        %892 = vmatprep.mubr.f32.mxu0 0.0
        %893 = vmatmul.mubr.f32.gmra.mrb[0].mxu0 %v700
        %v894 = vpop.f32.mrb[0].mxu0
        %v895 = vadd.f32 %v576, %v894
        %v896 = vpop.f32.mrb[0].mxu0
        %897 = vmatprep.mubr.f32.mxu0 0.0
        %898 = vmatmul.mubr.f32.gmra.mrb[0].mxu0 %v702
        %v899 = vpop.f32.mrb[0].mxu0
        %v900 = vadd.f32 %v581, %v899
        %v901 = vpop.f32.mrb[0].mxu0
        %902 = vmatprep.mubr.f32.mxu0 0.0
        %903 = vmatmul.mubr.f32.gmra.mrb[0].mxu0 %v704
        %v904 = vpop.f32.mrb[0].mxu0
        %v905 = vadd.f32 %v586, %v904
        %v906 = vpop.f32.mrb[0].mxu0
        %907 = vmatprep.mubr.f32.mxu0 0.0
        %908 = vmatmul.mubr.f32.gmra.mrb[0].mxu0 %v706
        %v909 = vpop.f32.mrb[0].mxu0
        %v910 = vadd.f32 %v591, %v909
        %v911 = vpop.f32.mrb[0].mxu0
        %912 = vmatprep.mubr.f32.mxu0 0.0
        %913 = vmatmul.mubr.f32.gmra.mrb[0].mxu0 %v708
        %v914 = vpop.f32.mrb[0].mxu0
        %v915 = vadd.f32 %v596, %v914
        %v916 = vpop.f32.mrb[0].mxu0
        %917 = vmatprep.mubr.f32.mxu0 0.0
        %918 = vmatmul.mubr.f32.gmra.mrb[0].mxu0 %v710
        %v919 = vpop.f32.mrb[0].mxu0
        %v920 = vadd.f32 %v601, %v919
        %v921 = vpop.f32.mrb[0].mxu0
        %922 = vmatprep.mubr.f32.mxu0 0.0
        %923 = vmatmul.mubr.f32.gmra.mrb[0].mxu0 %v712
        %v924 = vpop.f32.mrb[0].mxu0
        %v925 = vadd.f32 %v606, %v924
        %v926 = vpop.f32.mrb[0].mxu0
        %927 = vmatprep.mubr.f32.mxu0 0.0
        %928 = vmatmul.mubr.f32.gmra.mrb[0].mxu0 %v714
        %v929 = vpop.f32.mrb[0].mxu0
        %v930 = vadd.f32 %v611, %v929
        %v931 = vpop.f32.mrb[0].mxu0
        %932 = vmatprep.mubr.f32.mxu0 0.0
        %933 = vmatmul.mubr.f32.gmra.mrb[0].mxu0 %v716
        %v934 = vpop.f32.mrb[0].mxu0
        %v935 = vadd.f32 %v616, %v934
        %v936 = vpop.f32.mrb[0].mxu0
        %937 = vmatprep.mubr.f32.mxu0 0.0
        %938 = vmatmul.mubr.f32.gmra.mrb[0].mxu0 %v718
        %v939 = vpop.f32.mrb[0].mxu0
        %v940 = vadd.f32 %v621, %v939
        %v941 = vpop.f32.mrb[0].mxu0
        %942 = vmatprep.mubr.f32.mxu0 0.0
        %943 = vmatmul.mubr.f32.gmra.mrb[0].mxu0 %v720
        %v944 = vpop.f32.mrb[0].mxu0
        %v945 = vadd.f32 %v626, %v944
        %v946 = vpop.f32.mrb[0].mxu0
        %947 = vmatprep.mubr.f32.mxu0 0.0
        %948 = vmatmul.mubr.f32.gmra.mrb[0].mxu0 %v722
        %v949 = vpop.f32.mrb[0].mxu0
        %v950 = vadd.f32 %v631, %v949
        %v951 = vpop.f32.mrb[0].mxu0
        %952 = vmatprep.mubr.f32.mxu0 0.0
        %953 = vmatmul.mubr.f32.gmra.mrb[0].mxu0 %v724
        %v954 = vpop.f32.mrb[0].mxu0
        %v955 = vadd.f32 %v636, %v954
        %v956 = vpop.f32.mrb[0].mxu0
        %957 = vmatprep.mubr.f32.mxu0 0.0
        %958 = vmatmul.mubr.f32.gmra.mrb[0].mxu0 %v726
        %v959 = vpop.f32.mrb[0].mxu0
        %v960 = vadd.f32 %v641, %v959
        %v961 = vpop.f32.mrb[0].mxu0
        %962 = vmatprep.mubr.f32.mxu0 0.0
        %963 = vmatmul.mubr.f32.gmra.mrb[0].mxu0 %v728
        %v964 = vpop.f32.mrb[0].mxu0
        %v965 = vadd.f32 %v646, %v964
        %v966 = vpop.f32.mrb[0].mxu0
        %967 = vmatprep.mubr.f32.mxu0 0.0
        %968 = vmatmul.mubr.f32.gmra.mrb[0].mxu0 %v730
        %v969 = vpop.f32.mrb[0].mxu0
        %v970 = vadd.f32 %v651, %v969
        %v971 = vpop.f32.mrb[0].mxu0
        %972 = vmatprep.mubr.f32.mxu0 0.0
        %973 = vmatmul.mubr.f32.gmra.mrb[0].mxu0 %v732
        %v974 = vpop.f32.mrb[0].mxu0
        %v975 = vadd.f32 %v656, %v974
        %v976 = vpop.f32.mrb[0].mxu0
        %977 = vmatprep.mubr.f32.mxu0 0.0
        %978 = vmatmul.mubr.f32.gmra.mrb[0].mxu0 %v734
        %v979 = vpop.f32.mrb[0].mxu0
        %v980 = vadd.f32 %v661, %v979
        %v981 = vpop.f32.mrb[0].mxu0
        %982 = vdwg.mxu0
        %vm983 = vcmask 1045504
        %v984 = vrot.slane %v184, 2
        %v985 = vrot.slane %v185, 2
        %v986 = vsel %vm983, %v984, %v985
        %v987 = vrot.slane %v186, 2
        %v988 = vsel %vm983, %v985, %v987
        %v989 = vrot.slane %v187, 2
        %v990 = vsel %vm983, %v987, %v989
        %v991 = vrot.slane %v188, 2
        %v992 = vsel %vm983, %v989, %v991
        %v993 = vrot.slane %v189, 2
        %v994 = vsel %vm983, %v991, %v993
        %v995 = vrot.slane %v190, 2
        %v996 = vsel %vm983, %v993, %v995
        %v997 = vrot.slane %v191, 2
        %v998 = vsel %vm983, %v995, %v997
        %v999 = vrot.slane %v192, 2
        %v1000 = vsel %vm983, %v997, %v999
        %v1001 = vrot.slane %v193, 2
        %v1002 = vsel %vm983, %v999, %v1001
        %v1003 = vrot.slane %v194, 2
        %v1004 = vsel %vm983, %v1001, %v1003
        %v1005 = vrot.slane %v195, 2
        %v1006 = vsel %vm983, %v1003, %v1005
        %v1007 = vrot.slane %v196, 2
        %v1008 = vsel %vm983, %v1005, %v1007
        %v1009 = vrot.slane %v197, 2
        %v1010 = vsel %vm983, %v1007, %v1009
        %v1011 = vrot.slane %v198, 2
        %v1012 = vsel %vm983, %v1009, %v1011
        %v1013 = vrot.slane %v199, 2
        %v1014 = vsel %vm983, %v1011, %v1013
        %v1015 = vrot.slane %v200, 2
        %v1016 = vsel %vm983, %v1013, %v1015
        %v1017 = vrot.slane %v201, 2
        %v1018 = vsel %vm983, %v1015, %v1017
        %v1019 = vrot.slane %v202, 2
        %v1020 = vsel %vm983, %v1017, %v1019
        %v1021 = vrot.slane %v203, 2
        %v1022 = vsel %vm983, %v1019, %v1021
        %v1023 = vrot.slane %v204, 2
        %v1024 = vsel %vm983, %v1021, %v1023
        %v1025 = vrot.slane %v205, 2
        %v1026 = vsel %vm983, %v1023, %v1025
        %v1027 = vrot.slane %v206, 2
        %v1028 = vsel %vm983, %v1025, %v1027
        %v1029 = vrot.slane %v207, 2
        %v1030 = vsel %vm983, %v1027, %v1029
        %v1031 = vrot.slane %v208, 2
        %v1032 = vsel %vm983, %v1029, %v1031
        %v1033 = vrot.slane %v209, 2
        %v1034 = vsel %vm983, %v1031, %v1033
        %v1035 = vrot.slane %v210, 2
        %v1036 = vsel %vm983, %v1033, %v1035
        %v1037 = vrot.slane %v211, 2
        %v1038 = vsel %vm983, %v1035, %v1037
        %v1039 = vrot.slane %v212, 2
        %v1040 = vsel %vm983, %v1037, %v1039
        %v1041 = vrot.slane %v213, 2
        %v1042 = vsel %vm983, %v1039, %v1041
        %v1043 = vrot.slane %v214, 2
        %v1044 = vsel %vm983, %v1041, %v1043
        %v1045 = vrot.slane %v215, 2
        %v1046 = vsel %vm983, %v1043, %v1045
        %v1047 = vrot.slane %v216, 2
        %v1048 = vsel %vm983, %v1045, %v1047
        %v1049 = vrot.slane %v217, 2
        %v1050 = vsel %vm983, %v1047, %v1049
        %v1051 = vrot.slane %v218, 2
        %v1052 = vsel %vm983, %v1049, %v1051
        %v1053 = vrot.slane %v219, 2
        %v1054 = vsel %vm983, %v1051, %v1053
        %v1055 = vrot.slane %v220, 2
        %v1056 = vsel %vm983, %v1053, %v1055
        %v1057 = vsel %vm343, %v986, 0
        %v1059 = vsel %vm343, %v988, 0
        %v1061 = vsel %vm343, %v990, 0
        %v1063 = vsel %vm343, %v992, 0
        %v1065 = vsel %vm343, %v994, 0
        %v1067 = vsel %vm343, %v996, 0
        %v1069 = vsel %vm343, %v998, 0
        %v1071 = vsel %vm343, %v1000, 0
        %v1073 = vsel %vm343, %v1002, 0
        %v1075 = vsel %vm343, %v1004, 0
        %v1077 = vsel %vm343, %v1006, 0
        %v1079 = vsel %vm343, %v1008, 0
        %v1081 = vsel %vm343, %v1010, 0
        %v1083 = vsel %vm343, %v1012, 0
        %v1085 = vsel %vm343, %v1014, 0
        %v1087 = vsel %vm343, %v1016, 0
        %v1089 = vsel %vm343, %v1018, 0
        %v1091 = vsel %vm343, %v1020, 0
        %v1093 = vsel %vm343, %v1022, 0
        %v1095 = vsel %vm343, %v1024, 0
        %v1097 = vsel %vm343, %v1026, 0
        %v1099 = vsel %vm343, %v1028, 0
        %v1101 = vsel %vm343, %v1030, 0
        %v1103 = vsel %vm343, %v1032, 0
        %v1105 = vsel %vm343, %v1034, 0
        %v1107 = vsel %vm343, %v1036, 0
        %v1109 = vsel %vm343, %v1038, 0
        %v1111 = vsel %vm343, %v1040, 0
        %v1113 = vsel %vm343, %v1042, 0
        %v1115 = vsel %vm343, %v1044, 0
        %v1117 = vsel %vm343, %v1046, 0
        %v1119 = vsel %vm343, %v1048, 0
        %v1121 = vsel %vm343, %v1050, 0
        %v1123 = vsel %vm343, %v1052, 0
        %v1125 = vsel %vm343, %v1054, 0
        %v1127 = vsel %vm343, %v1056, 0
        %v1130 = vsel %vm416, %v226, 0
        %1132 = vmatprep.subr.mxu0 0.0
        %1133 = vmatpush1.msra.mxu0 %v1130
        %1134 = vmatprep.subr.mxu0 0.0
        %1135 = vmatpush1.msra.mxu0 0.0
        %1136 = vmatprep.subr.mxu0 0.0
        %1137 = vmatpush1.msra.mxu0 0.0
        %1138 = vmatprep.subr.mxu0 0.0
        %1139 = vmatpush1.msra.mxu0 0.0
        %1140 = vmatprep.subr.mxu0 0.0
        %1141 = vmatpush1.msra.mxu0 0.0
        %1142 = vmatprep.subr.mxu0 0.0
        %1143 = vmatpush1.msra.mxu0 0.0
        %1144 = vmatprep.subr.mxu0 0.0
        %1145 = vmatpush1.msra.mxu0 0.0
        %1146 = vmatprep.subr.mxu0 0.0
        %1147 = vmatpush1.msra.mxu0 0.0
        %1148 = vmatprep.subr.mxu0 0.0
        %1149 = vmatpush1.msra.mxu0 0.0
        %1150 = vmatprep.subr.mxu0 0.0
        %1151 = vmatpush1.msra.mxu0 0.0
        %1152 = vmatprep.subr.mxu0 0.0
        %1153 = vmatpush1.msra.mxu0 0.0
        %1154 = vmatprep.subr.mxu0 0.0
        %1155 = vmatpush1.msra.mxu0 0.0
        %1156 = vmatprep.subr.mxu0 0.0
        %1157 = vmatpush1.msra.mxu0 0.0
        %1158 = vmatprep.subr.mxu0 0.0
        %1159 = vmatpush1.msra.mxu0 0.0
        %1160 = vmatprep.subr.mxu0 0.0
        %1161 = vmatpush1.msra.mxu0 0.0
        %1162 = vmatprep.subr.mxu0 0.0
        %1163 = vmatpush1.msra.mxu0 0.0
        %1164 = vmatprep.subr.mxu0 0.0
        %1165 = vmatpush1.msra.mxu0 0.0
        %1166 = vmatprep.subr.mxu0 0.0
        %1167 = vmatpush1.msra.mxu0 0.0
        %1168 = vmatprep.subr.mxu0 0.0
        %1169 = vmatpush1.msra.mxu0 0.0
        %1170 = vmatprep.subr.mxu0 0.0
        %1171 = vmatpush1.msra.mxu0 0.0
        %1172 = vmatprep.subr.mxu0 0.0
        %1173 = vmatpush1.msra.mxu0 0.0
        %1174 = vmatprep.subr.mxu0 0.0
        %1175 = vmatpush1.msra.mxu0 0.0
        %1176 = vmatprep.subr.mxu0 0.0
        %1177 = vmatpush1.msra.mxu0 0.0
        %1178 = vmatprep.subr.mxu0 0.0
        %1179 = vmatpush1.msra.mxu0 0.0
        %1180 = vmatprep.subr.mxu0 0.0
        %1181 = vmatpush1.msra.mxu0 0.0
        %1182 = vmatprep.subr.mxu0 0.0
        %1183 = vmatpush1.msra.mxu0 0.0
        %1184 = vmatprep.subr.mxu0 0.0
        %1185 = vmatpush1.msra.mxu0 0.0
        %1186 = vmatprep.subr.mxu0 0.0
        %1187 = vmatpush1.msra.mxu0 0.0
        %1188 = vmatprep.subr.mxu0 0.0
        %1189 = vmatpush1.msra.mxu0 0.0
        %1190 = vmatprep.subr.mxu0 0.0
        %1191 = vmatpush1.msra.mxu0 0.0
        %1192 = vmatprep.subr.mxu0 0.0
        %1193 = vmatpush1.msra.mxu0 0.0
        %1194 = vmatprep.subr.mxu0 0.0
        %1195 = vmatpush1.msra.mxu0 0.0
        %1196 = vmatprep.mubr.f32.mxu0 0.0
        %1197 = vmatmul.mubr.f32.gmra.mrb[0].mxu0 %v1057
        %v1198 = vpop.f32.mrb[0].mxu0
        %v1199 = vadd.f32 0.0, %v1198
        %v1200 = vpop.f32.mrb[0].mxu0
        %1201 = vmatprep.mubr.f32.mxu0 0.0
        %1202 = vmatmul.mubr.f32.gmra.mrb[0].mxu0 %v1059
        %v1203 = vpop.f32.mrb[0].mxu0
        %v1204 = vadd.f32 0.0, %v1203
        %v1205 = vpop.f32.mrb[0].mxu0
        %1206 = vmatprep.mubr.f32.mxu0 0.0
        %1207 = vmatmul.mubr.f32.gmra.mrb[0].mxu0 %v1061
        %v1208 = vpop.f32.mrb[0].mxu0
        %v1209 = vadd.f32 0.0, %v1208
        %v1210 = vpop.f32.mrb[0].mxu0
        %1211 = vmatprep.mubr.f32.mxu0 0.0
        %1212 = vmatmul.mubr.f32.gmra.mrb[0].mxu0 %v1063
        %v1213 = vpop.f32.mrb[0].mxu0
        %v1214 = vadd.f32 0.0, %v1213
        %v1215 = vpop.f32.mrb[0].mxu0
        %1216 = vmatprep.mubr.f32.mxu0 0.0
        %1217 = vmatmul.mubr.f32.gmra.mrb[0].mxu0 %v1065
        %v1218 = vpop.f32.mrb[0].mxu0
        %v1219 = vadd.f32 0.0, %v1218
        %v1220 = vpop.f32.mrb[0].mxu0
        %1221 = vmatprep.mubr.f32.mxu0 0.0
        %1222 = vmatmul.mubr.f32.gmra.mrb[0].mxu0 %v1067
        %v1223 = vpop.f32.mrb[0].mxu0
        %v1224 = vadd.f32 0.0, %v1223
        %v1225 = vpop.f32.mrb[0].mxu0
        %1226 = vmatprep.mubr.f32.mxu0 0.0
        %1227 = vmatmul.mubr.f32.gmra.mrb[0].mxu0 %v1069
        %v1228 = vpop.f32.mrb[0].mxu0
        %v1229 = vadd.f32 0.0, %v1228
        %v1230 = vpop.f32.mrb[0].mxu0
        %1231 = vmatprep.mubr.f32.mxu0 0.0
        %1232 = vmatmul.mubr.f32.gmra.mrb[0].mxu0 %v1071
        %v1233 = vpop.f32.mrb[0].mxu0
        %v1234 = vadd.f32 0.0, %v1233
        %v1235 = vpop.f32.mrb[0].mxu0
        %1236 = vmatprep.mubr.f32.mxu0 0.0
        %1237 = vmatmul.mubr.f32.gmra.mrb[0].mxu0 %v1073
        %v1238 = vpop.f32.mrb[0].mxu0
        %v1239 = vadd.f32 0.0, %v1238
        %v1240 = vpop.f32.mrb[0].mxu0
        %1241 = vmatprep.mubr.f32.mxu0 0.0
        %1242 = vmatmul.mubr.f32.gmra.mrb[0].mxu0 %v1075
        %v1243 = vpop.f32.mrb[0].mxu0
        %v1244 = vadd.f32 0.0, %v1243
        %v1245 = vpop.f32.mrb[0].mxu0
        %1246 = vmatprep.mubr.f32.mxu0 0.0
        %1247 = vmatmul.mubr.f32.gmra.mrb[0].mxu0 %v1077
        %v1248 = vpop.f32.mrb[0].mxu0
        %v1249 = vadd.f32 0.0, %v1248
        %v1250 = vpop.f32.mrb[0].mxu0
        %1251 = vmatprep.mubr.f32.mxu0 0.0
        %1252 = vmatmul.mubr.f32.gmra.mrb[0].mxu0 %v1079
        %v1253 = vpop.f32.mrb[0].mxu0
        %v1254 = vadd.f32 0.0, %v1253
        %v1255 = vpop.f32.mrb[0].mxu0
        %1256 = vmatprep.mubr.f32.mxu0 0.0
        %1257 = vmatmul.mubr.f32.gmra.mrb[0].mxu0 %v1081
        %v1258 = vpop.f32.mrb[0].mxu0
        %v1259 = vadd.f32 0.0, %v1258
        %v1260 = vpop.f32.mrb[0].mxu0
        %1261 = vmatprep.mubr.f32.mxu0 0.0
        %1262 = vmatmul.mubr.f32.gmra.mrb[0].mxu0 %v1083
        %v1263 = vpop.f32.mrb[0].mxu0
        %v1264 = vadd.f32 0.0, %v1263
        %v1265 = vpop.f32.mrb[0].mxu0
        %1266 = vmatprep.mubr.f32.mxu0 0.0
        %1267 = vmatmul.mubr.f32.gmra.mrb[0].mxu0 %v1085
        %v1268 = vpop.f32.mrb[0].mxu0
        %v1269 = vadd.f32 0.0, %v1268
        %v1270 = vpop.f32.mrb[0].mxu0
        %1271 = vmatprep.mubr.f32.mxu0 0.0
        %1272 = vmatmul.mubr.f32.gmra.mrb[0].mxu0 %v1087
        %v1273 = vpop.f32.mrb[0].mxu0
        %v1274 = vadd.f32 0.0, %v1273
        %v1275 = vpop.f32.mrb[0].mxu0
        %1276 = vmatprep.mubr.f32.mxu0 0.0
        %1277 = vmatmul.mubr.f32.gmra.mrb[0].mxu0 %v1089
        %v1278 = vpop.f32.mrb[0].mxu0
        %v1279 = vadd.f32 0.0, %v1278
        %v1280 = vpop.f32.mrb[0].mxu0
        %1281 = vmatprep.mubr.f32.mxu0 0.0
        %1282 = vmatmul.mubr.f32.gmra.mrb[0].mxu0 %v1091
        %v1283 = vpop.f32.mrb[0].mxu0
        %v1284 = vadd.f32 0.0, %v1283
        %v1285 = vpop.f32.mrb[0].mxu0
        %1286 = vmatprep.mubr.f32.mxu0 0.0
        %1287 = vmatmul.mubr.f32.gmra.mrb[0].mxu0 %v1093
        %v1288 = vpop.f32.mrb[0].mxu0
        %v1289 = vadd.f32 0.0, %v1288
        %v1290 = vpop.f32.mrb[0].mxu0
        %1291 = vmatprep.mubr.f32.mxu0 0.0
        %1292 = vmatmul.mubr.f32.gmra.mrb[0].mxu0 %v1095
        %v1293 = vpop.f32.mrb[0].mxu0
        %v1294 = vadd.f32 0.0, %v1293
        %v1295 = vpop.f32.mrb[0].mxu0
        %1296 = vmatprep.mubr.f32.mxu0 0.0
        %1297 = vmatmul.mubr.f32.gmra.mrb[0].mxu0 %v1097
        %v1298 = vpop.f32.mrb[0].mxu0
        %v1299 = vadd.f32 0.0, %v1298
        %v1300 = vpop.f32.mrb[0].mxu0
        %1301 = vmatprep.mubr.f32.mxu0 0.0
        %1302 = vmatmul.mubr.f32.gmra.mrb[0].mxu0 %v1099
        %v1303 = vpop.f32.mrb[0].mxu0
        %v1304 = vadd.f32 0.0, %v1303
        %v1305 = vpop.f32.mrb[0].mxu0
        %1306 = vmatprep.mubr.f32.mxu0 0.0
        %1307 = vmatmul.mubr.f32.gmra.mrb[0].mxu0 %v1101
        %v1308 = vpop.f32.mrb[0].mxu0
        %v1309 = vadd.f32 0.0, %v1308
        %v1310 = vpop.f32.mrb[0].mxu0
        %1311 = vmatprep.mubr.f32.mxu0 0.0
        %1312 = vmatmul.mubr.f32.gmra.mrb[0].mxu0 %v1103
        %v1313 = vpop.f32.mrb[0].mxu0
        %v1314 = vadd.f32 0.0, %v1313
        %v1315 = vpop.f32.mrb[0].mxu0
        %1316 = vmatprep.mubr.f32.mxu0 0.0
        %1317 = vmatmul.mubr.f32.gmra.mrb[0].mxu0 %v1105
        %v1318 = vpop.f32.mrb[0].mxu0
        %v1319 = vadd.f32 0.0, %v1318
        %v1320 = vpop.f32.mrb[0].mxu0
        %1321 = vmatprep.mubr.f32.mxu0 0.0
        %1322 = vmatmul.mubr.f32.gmra.mrb[0].mxu0 %v1107
        %v1323 = vpop.f32.mrb[0].mxu0
        %v1324 = vadd.f32 0.0, %v1323
        %v1325 = vpop.f32.mrb[0].mxu0
        %1326 = vmatprep.mubr.f32.mxu0 0.0
        %1327 = vmatmul.mubr.f32.gmra.mrb[0].mxu0 %v1109
        %v1328 = vpop.f32.mrb[0].mxu0
        %v1329 = vadd.f32 0.0, %v1328
        %v1330 = vpop.f32.mrb[0].mxu0
        %1331 = vmatprep.mubr.f32.mxu0 0.0
        %1332 = vmatmul.mubr.f32.gmra.mrb[0].mxu0 %v1111
        %v1333 = vpop.f32.mrb[0].mxu0
        %v1334 = vadd.f32 0.0, %v1333
        %v1335 = vpop.f32.mrb[0].mxu0
        %1336 = vmatprep.mubr.f32.mxu0 0.0
        %1337 = vmatmul.mubr.f32.gmra.mrb[0].mxu0 %v1113
        %v1338 = vpop.f32.mrb[0].mxu0
        %v1339 = vadd.f32 0.0, %v1338
        %v1340 = vpop.f32.mrb[0].mxu0
        %1341 = vmatprep.mubr.f32.mxu0 0.0
        %1342 = vmatmul.mubr.f32.gmra.mrb[0].mxu0 %v1115
        %v1343 = vpop.f32.mrb[0].mxu0
        %v1344 = vadd.f32 0.0, %v1343
        %v1345 = vpop.f32.mrb[0].mxu0
        %1346 = vmatprep.mubr.f32.mxu0 0.0
        %1347 = vmatmul.mubr.f32.gmra.mrb[0].mxu0 %v1117
        %v1348 = vpop.f32.mrb[0].mxu0
        %v1349 = vadd.f32 0.0, %v1348
        %v1350 = vpop.f32.mrb[0].mxu0
        %1351 = vmatprep.mubr.f32.mxu0 0.0
        %1352 = vmatmul.mubr.f32.gmra.mrb[0].mxu0 %v1119
        %v1353 = vpop.f32.mrb[0].mxu0
        %v1354 = vadd.f32 0.0, %v1353
        %v1355 = vpop.f32.mrb[0].mxu0
        %1356 = vmatprep.mubr.f32.mxu0 0.0
        %1357 = vmatmul.mubr.f32.gmra.mrb[0].mxu0 %v1121
        %v1358 = vpop.f32.mrb[0].mxu0
        %v1359 = vadd.f32 0.0, %v1358
        %v1360 = vpop.f32.mrb[0].mxu0
        %1361 = vmatprep.mubr.f32.mxu0 0.0
        %1362 = vmatmul.mubr.f32.gmra.mrb[0].mxu0 %v1123
        %v1363 = vpop.f32.mrb[0].mxu0
        %v1364 = vadd.f32 0.0, %v1363
        %v1365 = vpop.f32.mrb[0].mxu0
        %1366 = vmatprep.mubr.f32.mxu0 0.0
        %1367 = vmatmul.mubr.f32.gmra.mrb[0].mxu0 %v1125
        %v1368 = vpop.f32.mrb[0].mxu0
        %v1369 = vadd.f32 0.0, %v1368
        %v1370 = vpop.f32.mrb[0].mxu0
        %1371 = vmatprep.mubr.f32.mxu0 0.0
        %1372 = vmatmul.mubr.f32.gmra.mrb[0].mxu0 %v1127
        %v1373 = vpop.f32.mrb[0].mxu0
        %v1374 = vadd.f32 0.0, %v1373
        %v1375 = vpop.f32.mrb[0].mxu0
        %1376 = vdwg.mxu0
        %v1377 = vadd.f32 %v805, %v1199
        %v1378 = vadd.f32 %v810, %v1204
        %v1379 = vadd.f32 %v815, %v1209
        %v1380 = vadd.f32 %v820, %v1214
        %v1381 = vadd.f32 %v825, %v1219
        %v1382 = vadd.f32 %v830, %v1224
        %v1383 = vadd.f32 %v835, %v1229
        %v1384 = vadd.f32 %v840, %v1234
        %v1385 = vadd.f32 %v845, %v1239
        %v1386 = vadd.f32 %v850, %v1244
        %v1387 = vadd.f32 %v855, %v1249
        %v1388 = vadd.f32 %v860, %v1254
        %v1389 = vadd.f32 %v865, %v1259
        %v1390 = vadd.f32 %v870, %v1264
        %v1391 = vadd.f32 %v875, %v1269
        %v1392 = vadd.f32 %v880, %v1274
        %v1393 = vadd.f32 %v885, %v1279
        %v1394 = vadd.f32 %v890, %v1284
        %v1395 = vadd.f32 %v895, %v1289
        %v1396 = vadd.f32 %v900, %v1294
        %v1397 = vadd.f32 %v905, %v1299
        %v1398 = vadd.f32 %v910, %v1304
        %v1399 = vadd.f32 %v915, %v1309
        %v1400 = vadd.f32 %v920, %v1314
        %v1401 = vadd.f32 %v925, %v1319
        %v1402 = vadd.f32 %v930, %v1324
        %v1403 = vadd.f32 %v935, %v1329
        %v1404 = vadd.f32 %v940, %v1334
        %v1405 = vadd.f32 %v945, %v1339
        %v1406 = vadd.f32 %v950, %v1344
        %v1407 = vadd.f32 %v955, %v1349
        %v1408 = vadd.f32 %v960, %v1354
        %v1409 = vadd.f32 %v965, %v1359
        %v1410 = vadd.f32 %v970, %v1364
        %v1411 = vadd.f32 %v975, %v1369
        %v1412 = vadd.f32 %v980, %v1374
        %v1415 = vrot.slane %v221, 2
        %v1416 = vsel %vm983, %v1055, %v1415
        %v1417 = vrot.slane %v222, 2
        %v1418 = vsel %vm983, %v1415, %v1417
        %v1419 = vrot.slane %v226, 4
        %v1420 = vsel %vm343, %v1416, 0
        %v1422 = vsel %vm343, %v1418, 0
        %v1424 = vsel %vm416, %v1419, 0
        %1426 = vmatprep.subr.mxu0 0.0
        %1427 = vmatpush1.msra.mxu0 %v1424
        %1428 = vmatprep.subr.mxu0 0.0
        %1429 = vmatpush1.msra.mxu0 0.0
        %1430 = vmatprep.subr.mxu0 0.0
        %1431 = vmatpush1.msra.mxu0 0.0
        %1432 = vmatprep.subr.mxu0 0.0
        %1433 = vmatpush1.msra.mxu0 0.0
        %1434 = vmatprep.subr.mxu0 0.0
        %1435 = vmatpush1.msra.mxu0 0.0
        %1436 = vmatprep.subr.mxu0 0.0
        %1437 = vmatpush1.msra.mxu0 0.0
        %1438 = vmatprep.subr.mxu0 0.0
        %1439 = vmatpush1.msra.mxu0 0.0
        %1440 = vmatprep.subr.mxu0 0.0
        %1441 = vmatpush1.msra.mxu0 0.0
        %1442 = vmatprep.subr.mxu0 0.0
        %1443 = vmatpush1.msra.mxu0 0.0
        %1444 = vmatprep.subr.mxu0 0.0
        %1445 = vmatpush1.msra.mxu0 0.0
        %1446 = vmatprep.subr.mxu0 0.0
        %1447 = vmatpush1.msra.mxu0 0.0
        %1448 = vmatprep.subr.mxu0 0.0
        %1449 = vmatpush1.msra.mxu0 0.0
        %1450 = vmatprep.subr.mxu0 0.0
        %1451 = vmatpush1.msra.mxu0 0.0
        %1452 = vmatprep.subr.mxu0 0.0
        %1453 = vmatpush1.msra.mxu0 0.0
        %1454 = vmatprep.subr.mxu0 0.0
        %1455 = vmatpush1.msra.mxu0 0.0
        %1456 = vmatprep.subr.mxu0 0.0
        %1457 = vmatpush1.msra.mxu0 0.0
        %1458 = vmatprep.subr.mxu0 0.0
        %1459 = vmatpush1.msra.mxu0 0.0
        %1460 = vmatprep.subr.mxu0 0.0
        %1461 = vmatpush1.msra.mxu0 0.0
        %1462 = vmatprep.subr.mxu0 0.0
        %1463 = vmatpush1.msra.mxu0 0.0
        %1464 = vmatprep.subr.mxu0 0.0
        %1465 = vmatpush1.msra.mxu0 0.0
        %1466 = vmatprep.subr.mxu0 0.0
        %1467 = vmatpush1.msra.mxu0 0.0
        %1468 = vmatprep.subr.mxu0 0.0
        %1469 = vmatpush1.msra.mxu0 0.0
        %1470 = vmatprep.subr.mxu0 0.0
        %1471 = vmatpush1.msra.mxu0 0.0
        %1472 = vmatprep.subr.mxu0 0.0
        %1473 = vmatpush1.msra.mxu0 0.0
        %1474 = vmatprep.subr.mxu0 0.0
        %1475 = vmatpush1.msra.mxu0 0.0
        %1476 = vmatprep.subr.mxu0 0.0
        %1477 = vmatpush1.msra.mxu0 0.0
        %1478 = vmatprep.subr.mxu0 0.0
        %1479 = vmatpush1.msra.mxu0 0.0
        %1480 = vmatprep.subr.mxu0 0.0
        %1481 = vmatpush1.msra.mxu0 0.0
        %1482 = vmatprep.subr.mxu0 0.0
        %1483 = vmatpush1.msra.mxu0 0.0
        %1484 = vmatprep.subr.mxu0 0.0
        %1485 = vmatpush1.msra.mxu0 0.0
        %1486 = vmatprep.subr.mxu0 0.0
        %1487 = vmatpush1.msra.mxu0 0.0
        %1488 = vmatprep.subr.mxu0 0.0
        %1489 = vmatpush1.msra.mxu0 0.0
        %1490 = vmatprep.mubr.f32.mxu0 0.0
        %1491 = vmatmul.mubr.f32.gmra.mrb[0].mxu0 %v1061
        %v1492 = vpop.f32.mrb[0].mxu0
        %v1493 = vadd.f32 0.0, %v1492
        %v1494 = vpop.f32.mrb[0].mxu0
        %1495 = vmatprep.mubr.f32.mxu0 0.0
        %1496 = vmatmul.mubr.f32.gmra.mrb[0].mxu0 %v1063
        %v1497 = vpop.f32.mrb[0].mxu0
        %v1498 = vadd.f32 0.0, %v1497
        %v1499 = vpop.f32.mrb[0].mxu0
        %1500 = vmatprep.mubr.f32.mxu0 0.0
        %1501 = vmatmul.mubr.f32.gmra.mrb[0].mxu0 %v1065
        %v1502 = vpop.f32.mrb[0].mxu0
        %v1503 = vadd.f32 0.0, %v1502
        %v1504 = vpop.f32.mrb[0].mxu0
        %1505 = vmatprep.mubr.f32.mxu0 0.0
        %1506 = vmatmul.mubr.f32.gmra.mrb[0].mxu0 %v1067
        %v1507 = vpop.f32.mrb[0].mxu0
        %v1508 = vadd.f32 0.0, %v1507
        %v1509 = vpop.f32.mrb[0].mxu0
        %1510 = vmatprep.mubr.f32.mxu0 0.0
        %1511 = vmatmul.mubr.f32.gmra.mrb[0].mxu0 %v1069
        %v1512 = vpop.f32.mrb[0].mxu0
        %v1513 = vadd.f32 0.0, %v1512
        %v1514 = vpop.f32.mrb[0].mxu0
        %1515 = vmatprep.mubr.f32.mxu0 0.0
        %1516 = vmatmul.mubr.f32.gmra.mrb[0].mxu0 %v1071
        %v1517 = vpop.f32.mrb[0].mxu0
        %v1518 = vadd.f32 0.0, %v1517
        %v1519 = vpop.f32.mrb[0].mxu0
        %1520 = vmatprep.mubr.f32.mxu0 0.0
        %1521 = vmatmul.mubr.f32.gmra.mrb[0].mxu0 %v1073
        %v1522 = vpop.f32.mrb[0].mxu0
        %v1523 = vadd.f32 0.0, %v1522
        %v1524 = vpop.f32.mrb[0].mxu0
        %1525 = vmatprep.mubr.f32.mxu0 0.0
        %1526 = vmatmul.mubr.f32.gmra.mrb[0].mxu0 %v1075
        %v1527 = vpop.f32.mrb[0].mxu0
        %v1528 = vadd.f32 0.0, %v1527
        %v1529 = vpop.f32.mrb[0].mxu0
        %1530 = vmatprep.mubr.f32.mxu0 0.0
        %1531 = vmatmul.mubr.f32.gmra.mrb[0].mxu0 %v1077
        %v1532 = vpop.f32.mrb[0].mxu0
        %v1533 = vadd.f32 0.0, %v1532
        %v1534 = vpop.f32.mrb[0].mxu0
        %1535 = vmatprep.mubr.f32.mxu0 0.0
        %1536 = vmatmul.mubr.f32.gmra.mrb[0].mxu0 %v1079
        %v1537 = vpop.f32.mrb[0].mxu0
        %v1538 = vadd.f32 0.0, %v1537
        %v1539 = vpop.f32.mrb[0].mxu0
        %1540 = vmatprep.mubr.f32.mxu0 0.0
        %1541 = vmatmul.mubr.f32.gmra.mrb[0].mxu0 %v1081
        %v1542 = vpop.f32.mrb[0].mxu0
        %v1543 = vadd.f32 0.0, %v1542
        %v1544 = vpop.f32.mrb[0].mxu0
        %1545 = vmatprep.mubr.f32.mxu0 0.0
        %1546 = vmatmul.mubr.f32.gmra.mrb[0].mxu0 %v1083
        %v1547 = vpop.f32.mrb[0].mxu0
        %v1548 = vadd.f32 0.0, %v1547
        %v1549 = vpop.f32.mrb[0].mxu0
        %1550 = vmatprep.mubr.f32.mxu0 0.0
        %1551 = vmatmul.mubr.f32.gmra.mrb[0].mxu0 %v1085
        %v1552 = vpop.f32.mrb[0].mxu0
        %v1553 = vadd.f32 0.0, %v1552
        %v1554 = vpop.f32.mrb[0].mxu0
        %1555 = vmatprep.mubr.f32.mxu0 0.0
        %1556 = vmatmul.mubr.f32.gmra.mrb[0].mxu0 %v1087
        %v1557 = vpop.f32.mrb[0].mxu0
        %v1558 = vadd.f32 0.0, %v1557
        %v1559 = vpop.f32.mrb[0].mxu0
        %1560 = vmatprep.mubr.f32.mxu0 0.0
        %1561 = vmatmul.mubr.f32.gmra.mrb[0].mxu0 %v1089
        %v1562 = vpop.f32.mrb[0].mxu0
        %v1563 = vadd.f32 0.0, %v1562
        %v1564 = vpop.f32.mrb[0].mxu0
        %1565 = vmatprep.mubr.f32.mxu0 0.0
        %1566 = vmatmul.mubr.f32.gmra.mrb[0].mxu0 %v1091
        %v1567 = vpop.f32.mrb[0].mxu0
        %v1568 = vadd.f32 0.0, %v1567
        %v1569 = vpop.f32.mrb[0].mxu0
        %1570 = vmatprep.mubr.f32.mxu0 0.0
        %1571 = vmatmul.mubr.f32.gmra.mrb[0].mxu0 %v1093
        %v1572 = vpop.f32.mrb[0].mxu0
        %v1573 = vadd.f32 0.0, %v1572
        %v1574 = vpop.f32.mrb[0].mxu0
        %1575 = vmatprep.mubr.f32.mxu0 0.0
        %1576 = vmatmul.mubr.f32.gmra.mrb[0].mxu0 %v1095
        %v1577 = vpop.f32.mrb[0].mxu0
        %v1578 = vadd.f32 0.0, %v1577
        %v1579 = vpop.f32.mrb[0].mxu0
        %1580 = vmatprep.mubr.f32.mxu0 0.0
        %1581 = vmatmul.mubr.f32.gmra.mrb[0].mxu0 %v1097
        %v1582 = vpop.f32.mrb[0].mxu0
        %v1583 = vadd.f32 0.0, %v1582
        %v1584 = vpop.f32.mrb[0].mxu0
        %1585 = vmatprep.mubr.f32.mxu0 0.0
        %1586 = vmatmul.mubr.f32.gmra.mrb[0].mxu0 %v1099
        %v1587 = vpop.f32.mrb[0].mxu0
        %v1588 = vadd.f32 0.0, %v1587
        %v1589 = vpop.f32.mrb[0].mxu0
        %1590 = vmatprep.mubr.f32.mxu0 0.0
        %1591 = vmatmul.mubr.f32.gmra.mrb[0].mxu0 %v1101
        %v1592 = vpop.f32.mrb[0].mxu0
        %v1593 = vadd.f32 0.0, %v1592
        %v1594 = vpop.f32.mrb[0].mxu0
        %1595 = vmatprep.mubr.f32.mxu0 0.0
        %1596 = vmatmul.mubr.f32.gmra.mrb[0].mxu0 %v1103
        %v1597 = vpop.f32.mrb[0].mxu0
        %v1598 = vadd.f32 0.0, %v1597
        %v1599 = vpop.f32.mrb[0].mxu0
        %1600 = vmatprep.mubr.f32.mxu0 0.0
        %1601 = vmatmul.mubr.f32.gmra.mrb[0].mxu0 %v1105
        %v1602 = vpop.f32.mrb[0].mxu0
        %v1603 = vadd.f32 0.0, %v1602
        %v1604 = vpop.f32.mrb[0].mxu0
        %1605 = vmatprep.mubr.f32.mxu0 0.0
        %1606 = vmatmul.mubr.f32.gmra.mrb[0].mxu0 %v1107
        %v1607 = vpop.f32.mrb[0].mxu0
        %v1608 = vadd.f32 0.0, %v1607
        %v1609 = vpop.f32.mrb[0].mxu0
        %1610 = vmatprep.mubr.f32.mxu0 0.0
        %1611 = vmatmul.mubr.f32.gmra.mrb[0].mxu0 %v1109
        %v1612 = vpop.f32.mrb[0].mxu0
        %v1613 = vadd.f32 0.0, %v1612
        %v1614 = vpop.f32.mrb[0].mxu0
        %1615 = vmatprep.mubr.f32.mxu0 0.0
        %1616 = vmatmul.mubr.f32.gmra.mrb[0].mxu0 %v1111
        %v1617 = vpop.f32.mrb[0].mxu0
        %v1618 = vadd.f32 0.0, %v1617
        %v1619 = vpop.f32.mrb[0].mxu0
        %1620 = vmatprep.mubr.f32.mxu0 0.0
        %1621 = vmatmul.mubr.f32.gmra.mrb[0].mxu0 %v1113
        %v1622 = vpop.f32.mrb[0].mxu0
        %v1623 = vadd.f32 0.0, %v1622
        %v1624 = vpop.f32.mrb[0].mxu0
        %1625 = vmatprep.mubr.f32.mxu0 0.0
        %1626 = vmatmul.mubr.f32.gmra.mrb[0].mxu0 %v1115
        %v1627 = vpop.f32.mrb[0].mxu0
        %v1628 = vadd.f32 0.0, %v1627
        %v1629 = vpop.f32.mrb[0].mxu0
        %1630 = vmatprep.mubr.f32.mxu0 0.0
        %1631 = vmatmul.mubr.f32.gmra.mrb[0].mxu0 %v1117
        %v1632 = vpop.f32.mrb[0].mxu0
        %v1633 = vadd.f32 0.0, %v1632
        %v1634 = vpop.f32.mrb[0].mxu0
        %1635 = vmatprep.mubr.f32.mxu0 0.0
        %1636 = vmatmul.mubr.f32.gmra.mrb[0].mxu0 %v1119
        %v1637 = vpop.f32.mrb[0].mxu0
        %v1638 = vadd.f32 0.0, %v1637
        %v1639 = vpop.f32.mrb[0].mxu0
        %1640 = vmatprep.mubr.f32.mxu0 0.0
        %1641 = vmatmul.mubr.f32.gmra.mrb[0].mxu0 %v1121
        %v1642 = vpop.f32.mrb[0].mxu0
        %v1643 = vadd.f32 0.0, %v1642
        %v1644 = vpop.f32.mrb[0].mxu0
        %1645 = vmatprep.mubr.f32.mxu0 0.0
        %1646 = vmatmul.mubr.f32.gmra.mrb[0].mxu0 %v1123
        %v1647 = vpop.f32.mrb[0].mxu0
        %v1648 = vadd.f32 0.0, %v1647
        %v1649 = vpop.f32.mrb[0].mxu0
        %1650 = vmatprep.mubr.f32.mxu0 0.0
        %1651 = vmatmul.mubr.f32.gmra.mrb[0].mxu0 %v1125
        %v1652 = vpop.f32.mrb[0].mxu0
        %v1653 = vadd.f32 0.0, %v1652
        %v1654 = vpop.f32.mrb[0].mxu0
        %1655 = vmatprep.mubr.f32.mxu0 0.0
        %1656 = vmatmul.mubr.f32.gmra.mrb[0].mxu0 %v1127
        %v1657 = vpop.f32.mrb[0].mxu0
        %v1658 = vadd.f32 0.0, %v1657
        %v1659 = vpop.f32.mrb[0].mxu0
        %1660 = vmatprep.mubr.f32.mxu0 0.0
        %1661 = vmatmul.mubr.f32.gmra.mrb[0].mxu0 %v1420
        %v1662 = vpop.f32.mrb[0].mxu0
        %v1663 = vadd.f32 0.0, %v1662
        %v1664 = vpop.f32.mrb[0].mxu0
        %1665 = vmatprep.mubr.f32.mxu0 0.0
        %1666 = vmatmul.mubr.f32.gmra.mrb[0].mxu0 %v1422
        %v1667 = vpop.f32.mrb[0].mxu0
        %v1668 = vadd.f32 0.0, %v1667
        %v1669 = vpop.f32.mrb[0].mxu0
        %1670 = vdwg.mxu0
        %v1671 = vadd.f32 %v1377, %v1493
        %v1672 = vadd.f32 %v1378, %v1498
        %v1673 = vadd.f32 %v1379, %v1503
        %v1674 = vadd.f32 %v1380, %v1508
        %v1675 = vadd.f32 %v1381, %v1513
        %v1676 = vadd.f32 %v1382, %v1518
        %v1677 = vadd.f32 %v1383, %v1523
        %v1678 = vadd.f32 %v1384, %v1528
        %v1679 = vadd.f32 %v1385, %v1533
        %v1680 = vadd.f32 %v1386, %v1538
        %v1681 = vadd.f32 %v1387, %v1543
        %v1682 = vadd.f32 %v1388, %v1548
        %v1683 = vadd.f32 %v1389, %v1553
        %v1684 = vadd.f32 %v1390, %v1558
        %v1685 = vadd.f32 %v1391, %v1563
        %v1686 = vadd.f32 %v1392, %v1568
        %v1687 = vadd.f32 %v1393, %v1573
        %v1688 = vadd.f32 %v1394, %v1578
        %v1689 = vadd.f32 %v1395, %v1583
        %v1690 = vadd.f32 %v1396, %v1588
        %v1691 = vadd.f32 %v1397, %v1593
        %v1692 = vadd.f32 %v1398, %v1598
        %v1693 = vadd.f32 %v1399, %v1603
        %v1694 = vadd.f32 %v1400, %v1608
        %v1695 = vadd.f32 %v1401, %v1613
        %v1696 = vadd.f32 %v1402, %v1618
        %v1697 = vadd.f32 %v1403, %v1623
        %v1698 = vadd.f32 %v1404, %v1628
        %v1699 = vadd.f32 %v1405, %v1633
        %v1700 = vadd.f32 %v1406, %v1638
        %v1701 = vadd.f32 %v1407, %v1643
        %v1702 = vadd.f32 %v1408, %v1648
        %v1703 = vadd.f32 %v1409, %v1653
        %v1704 = vadd.f32 %v1410, %v1658
        %v1705 = vadd.f32 %v1411, %v1663
        %v1706 = vadd.f32 %v1412, %v1668
        %vm1707 = vcmask 1044480
        %v1708 = vrot.slane %v186, 3
        %v1709 = vrot.slane %v187, 3
        %v1710 = vsel %vm1707, %v1708, %v1709
        %v1711 = vrot.slane %v188, 3
        %v1712 = vsel %vm1707, %v1709, %v1711
        %v1713 = vrot.slane %v189, 3
        %v1714 = vsel %vm1707, %v1711, %v1713
        %v1715 = vrot.slane %v190, 3
        %v1716 = vsel %vm1707, %v1713, %v1715
        %v1717 = vrot.slane %v191, 3
        %v1718 = vsel %vm1707, %v1715, %v1717
        %v1719 = vrot.slane %v192, 3
        %v1720 = vsel %vm1707, %v1717, %v1719
        %v1721 = vrot.slane %v193, 3
        %v1722 = vsel %vm1707, %v1719, %v1721
        %v1723 = vrot.slane %v194, 3
        %v1724 = vsel %vm1707, %v1721, %v1723
        %v1725 = vrot.slane %v195, 3
        %v1726 = vsel %vm1707, %v1723, %v1725
        %v1727 = vrot.slane %v196, 3
        %v1728 = vsel %vm1707, %v1725, %v1727
        %v1729 = vrot.slane %v197, 3
        %v1730 = vsel %vm1707, %v1727, %v1729
        %v1731 = vrot.slane %v198, 3
        %v1732 = vsel %vm1707, %v1729, %v1731
        %v1733 = vrot.slane %v199, 3
        %v1734 = vsel %vm1707, %v1731, %v1733
        %v1735 = vrot.slane %v200, 3
        %v1736 = vsel %vm1707, %v1733, %v1735
        %v1737 = vrot.slane %v201, 3
        %v1738 = vsel %vm1707, %v1735, %v1737
        %v1739 = vrot.slane %v202, 3
        %v1740 = vsel %vm1707, %v1737, %v1739
        %v1741 = vrot.slane %v203, 3
        %v1742 = vsel %vm1707, %v1739, %v1741
        %v1743 = vrot.slane %v204, 3
        %v1744 = vsel %vm1707, %v1741, %v1743
        %v1745 = vrot.slane %v205, 3
        %v1746 = vsel %vm1707, %v1743, %v1745
        %v1747 = vrot.slane %v206, 3
        %v1748 = vsel %vm1707, %v1745, %v1747
        %v1749 = vrot.slane %v207, 3
        %v1750 = vsel %vm1707, %v1747, %v1749
        %v1751 = vrot.slane %v208, 3
        %v1752 = vsel %vm1707, %v1749, %v1751
        %v1753 = vrot.slane %v209, 3
        %v1754 = vsel %vm1707, %v1751, %v1753
        %v1755 = vrot.slane %v210, 3
        %v1756 = vsel %vm1707, %v1753, %v1755
        %v1757 = vrot.slane %v211, 3
        %v1758 = vsel %vm1707, %v1755, %v1757
        %v1759 = vrot.slane %v212, 3
        %v1760 = vsel %vm1707, %v1757, %v1759
        %v1761 = vrot.slane %v213, 3
        %v1762 = vsel %vm1707, %v1759, %v1761
        %v1763 = vrot.slane %v214, 3
        %v1764 = vsel %vm1707, %v1761, %v1763
        %v1765 = vrot.slane %v215, 3
        %v1766 = vsel %vm1707, %v1763, %v1765
        %v1767 = vrot.slane %v216, 3
        %v1768 = vsel %vm1707, %v1765, %v1767
        %v1769 = vrot.slane %v217, 3
        %v1770 = vsel %vm1707, %v1767, %v1769
        %v1771 = vrot.slane %v218, 3
        %v1772 = vsel %vm1707, %v1769, %v1771
        %v1773 = vrot.slane %v219, 3
        %v1774 = vsel %vm1707, %v1771, %v1773
        %v1775 = vrot.slane %v220, 3
        %v1776 = vsel %vm1707, %v1773, %v1775
        %v1777 = vrot.slane %v221, 3
        %v1778 = vsel %vm1707, %v1775, %v1777
        %v1779 = vrot.slane %v222, 3
        %v1780 = vsel %vm1707, %v1777, %v1779
        %v1781 = vsel %vm343, %v1710, 0
        %v1783 = vsel %vm343, %v1712, 0
        %v1785 = vsel %vm343, %v1714, 0
        %v1787 = vsel %vm343, %v1716, 0
        %v1789 = vsel %vm343, %v1718, 0
        %v1791 = vsel %vm343, %v1720, 0
        %v1793 = vsel %vm343, %v1722, 0
        %v1795 = vsel %vm343, %v1724, 0
        %v1797 = vsel %vm343, %v1726, 0
        %v1799 = vsel %vm343, %v1728, 0
        %v1801 = vsel %vm343, %v1730, 0
        %v1803 = vsel %vm343, %v1732, 0
        %v1805 = vsel %vm343, %v1734, 0
        %v1807 = vsel %vm343, %v1736, 0
        %v1809 = vsel %vm343, %v1738, 0
        %v1811 = vsel %vm343, %v1740, 0
        %v1813 = vsel %vm343, %v1742, 0
        %v1815 = vsel %vm343, %v1744, 0
        %v1817 = vsel %vm343, %v1746, 0
        %v1819 = vsel %vm343, %v1748, 0
        %v1821 = vsel %vm343, %v1750, 0
        %v1823 = vsel %vm343, %v1752, 0
        %v1825 = vsel %vm343, %v1754, 0
        %v1827 = vsel %vm343, %v1756, 0
        %v1829 = vsel %vm343, %v1758, 0
        %v1831 = vsel %vm343, %v1760, 0
        %v1833 = vsel %vm343, %v1762, 0
        %v1835 = vsel %vm343, %v1764, 0
        %v1837 = vsel %vm343, %v1766, 0
        %v1839 = vsel %vm343, %v1768, 0
        %v1841 = vsel %vm343, %v1770, 0
        %v1843 = vsel %vm343, %v1772, 0
        %v1845 = vsel %vm343, %v1774, 0
        %v1847 = vsel %vm343, %v1776, 0
        %v1849 = vsel %vm343, %v1778, 0
        %v1851 = vsel %vm343, %v1780, 0
        %v1854 = vsel %vm416, %v227, 0
        %1856 = vmatprep.subr.mxu0 0.0
        %1857 = vmatpush1.msra.mxu0 %v1854
        %1858 = vmatprep.subr.mxu0 0.0
        %1859 = vmatpush1.msra.mxu0 0.0
        %1860 = vmatprep.subr.mxu0 0.0
        %1861 = vmatpush1.msra.mxu0 0.0
        %1862 = vmatprep.subr.mxu0 0.0
        %1863 = vmatpush1.msra.mxu0 0.0
        %1864 = vmatprep.subr.mxu0 0.0
        %1865 = vmatpush1.msra.mxu0 0.0
        %1866 = vmatprep.subr.mxu0 0.0
        %1867 = vmatpush1.msra.mxu0 0.0
        %1868 = vmatprep.subr.mxu0 0.0
        %1869 = vmatpush1.msra.mxu0 0.0
        %1870 = vmatprep.subr.mxu0 0.0
        %1871 = vmatpush1.msra.mxu0 0.0
        %1872 = vmatprep.subr.mxu0 0.0
        %1873 = vmatpush1.msra.mxu0 0.0
        %1874 = vmatprep.subr.mxu0 0.0
        %1875 = vmatpush1.msra.mxu0 0.0
        %1876 = vmatprep.subr.mxu0 0.0
        %1877 = vmatpush1.msra.mxu0 0.0
        %1878 = vmatprep.subr.mxu0 0.0
        %1879 = vmatpush1.msra.mxu0 0.0
        %1880 = vmatprep.subr.mxu0 0.0
        %1881 = vmatpush1.msra.mxu0 0.0
        %1882 = vmatprep.subr.mxu0 0.0
        %1883 = vmatpush1.msra.mxu0 0.0
        %1884 = vmatprep.subr.mxu0 0.0
        %1885 = vmatpush1.msra.mxu0 0.0
        %1886 = vmatprep.subr.mxu0 0.0
        %1887 = vmatpush1.msra.mxu0 0.0
        %1888 = vmatprep.subr.mxu0 0.0
        %1889 = vmatpush1.msra.mxu0 0.0
        %1890 = vmatprep.subr.mxu0 0.0
        %1891 = vmatpush1.msra.mxu0 0.0
        %1892 = vmatprep.subr.mxu0 0.0
        %1893 = vmatpush1.msra.mxu0 0.0
        %1894 = vmatprep.subr.mxu0 0.0
        %1895 = vmatpush1.msra.mxu0 0.0
        %1896 = vmatprep.subr.mxu0 0.0
        %1897 = vmatpush1.msra.mxu0 0.0
        %1898 = vmatprep.subr.mxu0 0.0
        %1899 = vmatpush1.msra.mxu0 0.0
        %1900 = vmatprep.subr.mxu0 0.0
        %1901 = vmatpush1.msra.mxu0 0.0
        %1902 = vmatprep.subr.mxu0 0.0
        %1903 = vmatpush1.msra.mxu0 0.0
        %1904 = vmatprep.subr.mxu0 0.0
        %1905 = vmatpush1.msra.mxu0 0.0
        %1906 = vmatprep.subr.mxu0 0.0
        %1907 = vmatpush1.msra.mxu0 0.0
        %1908 = vmatprep.subr.mxu0 0.0
        %1909 = vmatpush1.msra.mxu0 0.0
        %1910 = vmatprep.subr.mxu0 0.0
        %1911 = vmatpush1.msra.mxu0 0.0
        %1912 = vmatprep.subr.mxu0 0.0
        %1913 = vmatpush1.msra.mxu0 0.0
        %1914 = vmatprep.subr.mxu0 0.0
        %1915 = vmatpush1.msra.mxu0 0.0
        %1916 = vmatprep.subr.mxu0 0.0
        %1917 = vmatpush1.msra.mxu0 0.0
        %1918 = vmatprep.subr.mxu0 0.0
        %1919 = vmatpush1.msra.mxu0 0.0
        %1920 = vmatprep.mubr.f32.mxu0 0.0
        %1921 = vmatmul.mubr.f32.gmra.mrb[0].mxu0 %v1781
        %v1922 = vpop.f32.mrb[0].mxu0
        %v1923 = vadd.f32 0.0, %v1922
        %v1924 = vpop.f32.mrb[0].mxu0
        %1925 = vmatprep.mubr.f32.mxu0 0.0
        %1926 = vmatmul.mubr.f32.gmra.mrb[0].mxu0 %v1783
        %v1927 = vpop.f32.mrb[0].mxu0
        %v1928 = vadd.f32 0.0, %v1927
        %v1929 = vpop.f32.mrb[0].mxu0
        %1930 = vmatprep.mubr.f32.mxu0 0.0
        %1931 = vmatmul.mubr.f32.gmra.mrb[0].mxu0 %v1785
        %v1932 = vpop.f32.mrb[0].mxu0
        %v1933 = vadd.f32 0.0, %v1932
        %v1934 = vpop.f32.mrb[0].mxu0
        %1935 = vmatprep.mubr.f32.mxu0 0.0
        %1936 = vmatmul.mubr.f32.gmra.mrb[0].mxu0 %v1787
        %v1937 = vpop.f32.mrb[0].mxu0
        %v1938 = vadd.f32 0.0, %v1937
        %v1939 = vpop.f32.mrb[0].mxu0
        %1940 = vmatprep.mubr.f32.mxu0 0.0
        %1941 = vmatmul.mubr.f32.gmra.mrb[0].mxu0 %v1789
        %v1942 = vpop.f32.mrb[0].mxu0
        %v1943 = vadd.f32 0.0, %v1942
        %v1944 = vpop.f32.mrb[0].mxu0
        %1945 = vmatprep.mubr.f32.mxu0 0.0
        %1946 = vmatmul.mubr.f32.gmra.mrb[0].mxu0 %v1791
        %v1947 = vpop.f32.mrb[0].mxu0
        %v1948 = vadd.f32 0.0, %v1947
        %v1949 = vpop.f32.mrb[0].mxu0
        %1950 = vmatprep.mubr.f32.mxu0 0.0
        %1951 = vmatmul.mubr.f32.gmra.mrb[0].mxu0 %v1793
        %v1952 = vpop.f32.mrb[0].mxu0
        %v1953 = vadd.f32 0.0, %v1952
        %v1954 = vpop.f32.mrb[0].mxu0
        %1955 = vmatprep.mubr.f32.mxu0 0.0
        %1956 = vmatmul.mubr.f32.gmra.mrb[0].mxu0 %v1795
        %v1957 = vpop.f32.mrb[0].mxu0
        %v1958 = vadd.f32 0.0, %v1957
        %v1959 = vpop.f32.mrb[0].mxu0
        %1960 = vmatprep.mubr.f32.mxu0 0.0
        %1961 = vmatmul.mubr.f32.gmra.mrb[0].mxu0 %v1797
        %v1962 = vpop.f32.mrb[0].mxu0
        %v1963 = vadd.f32 0.0, %v1962
        %v1964 = vpop.f32.mrb[0].mxu0
        %1965 = vmatprep.mubr.f32.mxu0 0.0
        %1966 = vmatmul.mubr.f32.gmra.mrb[0].mxu0 %v1799
        %v1967 = vpop.f32.mrb[0].mxu0
        %v1968 = vadd.f32 0.0, %v1967
        %v1969 = vpop.f32.mrb[0].mxu0
        %1970 = vmatprep.mubr.f32.mxu0 0.0
        %1971 = vmatmul.mubr.f32.gmra.mrb[0].mxu0 %v1801
        %v1972 = vpop.f32.mrb[0].mxu0
        %v1973 = vadd.f32 0.0, %v1972
        %v1974 = vpop.f32.mrb[0].mxu0
        %1975 = vmatprep.mubr.f32.mxu0 0.0
        %1976 = vmatmul.mubr.f32.gmra.mrb[0].mxu0 %v1803
        %v1977 = vpop.f32.mrb[0].mxu0
        %v1978 = vadd.f32 0.0, %v1977
        %v1979 = vpop.f32.mrb[0].mxu0
        %1980 = vmatprep.mubr.f32.mxu0 0.0
        %1981 = vmatmul.mubr.f32.gmra.mrb[0].mxu0 %v1805
        %v1982 = vpop.f32.mrb[0].mxu0
        %v1983 = vadd.f32 0.0, %v1982
        %v1984 = vpop.f32.mrb[0].mxu0
        %1985 = vmatprep.mubr.f32.mxu0 0.0
        %1986 = vmatmul.mubr.f32.gmra.mrb[0].mxu0 %v1807
        %v1987 = vpop.f32.mrb[0].mxu0
        %v1988 = vadd.f32 0.0, %v1987
        %v1989 = vpop.f32.mrb[0].mxu0
        %1990 = vmatprep.mubr.f32.mxu0 0.0
        %1991 = vmatmul.mubr.f32.gmra.mrb[0].mxu0 %v1809
        %v1992 = vpop.f32.mrb[0].mxu0
        %v1993 = vadd.f32 0.0, %v1992
        %v1994 = vpop.f32.mrb[0].mxu0
        %1995 = vmatprep.mubr.f32.mxu0 0.0
        %1996 = vmatmul.mubr.f32.gmra.mrb[0].mxu0 %v1811
        %v1997 = vpop.f32.mrb[0].mxu0
        %v1998 = vadd.f32 0.0, %v1997
        %v1999 = vpop.f32.mrb[0].mxu0
        %2000 = vmatprep.mubr.f32.mxu0 0.0
        %2001 = vmatmul.mubr.f32.gmra.mrb[0].mxu0 %v1813
        %v2002 = vpop.f32.mrb[0].mxu0
        %v2003 = vadd.f32 0.0, %v2002
        %v2004 = vpop.f32.mrb[0].mxu0
        %2005 = vmatprep.mubr.f32.mxu0 0.0
        %2006 = vmatmul.mubr.f32.gmra.mrb[0].mxu0 %v1815
        %v2007 = vpop.f32.mrb[0].mxu0
        %v2008 = vadd.f32 0.0, %v2007
        %v2009 = vpop.f32.mrb[0].mxu0
        %2010 = vmatprep.mubr.f32.mxu0 0.0
        %2011 = vmatmul.mubr.f32.gmra.mrb[0].mxu0 %v1817
        %v2012 = vpop.f32.mrb[0].mxu0
        %v2013 = vadd.f32 0.0, %v2012
        %v2014 = vpop.f32.mrb[0].mxu0
        %2015 = vmatprep.mubr.f32.mxu0 0.0
        %2016 = vmatmul.mubr.f32.gmra.mrb[0].mxu0 %v1819
        %v2017 = vpop.f32.mrb[0].mxu0
        %v2018 = vadd.f32 0.0, %v2017
        %v2019 = vpop.f32.mrb[0].mxu0
        %2020 = vmatprep.mubr.f32.mxu0 0.0
        %2021 = vmatmul.mubr.f32.gmra.mrb[0].mxu0 %v1821
        %v2022 = vpop.f32.mrb[0].mxu0
        %v2023 = vadd.f32 0.0, %v2022
        %v2024 = vpop.f32.mrb[0].mxu0
        %2025 = vmatprep.mubr.f32.mxu0 0.0
        %2026 = vmatmul.mubr.f32.gmra.mrb[0].mxu0 %v1823
        %v2027 = vpop.f32.mrb[0].mxu0
        %v2028 = vadd.f32 0.0, %v2027
        %v2029 = vpop.f32.mrb[0].mxu0
        %2030 = vmatprep.mubr.f32.mxu0 0.0
        %2031 = vmatmul.mubr.f32.gmra.mrb[0].mxu0 %v1825
        %v2032 = vpop.f32.mrb[0].mxu0
        %v2033 = vadd.f32 0.0, %v2032
        %v2034 = vpop.f32.mrb[0].mxu0
        %2035 = vmatprep.mubr.f32.mxu0 0.0
        %2036 = vmatmul.mubr.f32.gmra.mrb[0].mxu0 %v1827
        %v2037 = vpop.f32.mrb[0].mxu0
        %v2038 = vadd.f32 0.0, %v2037
        %v2039 = vpop.f32.mrb[0].mxu0
        %2040 = vmatprep.mubr.f32.mxu0 0.0
        %2041 = vmatmul.mubr.f32.gmra.mrb[0].mxu0 %v1829
        %v2042 = vpop.f32.mrb[0].mxu0
        %v2043 = vadd.f32 0.0, %v2042
        %v2044 = vpop.f32.mrb[0].mxu0
        %2045 = vmatprep.mubr.f32.mxu0 0.0
        %2046 = vmatmul.mubr.f32.gmra.mrb[0].mxu0 %v1831
        %v2047 = vpop.f32.mrb[0].mxu0
        %v2048 = vadd.f32 0.0, %v2047
        %v2049 = vpop.f32.mrb[0].mxu0
        %2050 = vmatprep.mubr.f32.mxu0 0.0
        %2051 = vmatmul.mubr.f32.gmra.mrb[0].mxu0 %v1833
        %v2052 = vpop.f32.mrb[0].mxu0
        %v2053 = vadd.f32 0.0, %v2052
        %v2054 = vpop.f32.mrb[0].mxu0
        %2055 = vmatprep.mubr.f32.mxu0 0.0
        %2056 = vmatmul.mubr.f32.gmra.mrb[0].mxu0 %v1835
        %v2057 = vpop.f32.mrb[0].mxu0
        %v2058 = vadd.f32 0.0, %v2057
        %v2059 = vpop.f32.mrb[0].mxu0
        %2060 = vmatprep.mubr.f32.mxu0 0.0
        %2061 = vmatmul.mubr.f32.gmra.mrb[0].mxu0 %v1837
        %v2062 = vpop.f32.mrb[0].mxu0
        %v2063 = vadd.f32 0.0, %v2062
        %v2064 = vpop.f32.mrb[0].mxu0
        %2065 = vmatprep.mubr.f32.mxu0 0.0
        %2066 = vmatmul.mubr.f32.gmra.mrb[0].mxu0 %v1839
        %v2067 = vpop.f32.mrb[0].mxu0
        %v2068 = vadd.f32 0.0, %v2067
        %v2069 = vpop.f32.mrb[0].mxu0
        %2070 = vmatprep.mubr.f32.mxu0 0.0
        %2071 = vmatmul.mubr.f32.gmra.mrb[0].mxu0 %v1841
        %v2072 = vpop.f32.mrb[0].mxu0
        %v2073 = vadd.f32 0.0, %v2072
        %v2074 = vpop.f32.mrb[0].mxu0
        %2075 = vmatprep.mubr.f32.mxu0 0.0
        %2076 = vmatmul.mubr.f32.gmra.mrb[0].mxu0 %v1843
        %v2077 = vpop.f32.mrb[0].mxu0
        %v2078 = vadd.f32 0.0, %v2077
        %v2079 = vpop.f32.mrb[0].mxu0
        %2080 = vmatprep.mubr.f32.mxu0 0.0
        %2081 = vmatmul.mubr.f32.gmra.mrb[0].mxu0 %v1845
        %v2082 = vpop.f32.mrb[0].mxu0
        %v2083 = vadd.f32 0.0, %v2082
        %v2084 = vpop.f32.mrb[0].mxu0
        %2085 = vmatprep.mubr.f32.mxu0 0.0
        %2086 = vmatmul.mubr.f32.gmra.mrb[0].mxu0 %v1847
        %v2087 = vpop.f32.mrb[0].mxu0
        %v2088 = vadd.f32 0.0, %v2087
        %v2089 = vpop.f32.mrb[0].mxu0
        %2090 = vmatprep.mubr.f32.mxu0 0.0
        %2091 = vmatmul.mubr.f32.gmra.mrb[0].mxu0 %v1849
        %v2092 = vpop.f32.mrb[0].mxu0
        %v2093 = vadd.f32 0.0, %v2092
        %v2094 = vpop.f32.mrb[0].mxu0
        %2095 = vmatprep.mubr.f32.mxu0 0.0
        %2096 = vmatmul.mubr.f32.gmra.mrb[0].mxu0 %v1851
        %v2097 = vpop.f32.mrb[0].mxu0
        %v2098 = vadd.f32 0.0, %v2097
        %v2099 = vpop.f32.mrb[0].mxu0
        %2100 = vdwg.mxu0
        %v2101 = vadd.f32 %v1671, %v1923
        %v2102 = vadd.f32 %v1672, %v1928
        %v2103 = vadd.f32 %v1673, %v1933
        %v2104 = vadd.f32 %v1674, %v1938
        %v2105 = vadd.f32 %v1675, %v1943
        %v2106 = vadd.f32 %v1676, %v1948
        %v2107 = vadd.f32 %v1677, %v1953
        %v2108 = vadd.f32 %v1678, %v1958
        %v2109 = vadd.f32 %v1679, %v1963
        %v2110 = vadd.f32 %v1680, %v1968
        %v2111 = vadd.f32 %v1681, %v1973
        %v2112 = vadd.f32 %v1682, %v1978
        %v2113 = vadd.f32 %v1683, %v1983
        %v2114 = vadd.f32 %v1684, %v1988
        %v2115 = vadd.f32 %v1685, %v1993
        %v2116 = vadd.f32 %v1686, %v1998
        %v2117 = vadd.f32 %v1687, %v2003
        %v2118 = vadd.f32 %v1688, %v2008
        %v2119 = vadd.f32 %v1689, %v2013
        %v2120 = vadd.f32 %v1690, %v2018
        %v2121 = vadd.f32 %v1691, %v2023
        %v2122 = vadd.f32 %v1692, %v2028
        %v2123 = vadd.f32 %v1693, %v2033
        %v2124 = vadd.f32 %v1694, %v2038
        %v2125 = vadd.f32 %v1695, %v2043
        %v2126 = vadd.f32 %v1696, %v2048
        %v2127 = vadd.f32 %v1697, %v2053
        %v2128 = vadd.f32 %v1698, %v2058
        %v2129 = vadd.f32 %v1699, %v2063
        %v2130 = vadd.f32 %v1700, %v2068
        %v2131 = vadd.f32 %v1701, %v2073
        %v2132 = vadd.f32 %v1702, %v2078
        %v2133 = vadd.f32 %v1703, %v2083
        %v2134 = vadd.f32 %v1704, %v2088
        %v2135 = vadd.f32 %v1705, %v2093
        %v2136 = vadd.f32 %v1706, %v2098
        %v2137 = vrot.slane %v186, 4
        %v2138 = vrot.slane %v187, 4
        %v2139 = vsel %vm416, %v2137, %v2138
        %v2140 = vrot.slane %v188, 4
        %v2141 = vsel %vm416, %v2138, %v2140
        %v2142 = vrot.slane %v189, 4
        %v2143 = vsel %vm416, %v2140, %v2142
        %v2144 = vrot.slane %v190, 4
        %v2145 = vsel %vm416, %v2142, %v2144
        %v2146 = vrot.slane %v191, 4
        %v2147 = vsel %vm416, %v2144, %v2146
        %v2148 = vrot.slane %v192, 4
        %v2149 = vsel %vm416, %v2146, %v2148
        %v2150 = vrot.slane %v193, 4
        %v2151 = vsel %vm416, %v2148, %v2150
        %v2152 = vrot.slane %v194, 4
        %v2153 = vsel %vm416, %v2150, %v2152
        %v2154 = vrot.slane %v195, 4
        %v2155 = vsel %vm416, %v2152, %v2154
        %v2156 = vrot.slane %v196, 4
        %v2157 = vsel %vm416, %v2154, %v2156
        %v2158 = vrot.slane %v197, 4
        %v2159 = vsel %vm416, %v2156, %v2158
        %v2160 = vrot.slane %v198, 4
        %v2161 = vsel %vm416, %v2158, %v2160
        %v2162 = vrot.slane %v199, 4
        %v2163 = vsel %vm416, %v2160, %v2162
        %v2164 = vrot.slane %v200, 4
        %v2165 = vsel %vm416, %v2162, %v2164
        %v2166 = vrot.slane %v201, 4
        %v2167 = vsel %vm416, %v2164, %v2166
        %v2168 = vrot.slane %v202, 4
        %v2169 = vsel %vm416, %v2166, %v2168
        %v2170 = vrot.slane %v203, 4
        %v2171 = vsel %vm416, %v2168, %v2170
        %v2172 = vrot.slane %v204, 4
        %v2173 = vsel %vm416, %v2170, %v2172
        %v2174 = vrot.slane %v205, 4
        %v2175 = vsel %vm416, %v2172, %v2174
        %v2176 = vrot.slane %v206, 4
        %v2177 = vsel %vm416, %v2174, %v2176
        %v2178 = vrot.slane %v207, 4
        %v2179 = vsel %vm416, %v2176, %v2178
        %v2180 = vrot.slane %v208, 4
        %v2181 = vsel %vm416, %v2178, %v2180
        %v2182 = vrot.slane %v209, 4
        %v2183 = vsel %vm416, %v2180, %v2182
        %v2184 = vrot.slane %v210, 4
        %v2185 = vsel %vm416, %v2182, %v2184
        %v2186 = vrot.slane %v211, 4
        %v2187 = vsel %vm416, %v2184, %v2186
        %v2188 = vrot.slane %v212, 4
        %v2189 = vsel %vm416, %v2186, %v2188
        %v2190 = vrot.slane %v213, 4
        %v2191 = vsel %vm416, %v2188, %v2190
        %v2192 = vrot.slane %v214, 4
        %v2193 = vsel %vm416, %v2190, %v2192
        %v2194 = vrot.slane %v215, 4
        %v2195 = vsel %vm416, %v2192, %v2194
        %v2196 = vrot.slane %v216, 4
        %v2197 = vsel %vm416, %v2194, %v2196
        %v2198 = vrot.slane %v217, 4
        %v2199 = vsel %vm416, %v2196, %v2198
        %v2200 = vrot.slane %v218, 4
        %v2201 = vsel %vm416, %v2198, %v2200
        %v2202 = vrot.slane %v219, 4
        %v2203 = vsel %vm416, %v2200, %v2202
        %v2204 = vrot.slane %v220, 4
        %v2205 = vsel %vm416, %v2202, %v2204
        %v2206 = vrot.slane %v221, 4
        %v2207 = vsel %vm416, %v2204, %v2206
        %v2208 = vrot.slane %v222, 4
        %v2209 = vsel %vm416, %v2206, %v2208
        %v2210 = vrot.slane %v227, 4
        %v2211 = vsel %vm343, %v2139, 0
        %v2213 = vsel %vm343, %v2141, 0
        %v2215 = vsel %vm343, %v2143, 0
        %v2217 = vsel %vm343, %v2145, 0
        %v2219 = vsel %vm343, %v2147, 0
        %v2221 = vsel %vm343, %v2149, 0
        %v2223 = vsel %vm343, %v2151, 0
        %v2225 = vsel %vm343, %v2153, 0
        %v2227 = vsel %vm343, %v2155, 0
        %v2229 = vsel %vm343, %v2157, 0
        %v2231 = vsel %vm343, %v2159, 0
        %v2233 = vsel %vm343, %v2161, 0
        %v2235 = vsel %vm343, %v2163, 0
        %v2237 = vsel %vm343, %v2165, 0
        %v2239 = vsel %vm343, %v2167, 0
        %v2241 = vsel %vm343, %v2169, 0
        %v2243 = vsel %vm343, %v2171, 0
        %v2245 = vsel %vm343, %v2173, 0
        %v2247 = vsel %vm343, %v2175, 0
        %v2249 = vsel %vm343, %v2177, 0
        %v2251 = vsel %vm343, %v2179, 0
        %v2253 = vsel %vm343, %v2181, 0
        %v2255 = vsel %vm343, %v2183, 0
        %v2257 = vsel %vm343, %v2185, 0
        %v2259 = vsel %vm343, %v2187, 0
        %v2261 = vsel %vm343, %v2189, 0
        %v2263 = vsel %vm343, %v2191, 0
        %v2265 = vsel %vm343, %v2193, 0
        %v2267 = vsel %vm343, %v2195, 0
        %v2269 = vsel %vm343, %v2197, 0
        %v2271 = vsel %vm343, %v2199, 0
        %v2273 = vsel %vm343, %v2201, 0
        %v2275 = vsel %vm343, %v2203, 0
        %v2277 = vsel %vm343, %v2205, 0
        %v2279 = vsel %vm343, %v2207, 0
        %v2281 = vsel %vm343, %v2209, 0
        %v2283 = vsel %vm416, %v2210, 0
        %2285 = vmatprep.subr.mxu0 0.0
        %2286 = vmatpush1.msra.mxu0 %v2283
        %2287 = vmatprep.subr.mxu0 0.0
        %2288 = vmatpush1.msra.mxu0 0.0
        %2289 = vmatprep.subr.mxu0 0.0
        %2290 = vmatpush1.msra.mxu0 0.0
        %2291 = vmatprep.subr.mxu0 0.0
        %2292 = vmatpush1.msra.mxu0 0.0
        %2293 = vmatprep.subr.mxu0 0.0
        %2294 = vmatpush1.msra.mxu0 0.0
        %2295 = vmatprep.subr.mxu0 0.0
        %2296 = vmatpush1.msra.mxu0 0.0
        %2297 = vmatprep.subr.mxu0 0.0
        %2298 = vmatpush1.msra.mxu0 0.0
        %2299 = vmatprep.subr.mxu0 0.0
        %2300 = vmatpush1.msra.mxu0 0.0
        %2301 = vmatprep.subr.mxu0 0.0
        %2302 = vmatpush1.msra.mxu0 0.0
        %2303 = vmatprep.subr.mxu0 0.0
        %2304 = vmatpush1.msra.mxu0 0.0
        %2305 = vmatprep.subr.mxu0 0.0
        %2306 = vmatpush1.msra.mxu0 0.0
        %2307 = vmatprep.subr.mxu0 0.0
        %2308 = vmatpush1.msra.mxu0 0.0
        %2309 = vmatprep.subr.mxu0 0.0
        %2310 = vmatpush1.msra.mxu0 0.0
        %2311 = vmatprep.subr.mxu0 0.0
        %2312 = vmatpush1.msra.mxu0 0.0
        %2313 = vmatprep.subr.mxu0 0.0
        %2314 = vmatpush1.msra.mxu0 0.0
        %2315 = vmatprep.subr.mxu0 0.0
        %2316 = vmatpush1.msra.mxu0 0.0
        %2317 = vmatprep.subr.mxu0 0.0
        %2318 = vmatpush1.msra.mxu0 0.0
        %2319 = vmatprep.subr.mxu0 0.0
        %2320 = vmatpush1.msra.mxu0 0.0
        %2321 = vmatprep.subr.mxu0 0.0
        %2322 = vmatpush1.msra.mxu0 0.0
        %2323 = vmatprep.subr.mxu0 0.0
        %2324 = vmatpush1.msra.mxu0 0.0
        %2325 = vmatprep.subr.mxu0 0.0
        %2326 = vmatpush1.msra.mxu0 0.0
        %2327 = vmatprep.subr.mxu0 0.0
        %2328 = vmatpush1.msra.mxu0 0.0
        %2329 = vmatprep.subr.mxu0 0.0
        %2330 = vmatpush1.msra.mxu0 0.0
        %2331 = vmatprep.subr.mxu0 0.0
        %2332 = vmatpush1.msra.mxu0 0.0
        %2333 = vmatprep.subr.mxu0 0.0
        %2334 = vmatpush1.msra.mxu0 0.0
        %2335 = vmatprep.subr.mxu0 0.0
        %2336 = vmatpush1.msra.mxu0 0.0
        %2337 = vmatprep.subr.mxu0 0.0
        %2338 = vmatpush1.msra.mxu0 0.0
        %2339 = vmatprep.subr.mxu0 0.0
        %2340 = vmatpush1.msra.mxu0 0.0
        %2341 = vmatprep.subr.mxu0 0.0
        %2342 = vmatpush1.msra.mxu0 0.0
        %2343 = vmatprep.subr.mxu0 0.0
        %2344 = vmatpush1.msra.mxu0 0.0
        %2345 = vmatprep.subr.mxu0 0.0
        %2346 = vmatpush1.msra.mxu0 0.0
        %2347 = vmatprep.subr.mxu0 0.0
        %2348 = vmatpush1.msra.mxu0 0.0
        %2349 = vmatprep.mubr.f32.mxu0 0.0
        %2350 = vmatmul.mubr.f32.gmra.mrb[0].mxu0 %v2211
        %v2351 = vpop.f32.mrb[0].mxu0
        %v2352 = vadd.f32 0.0, %v2351
        %v2353 = vpop.f32.mrb[0].mxu0
        %2354 = vmatprep.mubr.f32.mxu0 0.0
        %2355 = vmatmul.mubr.f32.gmra.mrb[0].mxu0 %v2213
        %v2356 = vpop.f32.mrb[0].mxu0
        %v2357 = vadd.f32 0.0, %v2356
        %v2358 = vpop.f32.mrb[0].mxu0
        %2359 = vmatprep.mubr.f32.mxu0 0.0
        %2360 = vmatmul.mubr.f32.gmra.mrb[0].mxu0 %v2215
        %v2361 = vpop.f32.mrb[0].mxu0
        %v2362 = vadd.f32 0.0, %v2361
        %v2363 = vpop.f32.mrb[0].mxu0
        %2364 = vmatprep.mubr.f32.mxu0 0.0
        %2365 = vmatmul.mubr.f32.gmra.mrb[0].mxu0 %v2217
        %v2366 = vpop.f32.mrb[0].mxu0
        %v2367 = vadd.f32 0.0, %v2366
        %v2368 = vpop.f32.mrb[0].mxu0
        %2369 = vmatprep.mubr.f32.mxu0 0.0
        %2370 = vmatmul.mubr.f32.gmra.mrb[0].mxu0 %v2219
        %v2371 = vpop.f32.mrb[0].mxu0
        %v2372 = vadd.f32 0.0, %v2371
        %v2373 = vpop.f32.mrb[0].mxu0
        %2374 = vmatprep.mubr.f32.mxu0 0.0
        %2375 = vmatmul.mubr.f32.gmra.mrb[0].mxu0 %v2221
        %v2376 = vpop.f32.mrb[0].mxu0
        %v2377 = vadd.f32 0.0, %v2376
        %v2378 = vpop.f32.mrb[0].mxu0
        %2379 = vmatprep.mubr.f32.mxu0 0.0
        %2380 = vmatmul.mubr.f32.gmra.mrb[0].mxu0 %v2223
        %v2381 = vpop.f32.mrb[0].mxu0
        %v2382 = vadd.f32 0.0, %v2381
        %v2383 = vpop.f32.mrb[0].mxu0
        %2384 = vmatprep.mubr.f32.mxu0 0.0
        %2385 = vmatmul.mubr.f32.gmra.mrb[0].mxu0 %v2225
        %v2386 = vpop.f32.mrb[0].mxu0
        %v2387 = vadd.f32 0.0, %v2386
        %v2388 = vpop.f32.mrb[0].mxu0
        %2389 = vmatprep.mubr.f32.mxu0 0.0
        %2390 = vmatmul.mubr.f32.gmra.mrb[0].mxu0 %v2227
        %v2391 = vpop.f32.mrb[0].mxu0
        %v2392 = vadd.f32 0.0, %v2391
        %v2393 = vpop.f32.mrb[0].mxu0
        %2394 = vmatprep.mubr.f32.mxu0 0.0
        %2395 = vmatmul.mubr.f32.gmra.mrb[0].mxu0 %v2229
        %v2396 = vpop.f32.mrb[0].mxu0
        %v2397 = vadd.f32 0.0, %v2396
        %v2398 = vpop.f32.mrb[0].mxu0
        %2399 = vmatprep.mubr.f32.mxu0 0.0
        %2400 = vmatmul.mubr.f32.gmra.mrb[0].mxu0 %v2231
        %v2401 = vpop.f32.mrb[0].mxu0
        %v2402 = vadd.f32 0.0, %v2401
        %v2403 = vpop.f32.mrb[0].mxu0
        %2404 = vmatprep.mubr.f32.mxu0 0.0
        %2405 = vmatmul.mubr.f32.gmra.mrb[0].mxu0 %v2233
        %v2406 = vpop.f32.mrb[0].mxu0
        %v2407 = vadd.f32 0.0, %v2406
        %v2408 = vpop.f32.mrb[0].mxu0
        %2409 = vmatprep.mubr.f32.mxu0 0.0
        %2410 = vmatmul.mubr.f32.gmra.mrb[0].mxu0 %v2235
        %v2411 = vpop.f32.mrb[0].mxu0
        %v2412 = vadd.f32 0.0, %v2411
        %v2413 = vpop.f32.mrb[0].mxu0
        %2414 = vmatprep.mubr.f32.mxu0 0.0
        %2415 = vmatmul.mubr.f32.gmra.mrb[0].mxu0 %v2237
        %v2416 = vpop.f32.mrb[0].mxu0
        %v2417 = vadd.f32 0.0, %v2416
        %v2418 = vpop.f32.mrb[0].mxu0
        %2419 = vmatprep.mubr.f32.mxu0 0.0
        %2420 = vmatmul.mubr.f32.gmra.mrb[0].mxu0 %v2239
        %v2421 = vpop.f32.mrb[0].mxu0
        %v2422 = vadd.f32 0.0, %v2421
        %v2423 = vpop.f32.mrb[0].mxu0
        %2424 = vmatprep.mubr.f32.mxu0 0.0
        %2425 = vmatmul.mubr.f32.gmra.mrb[0].mxu0 %v2241
        %v2426 = vpop.f32.mrb[0].mxu0
        %v2427 = vadd.f32 0.0, %v2426
        %v2428 = vpop.f32.mrb[0].mxu0
        %2429 = vmatprep.mubr.f32.mxu0 0.0
        %2430 = vmatmul.mubr.f32.gmra.mrb[0].mxu0 %v2243
        %v2431 = vpop.f32.mrb[0].mxu0
        %v2432 = vadd.f32 0.0, %v2431
        %v2433 = vpop.f32.mrb[0].mxu0
        %2434 = vmatprep.mubr.f32.mxu0 0.0
        %2435 = vmatmul.mubr.f32.gmra.mrb[0].mxu0 %v2245
        %v2436 = vpop.f32.mrb[0].mxu0
        %v2437 = vadd.f32 0.0, %v2436
        %v2438 = vpop.f32.mrb[0].mxu0
        %2439 = vmatprep.mubr.f32.mxu0 0.0
        %2440 = vmatmul.mubr.f32.gmra.mrb[0].mxu0 %v2247
        %v2441 = vpop.f32.mrb[0].mxu0
        %v2442 = vadd.f32 0.0, %v2441
        %v2443 = vpop.f32.mrb[0].mxu0
        %2444 = vmatprep.mubr.f32.mxu0 0.0
        %2445 = vmatmul.mubr.f32.gmra.mrb[0].mxu0 %v2249
        %v2446 = vpop.f32.mrb[0].mxu0
        %v2447 = vadd.f32 0.0, %v2446
        %v2448 = vpop.f32.mrb[0].mxu0
        %2449 = vmatprep.mubr.f32.mxu0 0.0
        %2450 = vmatmul.mubr.f32.gmra.mrb[0].mxu0 %v2251
        %v2451 = vpop.f32.mrb[0].mxu0
        %v2452 = vadd.f32 0.0, %v2451
        %v2453 = vpop.f32.mrb[0].mxu0
        %2454 = vmatprep.mubr.f32.mxu0 0.0
        %2455 = vmatmul.mubr.f32.gmra.mrb[0].mxu0 %v2253
        %v2456 = vpop.f32.mrb[0].mxu0
        %v2457 = vadd.f32 0.0, %v2456
        %v2458 = vpop.f32.mrb[0].mxu0
        %2459 = vmatprep.mubr.f32.mxu0 0.0
        %2460 = vmatmul.mubr.f32.gmra.mrb[0].mxu0 %v2255
        %v2461 = vpop.f32.mrb[0].mxu0
        %v2462 = vadd.f32 0.0, %v2461
        %v2463 = vpop.f32.mrb[0].mxu0
        %2464 = vmatprep.mubr.f32.mxu0 0.0
        %2465 = vmatmul.mubr.f32.gmra.mrb[0].mxu0 %v2257
        %v2466 = vpop.f32.mrb[0].mxu0
        %v2467 = vadd.f32 0.0, %v2466
        %v2468 = vpop.f32.mrb[0].mxu0
        %2469 = vmatprep.mubr.f32.mxu0 0.0
        %2470 = vmatmul.mubr.f32.gmra.mrb[0].mxu0 %v2259
        %v2471 = vpop.f32.mrb[0].mxu0
        %v2472 = vadd.f32 0.0, %v2471
        %v2473 = vpop.f32.mrb[0].mxu0
        %2474 = vmatprep.mubr.f32.mxu0 0.0
        %2475 = vmatmul.mubr.f32.gmra.mrb[0].mxu0 %v2261
        %v2476 = vpop.f32.mrb[0].mxu0
        %v2477 = vadd.f32 0.0, %v2476
        %v2478 = vpop.f32.mrb[0].mxu0
        %2479 = vmatprep.mubr.f32.mxu0 0.0
        %2480 = vmatmul.mubr.f32.gmra.mrb[0].mxu0 %v2263
        %v2481 = vpop.f32.mrb[0].mxu0
        %v2482 = vadd.f32 0.0, %v2481
        %v2483 = vpop.f32.mrb[0].mxu0
        %2484 = vmatprep.mubr.f32.mxu0 0.0
        %2485 = vmatmul.mubr.f32.gmra.mrb[0].mxu0 %v2265
        %v2486 = vpop.f32.mrb[0].mxu0
        %v2487 = vadd.f32 0.0, %v2486
        %v2488 = vpop.f32.mrb[0].mxu0
        %2489 = vmatprep.mubr.f32.mxu0 0.0
        %2490 = vmatmul.mubr.f32.gmra.mrb[0].mxu0 %v2267
        %v2491 = vpop.f32.mrb[0].mxu0
        %v2492 = vadd.f32 0.0, %v2491
        %v2493 = vpop.f32.mrb[0].mxu0
        %2494 = vmatprep.mubr.f32.mxu0 0.0
        %2495 = vmatmul.mubr.f32.gmra.mrb[0].mxu0 %v2269
        %v2496 = vpop.f32.mrb[0].mxu0
        %v2497 = vadd.f32 0.0, %v2496
        %v2498 = vpop.f32.mrb[0].mxu0
        %2499 = vmatprep.mubr.f32.mxu0 0.0
        %2500 = vmatmul.mubr.f32.gmra.mrb[0].mxu0 %v2271
        %v2501 = vpop.f32.mrb[0].mxu0
        %v2502 = vadd.f32 0.0, %v2501
        %v2503 = vpop.f32.mrb[0].mxu0
        %2504 = vmatprep.mubr.f32.mxu0 0.0
        %2505 = vmatmul.mubr.f32.gmra.mrb[0].mxu0 %v2273
        %v2506 = vpop.f32.mrb[0].mxu0
        %v2507 = vadd.f32 0.0, %v2506
        %v2508 = vpop.f32.mrb[0].mxu0
        %2509 = vmatprep.mubr.f32.mxu0 0.0
        %2510 = vmatmul.mubr.f32.gmra.mrb[0].mxu0 %v2275
        %v2511 = vpop.f32.mrb[0].mxu0
        %v2512 = vadd.f32 0.0, %v2511
        %v2513 = vpop.f32.mrb[0].mxu0
        %2514 = vmatprep.mubr.f32.mxu0 0.0
        %2515 = vmatmul.mubr.f32.gmra.mrb[0].mxu0 %v2277
        %v2516 = vpop.f32.mrb[0].mxu0
        %v2517 = vadd.f32 0.0, %v2516
        %v2518 = vpop.f32.mrb[0].mxu0
        %2519 = vmatprep.mubr.f32.mxu0 0.0
        %2520 = vmatmul.mubr.f32.gmra.mrb[0].mxu0 %v2279
        %v2521 = vpop.f32.mrb[0].mxu0
        %v2522 = vadd.f32 0.0, %v2521
        %v2523 = vpop.f32.mrb[0].mxu0
        %2524 = vmatprep.mubr.f32.mxu0 0.0
        %2525 = vmatmul.mubr.f32.gmra.mrb[0].mxu0 %v2281
        %v2526 = vpop.f32.mrb[0].mxu0
        %v2527 = vadd.f32 0.0, %v2526
        %v2528 = vpop.f32.mrb[0].mxu0
        %2529 = vdwg.mxu0
        %v2530 = vadd.f32 %v2101, %v2352
        %v2531 = vadd.f32 %v2102, %v2357
        %v2532 = vadd.f32 %v2103, %v2362
        %v2533 = vadd.f32 %v2104, %v2367
        %v2534 = vadd.f32 %v2105, %v2372
        %v2535 = vadd.f32 %v2106, %v2377
        %v2536 = vadd.f32 %v2107, %v2382
        %v2537 = vadd.f32 %v2108, %v2387
        %v2538 = vadd.f32 %v2109, %v2392
        %v2539 = vadd.f32 %v2110, %v2397
        %v2540 = vadd.f32 %v2111, %v2402
        %v2541 = vadd.f32 %v2112, %v2407
        %v2542 = vadd.f32 %v2113, %v2412
        %v2543 = vadd.f32 %v2114, %v2417
        %v2544 = vadd.f32 %v2115, %v2422
        %v2545 = vadd.f32 %v2116, %v2427
        %v2546 = vadd.f32 %v2117, %v2432
        %v2547 = vadd.f32 %v2118, %v2437
        %v2548 = vadd.f32 %v2119, %v2442
        %v2549 = vadd.f32 %v2120, %v2447
        %v2550 = vadd.f32 %v2121, %v2452
        %v2551 = vadd.f32 %v2122, %v2457
        %v2552 = vadd.f32 %v2123, %v2462
        %v2553 = vadd.f32 %v2124, %v2467
        %v2554 = vadd.f32 %v2125, %v2472
        %v2555 = vadd.f32 %v2126, %v2477
        %v2556 = vadd.f32 %v2127, %v2482
        %v2557 = vadd.f32 %v2128, %v2487
        %v2558 = vadd.f32 %v2129, %v2492
        %v2559 = vadd.f32 %v2130, %v2497
        %v2560 = vadd.f32 %v2131, %v2502
        %v2561 = vadd.f32 %v2132, %v2507
        %v2562 = vadd.f32 %v2133, %v2512
        %v2563 = vadd.f32 %v2134, %v2517
        %v2564 = vadd.f32 %v2135, %v2522
        %v2565 = vadd.f32 %v2136, %v2527
        %v2568 = vrot.slane %v223, 4
        %v2569 = vsel %vm416, %v2208, %v2568
        %v2570 = vrot.slane %v224, 4
        %v2571 = vsel %vm416, %v2568, %v2570
        %v2572 = vsel %vm343, %v2569, 0
        %v2574 = vsel %vm343, %v2571, 0
        %v2577 = vsel %vm416, %v228, 0
        %2579 = vmatprep.subr.mxu0 0.0
        %2580 = vmatpush1.msra.mxu0 %v2577
        %2581 = vmatprep.subr.mxu0 0.0
        %2582 = vmatpush1.msra.mxu0 0.0
        %2583 = vmatprep.subr.mxu0 0.0
        %2584 = vmatpush1.msra.mxu0 0.0
        %2585 = vmatprep.subr.mxu0 0.0
        %2586 = vmatpush1.msra.mxu0 0.0
        %2587 = vmatprep.subr.mxu0 0.0
        %2588 = vmatpush1.msra.mxu0 0.0
        %2589 = vmatprep.subr.mxu0 0.0
        %2590 = vmatpush1.msra.mxu0 0.0
        %2591 = vmatprep.subr.mxu0 0.0
        %2592 = vmatpush1.msra.mxu0 0.0
        %2593 = vmatprep.subr.mxu0 0.0
        %2594 = vmatpush1.msra.mxu0 0.0
        %2595 = vmatprep.subr.mxu0 0.0
        %2596 = vmatpush1.msra.mxu0 0.0
        %2597 = vmatprep.subr.mxu0 0.0
        %2598 = vmatpush1.msra.mxu0 0.0
        %2599 = vmatprep.subr.mxu0 0.0
        %2600 = vmatpush1.msra.mxu0 0.0
        %2601 = vmatprep.subr.mxu0 0.0
        %2602 = vmatpush1.msra.mxu0 0.0
        %2603 = vmatprep.subr.mxu0 0.0
        %2604 = vmatpush1.msra.mxu0 0.0
        %2605 = vmatprep.subr.mxu0 0.0
        %2606 = vmatpush1.msra.mxu0 0.0
        %2607 = vmatprep.subr.mxu0 0.0
        %2608 = vmatpush1.msra.mxu0 0.0
        %2609 = vmatprep.subr.mxu0 0.0
        %2610 = vmatpush1.msra.mxu0 0.0
        %2611 = vmatprep.subr.mxu0 0.0
        %2612 = vmatpush1.msra.mxu0 0.0
        %2613 = vmatprep.subr.mxu0 0.0
        %2614 = vmatpush1.msra.mxu0 0.0
        %2615 = vmatprep.subr.mxu0 0.0
        %2616 = vmatpush1.msra.mxu0 0.0
        %2617 = vmatprep.subr.mxu0 0.0
        %2618 = vmatpush1.msra.mxu0 0.0
        %2619 = vmatprep.subr.mxu0 0.0
        %2620 = vmatpush1.msra.mxu0 0.0
        %2621 = vmatprep.subr.mxu0 0.0
        %2622 = vmatpush1.msra.mxu0 0.0
        %2623 = vmatprep.subr.mxu0 0.0
        %2624 = vmatpush1.msra.mxu0 0.0
        %2625 = vmatprep.subr.mxu0 0.0
        %2626 = vmatpush1.msra.mxu0 0.0
        %2627 = vmatprep.subr.mxu0 0.0
        %2628 = vmatpush1.msra.mxu0 0.0
        %2629 = vmatprep.subr.mxu0 0.0
        %2630 = vmatpush1.msra.mxu0 0.0
        %2631 = vmatprep.subr.mxu0 0.0
        %2632 = vmatpush1.msra.mxu0 0.0
        %2633 = vmatprep.subr.mxu0 0.0
        %2634 = vmatpush1.msra.mxu0 0.0
        %2635 = vmatprep.subr.mxu0 0.0
        %2636 = vmatpush1.msra.mxu0 0.0
        %2637 = vmatprep.subr.mxu0 0.0
        %2638 = vmatpush1.msra.mxu0 0.0
        %2639 = vmatprep.subr.mxu0 0.0
        %2640 = vmatpush1.msra.mxu0 0.0
        %2641 = vmatprep.subr.mxu0 0.0
        %2642 = vmatpush1.msra.mxu0 0.0
        %2643 = vmatprep.mubr.f32.mxu0 0.0
        %2644 = vmatmul.mubr.f32.gmra.mrb[0].mxu0 %v2215
        %v2645 = vpop.f32.mrb[0].mxu0
        %v2646 = vadd.f32 0.0, %v2645
        %v2647 = vpop.f32.mrb[0].mxu0
        %2648 = vmatprep.mubr.f32.mxu0 0.0
        %2649 = vmatmul.mubr.f32.gmra.mrb[0].mxu0 %v2217
        %v2650 = vpop.f32.mrb[0].mxu0
        %v2651 = vadd.f32 0.0, %v2650
        %v2652 = vpop.f32.mrb[0].mxu0
        %2653 = vmatprep.mubr.f32.mxu0 0.0
        %2654 = vmatmul.mubr.f32.gmra.mrb[0].mxu0 %v2219
        %v2655 = vpop.f32.mrb[0].mxu0
        %v2656 = vadd.f32 0.0, %v2655
        %v2657 = vpop.f32.mrb[0].mxu0
        %2658 = vmatprep.mubr.f32.mxu0 0.0
        %2659 = vmatmul.mubr.f32.gmra.mrb[0].mxu0 %v2221
        %v2660 = vpop.f32.mrb[0].mxu0
        %v2661 = vadd.f32 0.0, %v2660
        %v2662 = vpop.f32.mrb[0].mxu0
        %2663 = vmatprep.mubr.f32.mxu0 0.0
        %2664 = vmatmul.mubr.f32.gmra.mrb[0].mxu0 %v2223
        %v2665 = vpop.f32.mrb[0].mxu0
        %v2666 = vadd.f32 0.0, %v2665
        %v2667 = vpop.f32.mrb[0].mxu0
        %2668 = vmatprep.mubr.f32.mxu0 0.0
        %2669 = vmatmul.mubr.f32.gmra.mrb[0].mxu0 %v2225
        %v2670 = vpop.f32.mrb[0].mxu0
        %v2671 = vadd.f32 0.0, %v2670
        %v2672 = vpop.f32.mrb[0].mxu0
        %2673 = vmatprep.mubr.f32.mxu0 0.0
        %2674 = vmatmul.mubr.f32.gmra.mrb[0].mxu0 %v2227
        %v2675 = vpop.f32.mrb[0].mxu0
        %v2676 = vadd.f32 0.0, %v2675
        %v2677 = vpop.f32.mrb[0].mxu0
        %2678 = vmatprep.mubr.f32.mxu0 0.0
        %2679 = vmatmul.mubr.f32.gmra.mrb[0].mxu0 %v2229
        %v2680 = vpop.f32.mrb[0].mxu0
        %v2681 = vadd.f32 0.0, %v2680
        %v2682 = vpop.f32.mrb[0].mxu0
        %2683 = vmatprep.mubr.f32.mxu0 0.0
        %2684 = vmatmul.mubr.f32.gmra.mrb[0].mxu0 %v2231
        %v2685 = vpop.f32.mrb[0].mxu0
        %v2686 = vadd.f32 0.0, %v2685
        %v2687 = vpop.f32.mrb[0].mxu0
        %2688 = vmatprep.mubr.f32.mxu0 0.0
        %2689 = vmatmul.mubr.f32.gmra.mrb[0].mxu0 %v2233
        %v2690 = vpop.f32.mrb[0].mxu0
        %v2691 = vadd.f32 0.0, %v2690
        %v2692 = vpop.f32.mrb[0].mxu0
        %2693 = vmatprep.mubr.f32.mxu0 0.0
        %2694 = vmatmul.mubr.f32.gmra.mrb[0].mxu0 %v2235
        %v2695 = vpop.f32.mrb[0].mxu0
        %v2696 = vadd.f32 0.0, %v2695
        %v2697 = vpop.f32.mrb[0].mxu0
        %2698 = vmatprep.mubr.f32.mxu0 0.0
        %2699 = vmatmul.mubr.f32.gmra.mrb[0].mxu0 %v2237
        %v2700 = vpop.f32.mrb[0].mxu0
        %v2701 = vadd.f32 0.0, %v2700
        %v2702 = vpop.f32.mrb[0].mxu0
        %2703 = vmatprep.mubr.f32.mxu0 0.0
        %2704 = vmatmul.mubr.f32.gmra.mrb[0].mxu0 %v2239
        %v2705 = vpop.f32.mrb[0].mxu0
        %v2706 = vadd.f32 0.0, %v2705
        %v2707 = vpop.f32.mrb[0].mxu0
        %2708 = vmatprep.mubr.f32.mxu0 0.0
        %2709 = vmatmul.mubr.f32.gmra.mrb[0].mxu0 %v2241
        %v2710 = vpop.f32.mrb[0].mxu0
        %v2711 = vadd.f32 0.0, %v2710
        %v2712 = vpop.f32.mrb[0].mxu0
        %2713 = vmatprep.mubr.f32.mxu0 0.0
        %2714 = vmatmul.mubr.f32.gmra.mrb[0].mxu0 %v2243
        %v2715 = vpop.f32.mrb[0].mxu0
        %v2716 = vadd.f32 0.0, %v2715
        %v2717 = vpop.f32.mrb[0].mxu0
        %2718 = vmatprep.mubr.f32.mxu0 0.0
        %2719 = vmatmul.mubr.f32.gmra.mrb[0].mxu0 %v2245
        %v2720 = vpop.f32.mrb[0].mxu0
        %v2721 = vadd.f32 0.0, %v2720
        %v2722 = vpop.f32.mrb[0].mxu0
        %2723 = vmatprep.mubr.f32.mxu0 0.0
        %2724 = vmatmul.mubr.f32.gmra.mrb[0].mxu0 %v2247
        %v2725 = vpop.f32.mrb[0].mxu0
        %v2726 = vadd.f32 0.0, %v2725
        %v2727 = vpop.f32.mrb[0].mxu0
        %2728 = vmatprep.mubr.f32.mxu0 0.0
        %2729 = vmatmul.mubr.f32.gmra.mrb[0].mxu0 %v2249
        %v2730 = vpop.f32.mrb[0].mxu0
        %v2731 = vadd.f32 0.0, %v2730
        %v2732 = vpop.f32.mrb[0].mxu0
        %2733 = vmatprep.mubr.f32.mxu0 0.0
        %2734 = vmatmul.mubr.f32.gmra.mrb[0].mxu0 %v2251
        %v2735 = vpop.f32.mrb[0].mxu0
        %v2736 = vadd.f32 0.0, %v2735
        %v2737 = vpop.f32.mrb[0].mxu0
        %2738 = vmatprep.mubr.f32.mxu0 0.0
        %2739 = vmatmul.mubr.f32.gmra.mrb[0].mxu0 %v2253
        %v2740 = vpop.f32.mrb[0].mxu0
        %v2741 = vadd.f32 0.0, %v2740
        %v2742 = vpop.f32.mrb[0].mxu0
        %2743 = vmatprep.mubr.f32.mxu0 0.0
        %2744 = vmatmul.mubr.f32.gmra.mrb[0].mxu0 %v2255
        %v2745 = vpop.f32.mrb[0].mxu0
        %v2746 = vadd.f32 0.0, %v2745
        %v2747 = vpop.f32.mrb[0].mxu0
        %2748 = vmatprep.mubr.f32.mxu0 0.0
        %2749 = vmatmul.mubr.f32.gmra.mrb[0].mxu0 %v2257
        %v2750 = vpop.f32.mrb[0].mxu0
        %v2751 = vadd.f32 0.0, %v2750
        %v2752 = vpop.f32.mrb[0].mxu0
        %2753 = vmatprep.mubr.f32.mxu0 0.0
        %2754 = vmatmul.mubr.f32.gmra.mrb[0].mxu0 %v2259
        %v2755 = vpop.f32.mrb[0].mxu0
        %v2756 = vadd.f32 0.0, %v2755
        %v2757 = vpop.f32.mrb[0].mxu0
        %2758 = vmatprep.mubr.f32.mxu0 0.0
        %2759 = vmatmul.mubr.f32.gmra.mrb[0].mxu0 %v2261
        %v2760 = vpop.f32.mrb[0].mxu0
        %v2761 = vadd.f32 0.0, %v2760
        %v2762 = vpop.f32.mrb[0].mxu0
        %2763 = vmatprep.mubr.f32.mxu0 0.0
        %2764 = vmatmul.mubr.f32.gmra.mrb[0].mxu0 %v2263
        %v2765 = vpop.f32.mrb[0].mxu0
        %v2766 = vadd.f32 0.0, %v2765
        %v2767 = vpop.f32.mrb[0].mxu0
        %2768 = vmatprep.mubr.f32.mxu0 0.0
        %2769 = vmatmul.mubr.f32.gmra.mrb[0].mxu0 %v2265
        %v2770 = vpop.f32.mrb[0].mxu0
        %v2771 = vadd.f32 0.0, %v2770
        %v2772 = vpop.f32.mrb[0].mxu0
        %2773 = vmatprep.mubr.f32.mxu0 0.0
        %2774 = vmatmul.mubr.f32.gmra.mrb[0].mxu0 %v2267
        %v2775 = vpop.f32.mrb[0].mxu0
        %v2776 = vadd.f32 0.0, %v2775
        %v2777 = vpop.f32.mrb[0].mxu0
        %2778 = vmatprep.mubr.f32.mxu0 0.0
        %2779 = vmatmul.mubr.f32.gmra.mrb[0].mxu0 %v2269
        %v2780 = vpop.f32.mrb[0].mxu0
        %v2781 = vadd.f32 0.0, %v2780
        %v2782 = vpop.f32.mrb[0].mxu0
        %2783 = vmatprep.mubr.f32.mxu0 0.0
        %2784 = vmatmul.mubr.f32.gmra.mrb[0].mxu0 %v2271
        %v2785 = vpop.f32.mrb[0].mxu0
        %v2786 = vadd.f32 0.0, %v2785
        %v2787 = vpop.f32.mrb[0].mxu0
        %2788 = vmatprep.mubr.f32.mxu0 0.0
        %2789 = vmatmul.mubr.f32.gmra.mrb[0].mxu0 %v2273
        %v2790 = vpop.f32.mrb[0].mxu0
        %v2791 = vadd.f32 0.0, %v2790
        %v2792 = vpop.f32.mrb[0].mxu0
        %2793 = vmatprep.mubr.f32.mxu0 0.0
        %2794 = vmatmul.mubr.f32.gmra.mrb[0].mxu0 %v2275
        %v2795 = vpop.f32.mrb[0].mxu0
        %v2796 = vadd.f32 0.0, %v2795
        %v2797 = vpop.f32.mrb[0].mxu0
        %2798 = vmatprep.mubr.f32.mxu0 0.0
        %2799 = vmatmul.mubr.f32.gmra.mrb[0].mxu0 %v2277
        %v2800 = vpop.f32.mrb[0].mxu0
        %v2801 = vadd.f32 0.0, %v2800
        %v2802 = vpop.f32.mrb[0].mxu0
        %2803 = vmatprep.mubr.f32.mxu0 0.0
        %2804 = vmatmul.mubr.f32.gmra.mrb[0].mxu0 %v2279
        %v2805 = vpop.f32.mrb[0].mxu0
        %v2806 = vadd.f32 0.0, %v2805
        %v2807 = vpop.f32.mrb[0].mxu0
        %2808 = vmatprep.mubr.f32.mxu0 0.0
        %2809 = vmatmul.mubr.f32.gmra.mrb[0].mxu0 %v2281
        %v2810 = vpop.f32.mrb[0].mxu0
        %v2811 = vadd.f32 0.0, %v2810
        %v2812 = vpop.f32.mrb[0].mxu0
        %2813 = vmatprep.mubr.f32.mxu0 0.0
        %2814 = vmatmul.mubr.f32.gmra.mrb[0].mxu0 %v2572
        %v2815 = vpop.f32.mrb[0].mxu0
        %v2816 = vadd.f32 0.0, %v2815
        %v2817 = vpop.f32.mrb[0].mxu0
        %2818 = vmatprep.mubr.f32.mxu0 0.0
        %2819 = vmatmul.mubr.f32.gmra.mrb[0].mxu0 %v2574
        %v2820 = vpop.f32.mrb[0].mxu0
        %v2821 = vadd.f32 0.0, %v2820
        %v2822 = vpop.f32.mrb[0].mxu0
        %2823 = vdwg.mxu0
        %v2824 = vadd.f32 %v2530, %v2646
        %v2825 = vadd.f32 %v2531, %v2651
        %v2826 = vadd.f32 %v2532, %v2656
        %v2827 = vadd.f32 %v2533, %v2661
        %v2828 = vadd.f32 %v2534, %v2666
        %v2829 = vadd.f32 %v2535, %v2671
        %v2830 = vadd.f32 %v2536, %v2676
        %v2831 = vadd.f32 %v2537, %v2681
        %v2832 = vadd.f32 %v2538, %v2686
        %v2833 = vadd.f32 %v2539, %v2691
        %v2834 = vadd.f32 %v2540, %v2696
        %v2835 = vadd.f32 %v2541, %v2701
        %v2836 = vadd.f32 %v2542, %v2706
        %v2837 = vadd.f32 %v2543, %v2711
        %v2838 = vadd.f32 %v2544, %v2716
        %v2839 = vadd.f32 %v2545, %v2721
        %v2840 = vadd.f32 %v2546, %v2726
        %v2841 = vadd.f32 %v2547, %v2731
        %v2842 = vadd.f32 %v2548, %v2736
        %v2843 = vadd.f32 %v2549, %v2741
        %v2844 = vadd.f32 %v2550, %v2746
        %v2845 = vadd.f32 %v2551, %v2751
        %v2846 = vadd.f32 %v2552, %v2756
        %v2847 = vadd.f32 %v2553, %v2761
        %v2848 = vadd.f32 %v2554, %v2766
        %v2849 = vadd.f32 %v2555, %v2771
        %v2850 = vadd.f32 %v2556, %v2776
        %v2851 = vadd.f32 %v2557, %v2781
        %v2852 = vadd.f32 %v2558, %v2786
        %v2853 = vadd.f32 %v2559, %v2791
        %v2854 = vadd.f32 %v2560, %v2796
        %v2855 = vadd.f32 %v2561, %v2801
        %v2856 = vadd.f32 %v2562, %v2806
        %v2857 = vadd.f32 %v2563, %v2811
        %v2858 = vadd.f32 %v2564, %v2816
        %v2859 = vadd.f32 %v2565, %v2821
        %vm2860 = vcmask 1042432
        %v2861 = vrot.slane %v188, 5
        %v2862 = vrot.slane %v189, 5
        %v2863 = vsel %vm2860, %v2861, %v2862
        %v2864 = vrot.slane %v190, 5
        %v2865 = vsel %vm2860, %v2862, %v2864
        %v2866 = vrot.slane %v191, 5
        %v2867 = vsel %vm2860, %v2864, %v2866
        %v2868 = vrot.slane %v192, 5
        %v2869 = vsel %vm2860, %v2866, %v2868
        %v2870 = vrot.slane %v193, 5
        %v2871 = vsel %vm2860, %v2868, %v2870
        %v2872 = vrot.slane %v194, 5
        %v2873 = vsel %vm2860, %v2870, %v2872
        %v2874 = vrot.slane %v195, 5
        %v2875 = vsel %vm2860, %v2872, %v2874
        %v2876 = vrot.slane %v196, 5
        %v2877 = vsel %vm2860, %v2874, %v2876
        %v2878 = vrot.slane %v197, 5
        %v2879 = vsel %vm2860, %v2876, %v2878
        %v2880 = vrot.slane %v198, 5
        %v2881 = vsel %vm2860, %v2878, %v2880
        %v2882 = vrot.slane %v199, 5
        %v2883 = vsel %vm2860, %v2880, %v2882
        %v2884 = vrot.slane %v200, 5
        %v2885 = vsel %vm2860, %v2882, %v2884
        %v2886 = vrot.slane %v201, 5
        %v2887 = vsel %vm2860, %v2884, %v2886
        %v2888 = vrot.slane %v202, 5
        %v2889 = vsel %vm2860, %v2886, %v2888
        %v2890 = vrot.slane %v203, 5
        %v2891 = vsel %vm2860, %v2888, %v2890
        %v2892 = vrot.slane %v204, 5
        %v2893 = vsel %vm2860, %v2890, %v2892
        %v2894 = vrot.slane %v205, 5
        %v2895 = vsel %vm2860, %v2892, %v2894
        %v2896 = vrot.slane %v206, 5
        %v2897 = vsel %vm2860, %v2894, %v2896
        %v2898 = vrot.slane %v207, 5
        %v2899 = vsel %vm2860, %v2896, %v2898
        %v2900 = vrot.slane %v208, 5
        %v2901 = vsel %vm2860, %v2898, %v2900
        %v2902 = vrot.slane %v209, 5
        %v2903 = vsel %vm2860, %v2900, %v2902
        %v2904 = vrot.slane %v210, 5
        %v2905 = vsel %vm2860, %v2902, %v2904
        %v2906 = vrot.slane %v211, 5
        %v2907 = vsel %vm2860, %v2904, %v2906
        %v2908 = vrot.slane %v212, 5
        %v2909 = vsel %vm2860, %v2906, %v2908
        %v2910 = vrot.slane %v213, 5
        %v2911 = vsel %vm2860, %v2908, %v2910
        %v2912 = vrot.slane %v214, 5
        %v2913 = vsel %vm2860, %v2910, %v2912
        %v2914 = vrot.slane %v215, 5
        %v2915 = vsel %vm2860, %v2912, %v2914
        %v2916 = vrot.slane %v216, 5
        %v2917 = vsel %vm2860, %v2914, %v2916
        %v2918 = vrot.slane %v217, 5
        %v2919 = vsel %vm2860, %v2916, %v2918
        %v2920 = vrot.slane %v218, 5
        %v2921 = vsel %vm2860, %v2918, %v2920
        %v2922 = vrot.slane %v219, 5
        %v2923 = vsel %vm2860, %v2920, %v2922
        %v2924 = vrot.slane %v220, 5
        %v2925 = vsel %vm2860, %v2922, %v2924
        %v2926 = vrot.slane %v221, 5
        %v2927 = vsel %vm2860, %v2924, %v2926
        %v2928 = vrot.slane %v222, 5
        %v2929 = vsel %vm2860, %v2926, %v2928
        %v2930 = vrot.slane %v223, 5
        %v2931 = vsel %vm2860, %v2928, %v2930
        %v2932 = vrot.slane %v224, 5
        %v2933 = vsel %vm2860, %v2930, %v2932
        %v2934 = vrot.slane %v228, 4
        %v2935 = vsel %vm343, %v2863, 0
        %v2937 = vsel %vm343, %v2865, 0
        %v2939 = vsel %vm343, %v2867, 0
        %v2941 = vsel %vm343, %v2869, 0
        %v2943 = vsel %vm343, %v2871, 0
        %v2945 = vsel %vm343, %v2873, 0
        %v2947 = vsel %vm343, %v2875, 0
        %v2949 = vsel %vm343, %v2877, 0
        %v2951 = vsel %vm343, %v2879, 0
        %v2953 = vsel %vm343, %v2881, 0
        %v2955 = vsel %vm343, %v2883, 0
        %v2957 = vsel %vm343, %v2885, 0
        %v2959 = vsel %vm343, %v2887, 0
        %v2961 = vsel %vm343, %v2889, 0
        %v2963 = vsel %vm343, %v2891, 0
        %v2965 = vsel %vm343, %v2893, 0
        %v2967 = vsel %vm343, %v2895, 0
        %v2969 = vsel %vm343, %v2897, 0
        %v2971 = vsel %vm343, %v2899, 0
        %v2973 = vsel %vm343, %v2901, 0
        %v2975 = vsel %vm343, %v2903, 0
        %v2977 = vsel %vm343, %v2905, 0
        %v2979 = vsel %vm343, %v2907, 0
        %v2981 = vsel %vm343, %v2909, 0
        %v2983 = vsel %vm343, %v2911, 0
        %v2985 = vsel %vm343, %v2913, 0
        %v2987 = vsel %vm343, %v2915, 0
        %v2989 = vsel %vm343, %v2917, 0
        %v2991 = vsel %vm343, %v2919, 0
        %v2993 = vsel %vm343, %v2921, 0
        %v2995 = vsel %vm343, %v2923, 0
        %v2997 = vsel %vm343, %v2925, 0
        %v2999 = vsel %vm343, %v2927, 0
        %v3001 = vsel %vm343, %v2929, 0
        %v3003 = vsel %vm343, %v2931, 0
        %v3005 = vsel %vm343, %v2933, 0
        %v3007 = vsel %vm416, %v2934, 0
        %3009 = vmatprep.subr.mxu0 0.0
        %3010 = vmatpush1.msra.mxu0 %v3007
        %3011 = vmatprep.subr.mxu0 0.0
        %3012 = vmatpush1.msra.mxu0 0.0
        %3013 = vmatprep.subr.mxu0 0.0
        %3014 = vmatpush1.msra.mxu0 0.0
        %3015 = vmatprep.subr.mxu0 0.0
        %3016 = vmatpush1.msra.mxu0 0.0
        %3017 = vmatprep.subr.mxu0 0.0
        %3018 = vmatpush1.msra.mxu0 0.0
        %3019 = vmatprep.subr.mxu0 0.0
        %3020 = vmatpush1.msra.mxu0 0.0
        %3021 = vmatprep.subr.mxu0 0.0
        %3022 = vmatpush1.msra.mxu0 0.0
        %3023 = vmatprep.subr.mxu0 0.0
        %3024 = vmatpush1.msra.mxu0 0.0
        %3025 = vmatprep.subr.mxu0 0.0
        %3026 = vmatpush1.msra.mxu0 0.0
        %3027 = vmatprep.subr.mxu0 0.0
        %3028 = vmatpush1.msra.mxu0 0.0
        %3029 = vmatprep.subr.mxu0 0.0
        %3030 = vmatpush1.msra.mxu0 0.0
        %3031 = vmatprep.subr.mxu0 0.0
        %3032 = vmatpush1.msra.mxu0 0.0
        %3033 = vmatprep.subr.mxu0 0.0
        %3034 = vmatpush1.msra.mxu0 0.0
        %3035 = vmatprep.subr.mxu0 0.0
        %3036 = vmatpush1.msra.mxu0 0.0
        %3037 = vmatprep.subr.mxu0 0.0
        %3038 = vmatpush1.msra.mxu0 0.0
        %3039 = vmatprep.subr.mxu0 0.0
        %3040 = vmatpush1.msra.mxu0 0.0
        %3041 = vmatprep.subr.mxu0 0.0
        %3042 = vmatpush1.msra.mxu0 0.0
        %3043 = vmatprep.subr.mxu0 0.0
        %3044 = vmatpush1.msra.mxu0 0.0
        %3045 = vmatprep.subr.mxu0 0.0
        %3046 = vmatpush1.msra.mxu0 0.0
        %3047 = vmatprep.subr.mxu0 0.0
        %3048 = vmatpush1.msra.mxu0 0.0
        %3049 = vmatprep.subr.mxu0 0.0
        %3050 = vmatpush1.msra.mxu0 0.0
        %3051 = vmatprep.subr.mxu0 0.0
        %3052 = vmatpush1.msra.mxu0 0.0
        %3053 = vmatprep.subr.mxu0 0.0
        %3054 = vmatpush1.msra.mxu0 0.0
        %3055 = vmatprep.subr.mxu0 0.0
        %3056 = vmatpush1.msra.mxu0 0.0
        %3057 = vmatprep.subr.mxu0 0.0
        %3058 = vmatpush1.msra.mxu0 0.0
        %3059 = vmatprep.subr.mxu0 0.0
        %3060 = vmatpush1.msra.mxu0 0.0
        %3061 = vmatprep.subr.mxu0 0.0
        %3062 = vmatpush1.msra.mxu0 0.0
        %3063 = vmatprep.subr.mxu0 0.0
        %3064 = vmatpush1.msra.mxu0 0.0
        %3065 = vmatprep.subr.mxu0 0.0
        %3066 = vmatpush1.msra.mxu0 0.0
        %3067 = vmatprep.subr.mxu0 0.0
        %3068 = vmatpush1.msra.mxu0 0.0
        %3069 = vmatprep.subr.mxu0 0.0
        %3070 = vmatpush1.msra.mxu0 0.0
        %3071 = vmatprep.subr.mxu0 0.0
        %3072 = vmatpush1.msra.mxu0 0.0
        %3073 = vmatprep.mubr.f32.mxu0 0.0
        %3074 = vmatmul.mubr.f32.gmra.mrb[0].mxu0 %v2935
        %v3075 = vpop.f32.mrb[0].mxu0
        %v3076 = vadd.f32 0.0, %v3075
        %v3077 = vpop.f32.mrb[0].mxu0
        %3078 = vmatprep.mubr.f32.mxu0 0.0
        %3079 = vmatmul.mubr.f32.gmra.mrb[0].mxu0 %v2937
        %v3080 = vpop.f32.mrb[0].mxu0
        %v3081 = vadd.f32 0.0, %v3080
        %v3082 = vpop.f32.mrb[0].mxu0
        %3083 = vmatprep.mubr.f32.mxu0 0.0
        %3084 = vmatmul.mubr.f32.gmra.mrb[0].mxu0 %v2939
        %v3085 = vpop.f32.mrb[0].mxu0
        %v3086 = vadd.f32 0.0, %v3085
        %v3087 = vpop.f32.mrb[0].mxu0
        %3088 = vmatprep.mubr.f32.mxu0 0.0
        %3089 = vmatmul.mubr.f32.gmra.mrb[0].mxu0 %v2941
        %v3090 = vpop.f32.mrb[0].mxu0
        %v3091 = vadd.f32 0.0, %v3090
        %v3092 = vpop.f32.mrb[0].mxu0
        %3093 = vmatprep.mubr.f32.mxu0 0.0
        %3094 = vmatmul.mubr.f32.gmra.mrb[0].mxu0 %v2943
        %v3095 = vpop.f32.mrb[0].mxu0
        %v3096 = vadd.f32 0.0, %v3095
        %v3097 = vpop.f32.mrb[0].mxu0
        %3098 = vmatprep.mubr.f32.mxu0 0.0
        %3099 = vmatmul.mubr.f32.gmra.mrb[0].mxu0 %v2945
        %v3100 = vpop.f32.mrb[0].mxu0
        %v3101 = vadd.f32 0.0, %v3100
        %v3102 = vpop.f32.mrb[0].mxu0
        %3103 = vmatprep.mubr.f32.mxu0 0.0
        %3104 = vmatmul.mubr.f32.gmra.mrb[0].mxu0 %v2947
        %v3105 = vpop.f32.mrb[0].mxu0
        %v3106 = vadd.f32 0.0, %v3105
        %v3107 = vpop.f32.mrb[0].mxu0
        %3108 = vmatprep.mubr.f32.mxu0 0.0
        %3109 = vmatmul.mubr.f32.gmra.mrb[0].mxu0 %v2949
        %v3110 = vpop.f32.mrb[0].mxu0
        %v3111 = vadd.f32 0.0, %v3110
        %v3112 = vpop.f32.mrb[0].mxu0
        %3113 = vmatprep.mubr.f32.mxu0 0.0
        %3114 = vmatmul.mubr.f32.gmra.mrb[0].mxu0 %v2951
        %v3115 = vpop.f32.mrb[0].mxu0
        %v3116 = vadd.f32 0.0, %v3115
        %v3117 = vpop.f32.mrb[0].mxu0
        %3118 = vmatprep.mubr.f32.mxu0 0.0
        %3119 = vmatmul.mubr.f32.gmra.mrb[0].mxu0 %v2953
        %v3120 = vpop.f32.mrb[0].mxu0
        %v3121 = vadd.f32 0.0, %v3120
        %v3122 = vpop.f32.mrb[0].mxu0
        %3123 = vmatprep.mubr.f32.mxu0 0.0
        %3124 = vmatmul.mubr.f32.gmra.mrb[0].mxu0 %v2955
        %v3125 = vpop.f32.mrb[0].mxu0
        %v3126 = vadd.f32 0.0, %v3125
        %v3127 = vpop.f32.mrb[0].mxu0
        %3128 = vmatprep.mubr.f32.mxu0 0.0
        %3129 = vmatmul.mubr.f32.gmra.mrb[0].mxu0 %v2957
        %v3130 = vpop.f32.mrb[0].mxu0
        %v3131 = vadd.f32 0.0, %v3130
        %v3132 = vpop.f32.mrb[0].mxu0
        %3133 = vmatprep.mubr.f32.mxu0 0.0
        %3134 = vmatmul.mubr.f32.gmra.mrb[0].mxu0 %v2959
        %v3135 = vpop.f32.mrb[0].mxu0
        %v3136 = vadd.f32 0.0, %v3135
        %v3137 = vpop.f32.mrb[0].mxu0
        %3138 = vmatprep.mubr.f32.mxu0 0.0
        %3139 = vmatmul.mubr.f32.gmra.mrb[0].mxu0 %v2961
        %v3140 = vpop.f32.mrb[0].mxu0
        %v3141 = vadd.f32 0.0, %v3140
        %v3142 = vpop.f32.mrb[0].mxu0
        %3143 = vmatprep.mubr.f32.mxu0 0.0
        %3144 = vmatmul.mubr.f32.gmra.mrb[0].mxu0 %v2963
        %v3145 = vpop.f32.mrb[0].mxu0
        %v3146 = vadd.f32 0.0, %v3145
        %v3147 = vpop.f32.mrb[0].mxu0
        %3148 = vmatprep.mubr.f32.mxu0 0.0
        %3149 = vmatmul.mubr.f32.gmra.mrb[0].mxu0 %v2965
        %v3150 = vpop.f32.mrb[0].mxu0
        %v3151 = vadd.f32 0.0, %v3150
        %v3152 = vpop.f32.mrb[0].mxu0
        %3153 = vmatprep.mubr.f32.mxu0 0.0
        %3154 = vmatmul.mubr.f32.gmra.mrb[0].mxu0 %v2967
        %v3155 = vpop.f32.mrb[0].mxu0
        %v3156 = vadd.f32 0.0, %v3155
        %v3157 = vpop.f32.mrb[0].mxu0
        %3158 = vmatprep.mubr.f32.mxu0 0.0
        %3159 = vmatmul.mubr.f32.gmra.mrb[0].mxu0 %v2969
        %v3160 = vpop.f32.mrb[0].mxu0
        %v3161 = vadd.f32 0.0, %v3160
        %v3162 = vpop.f32.mrb[0].mxu0
        %3163 = vmatprep.mubr.f32.mxu0 0.0
        %3164 = vmatmul.mubr.f32.gmra.mrb[0].mxu0 %v2971
        %v3165 = vpop.f32.mrb[0].mxu0
        %v3166 = vadd.f32 0.0, %v3165
        %v3167 = vpop.f32.mrb[0].mxu0
        %3168 = vmatprep.mubr.f32.mxu0 0.0
        %3169 = vmatmul.mubr.f32.gmra.mrb[0].mxu0 %v2973
        %v3170 = vpop.f32.mrb[0].mxu0
        %v3171 = vadd.f32 0.0, %v3170
        %v3172 = vpop.f32.mrb[0].mxu0
        %3173 = vmatprep.mubr.f32.mxu0 0.0
        %3174 = vmatmul.mubr.f32.gmra.mrb[0].mxu0 %v2975
        %v3175 = vpop.f32.mrb[0].mxu0
        %v3176 = vadd.f32 0.0, %v3175
        %v3177 = vpop.f32.mrb[0].mxu0
        %3178 = vmatprep.mubr.f32.mxu0 0.0
        %3179 = vmatmul.mubr.f32.gmra.mrb[0].mxu0 %v2977
        %v3180 = vpop.f32.mrb[0].mxu0
        %v3181 = vadd.f32 0.0, %v3180
        %v3182 = vpop.f32.mrb[0].mxu0
        %3183 = vmatprep.mubr.f32.mxu0 0.0
        %3184 = vmatmul.mubr.f32.gmra.mrb[0].mxu0 %v2979
        %v3185 = vpop.f32.mrb[0].mxu0
        %v3186 = vadd.f32 0.0, %v3185
        %v3187 = vpop.f32.mrb[0].mxu0
        %3188 = vmatprep.mubr.f32.mxu0 0.0
        %3189 = vmatmul.mubr.f32.gmra.mrb[0].mxu0 %v2981
        %v3190 = vpop.f32.mrb[0].mxu0
        %v3191 = vadd.f32 0.0, %v3190
        %v3192 = vpop.f32.mrb[0].mxu0
        %3193 = vmatprep.mubr.f32.mxu0 0.0
        %3194 = vmatmul.mubr.f32.gmra.mrb[0].mxu0 %v2983
        %v3195 = vpop.f32.mrb[0].mxu0
        %v3196 = vadd.f32 0.0, %v3195
        %v3197 = vpop.f32.mrb[0].mxu0
        %3198 = vmatprep.mubr.f32.mxu0 0.0
        %3199 = vmatmul.mubr.f32.gmra.mrb[0].mxu0 %v2985
        %v3200 = vpop.f32.mrb[0].mxu0
        %v3201 = vadd.f32 0.0, %v3200
        %v3202 = vpop.f32.mrb[0].mxu0
        %3203 = vmatprep.mubr.f32.mxu0 0.0
        %3204 = vmatmul.mubr.f32.gmra.mrb[0].mxu0 %v2987
        %v3205 = vpop.f32.mrb[0].mxu0
        %v3206 = vadd.f32 0.0, %v3205
        %v3207 = vpop.f32.mrb[0].mxu0
        %3208 = vmatprep.mubr.f32.mxu0 0.0
        %3209 = vmatmul.mubr.f32.gmra.mrb[0].mxu0 %v2989
        %v3210 = vpop.f32.mrb[0].mxu0
        %v3211 = vadd.f32 0.0, %v3210
        %v3212 = vpop.f32.mrb[0].mxu0
        %3213 = vmatprep.mubr.f32.mxu0 0.0
        %3214 = vmatmul.mubr.f32.gmra.mrb[0].mxu0 %v2991
        %v3215 = vpop.f32.mrb[0].mxu0
        %v3216 = vadd.f32 0.0, %v3215
        %v3217 = vpop.f32.mrb[0].mxu0
        %3218 = vmatprep.mubr.f32.mxu0 0.0
        %3219 = vmatmul.mubr.f32.gmra.mrb[0].mxu0 %v2993
        %v3220 = vpop.f32.mrb[0].mxu0
        %v3221 = vadd.f32 0.0, %v3220
        %v3222 = vpop.f32.mrb[0].mxu0
        %3223 = vmatprep.mubr.f32.mxu0 0.0
        %3224 = vmatmul.mubr.f32.gmra.mrb[0].mxu0 %v2995
        %v3225 = vpop.f32.mrb[0].mxu0
        %v3226 = vadd.f32 0.0, %v3225
        %v3227 = vpop.f32.mrb[0].mxu0
        %3228 = vmatprep.mubr.f32.mxu0 0.0
        %3229 = vmatmul.mubr.f32.gmra.mrb[0].mxu0 %v2997
        %v3230 = vpop.f32.mrb[0].mxu0
        %v3231 = vadd.f32 0.0, %v3230
        %v3232 = vpop.f32.mrb[0].mxu0
        %3233 = vmatprep.mubr.f32.mxu0 0.0
        %3234 = vmatmul.mubr.f32.gmra.mrb[0].mxu0 %v2999
        %v3235 = vpop.f32.mrb[0].mxu0
        %v3236 = vadd.f32 0.0, %v3235
        %v3237 = vpop.f32.mrb[0].mxu0
        %3238 = vmatprep.mubr.f32.mxu0 0.0
        %3239 = vmatmul.mubr.f32.gmra.mrb[0].mxu0 %v3001
        %v3240 = vpop.f32.mrb[0].mxu0
        %v3241 = vadd.f32 0.0, %v3240
        %v3242 = vpop.f32.mrb[0].mxu0
        %3243 = vmatprep.mubr.f32.mxu0 0.0
        %3244 = vmatmul.mubr.f32.gmra.mrb[0].mxu0 %v3003
        %v3245 = vpop.f32.mrb[0].mxu0
        %v3246 = vadd.f32 0.0, %v3245
        %v3247 = vpop.f32.mrb[0].mxu0
        %3248 = vmatprep.mubr.f32.mxu0 0.0
        %3249 = vmatmul.mubr.f32.gmra.mrb[0].mxu0 %v3005
        %v3250 = vpop.f32.mrb[0].mxu0
        %v3251 = vadd.f32 0.0, %v3250
        %v3252 = vpop.f32.mrb[0].mxu0
        %3253 = vdwg.mxu0
        %v3254 = vadd.f32 %v2824, %v3076
        %v3255 = vadd.f32 %v2825, %v3081
        %v3256 = vadd.f32 %v2826, %v3086
        %v3257 = vadd.f32 %v2827, %v3091
        %v3258 = vadd.f32 %v2828, %v3096
        %v3259 = vadd.f32 %v2829, %v3101
        %v3260 = vadd.f32 %v2830, %v3106
        %v3261 = vadd.f32 %v2831, %v3111
        %v3262 = vadd.f32 %v2832, %v3116
        %v3263 = vadd.f32 %v2833, %v3121
        %v3264 = vadd.f32 %v2834, %v3126
        %v3265 = vadd.f32 %v2835, %v3131
        %v3266 = vadd.f32 %v2836, %v3136
        %v3267 = vadd.f32 %v2837, %v3141
        %v3268 = vadd.f32 %v2838, %v3146
        %v3269 = vadd.f32 %v2839, %v3151
        %v3270 = vadd.f32 %v2840, %v3156
        %v3271 = vadd.f32 %v2841, %v3161
        %v3272 = vadd.f32 %v2842, %v3166
        %v3273 = vadd.f32 %v2843, %v3171
        %v3274 = vadd.f32 %v2844, %v3176
        %v3275 = vadd.f32 %v2845, %v3181
        %v3276 = vadd.f32 %v2846, %v3186
        %v3277 = vadd.f32 %v2847, %v3191
        %v3278 = vadd.f32 %v2848, %v3196
        %v3279 = vadd.f32 %v2849, %v3201
        %v3280 = vadd.f32 %v2850, %v3206
        %v3281 = vadd.f32 %v2851, %v3211
        %v3282 = vadd.f32 %v2852, %v3216
        %v3283 = vadd.f32 %v2853, %v3221
        %v3284 = vadd.f32 %v2854, %v3226
        %v3285 = vadd.f32 %v2855, %v3231
        %v3286 = vadd.f32 %v2856, %v3236
        %v3287 = vadd.f32 %v2857, %v3241
        %v3288 = vadd.f32 %v2858, %v3246
        %v3289 = vadd.f32 %v2859, %v3251
        %vm3290 = vcmask 1041408
        %v3291 = vrot.slane %v188, 6
        %v3292 = vrot.slane %v189, 6
        %v3293 = vsel %vm3290, %v3291, %v3292
        %v3294 = vrot.slane %v190, 6
        %v3295 = vsel %vm3290, %v3292, %v3294
        %v3296 = vrot.slane %v191, 6
        %v3297 = vsel %vm3290, %v3294, %v3296
        %v3298 = vrot.slane %v192, 6
        %v3299 = vsel %vm3290, %v3296, %v3298
        %v3300 = vrot.slane %v193, 6
        %v3301 = vsel %vm3290, %v3298, %v3300
        %v3302 = vrot.slane %v194, 6
        %v3303 = vsel %vm3290, %v3300, %v3302
        %v3304 = vrot.slane %v195, 6
        %v3305 = vsel %vm3290, %v3302, %v3304
        %v3306 = vrot.slane %v196, 6
        %v3307 = vsel %vm3290, %v3304, %v3306
        %v3308 = vrot.slane %v197, 6
        %v3309 = vsel %vm3290, %v3306, %v3308
        %v3310 = vrot.slane %v198, 6
        %v3311 = vsel %vm3290, %v3308, %v3310
        %v3312 = vrot.slane %v199, 6
        %v3313 = vsel %vm3290, %v3310, %v3312
        %v3314 = vrot.slane %v200, 6
        %v3315 = vsel %vm3290, %v3312, %v3314
        %v3316 = vrot.slane %v201, 6
        %v3317 = vsel %vm3290, %v3314, %v3316
        %v3318 = vrot.slane %v202, 6
        %v3319 = vsel %vm3290, %v3316, %v3318
        %v3320 = vrot.slane %v203, 6
        %v3321 = vsel %vm3290, %v3318, %v3320
        %v3322 = vrot.slane %v204, 6
        %v3323 = vsel %vm3290, %v3320, %v3322
        %v3324 = vrot.slane %v205, 6
        %v3325 = vsel %vm3290, %v3322, %v3324
        %v3326 = vrot.slane %v206, 6
        %v3327 = vsel %vm3290, %v3324, %v3326
        %v3328 = vrot.slane %v207, 6
        %v3329 = vsel %vm3290, %v3326, %v3328
        %v3330 = vrot.slane %v208, 6
        %v3331 = vsel %vm3290, %v3328, %v3330
        %v3332 = vrot.slane %v209, 6
        %v3333 = vsel %vm3290, %v3330, %v3332
        %v3334 = vrot.slane %v210, 6
        %v3335 = vsel %vm3290, %v3332, %v3334
        %v3336 = vrot.slane %v211, 6
        %v3337 = vsel %vm3290, %v3334, %v3336
        %v3338 = vrot.slane %v212, 6
        %v3339 = vsel %vm3290, %v3336, %v3338
        %v3340 = vrot.slane %v213, 6
        %v3341 = vsel %vm3290, %v3338, %v3340
        %v3342 = vrot.slane %v214, 6
        %v3343 = vsel %vm3290, %v3340, %v3342
        %v3344 = vrot.slane %v215, 6
        %v3345 = vsel %vm3290, %v3342, %v3344
        %v3346 = vrot.slane %v216, 6
        %v3347 = vsel %vm3290, %v3344, %v3346
        %v3348 = vrot.slane %v217, 6
        %v3349 = vsel %vm3290, %v3346, %v3348
        %v3350 = vrot.slane %v218, 6
        %v3351 = vsel %vm3290, %v3348, %v3350
        %v3352 = vrot.slane %v219, 6
        %v3353 = vsel %vm3290, %v3350, %v3352
        %v3354 = vrot.slane %v220, 6
        %v3355 = vsel %vm3290, %v3352, %v3354
        %v3356 = vrot.slane %v221, 6
        %v3357 = vsel %vm3290, %v3354, %v3356
        %v3358 = vrot.slane %v222, 6
        %v3359 = vsel %vm3290, %v3356, %v3358
        %v3360 = vrot.slane %v223, 6
        %v3361 = vsel %vm3290, %v3358, %v3360
        %v3362 = vrot.slane %v224, 6
        %v3363 = vsel %vm3290, %v3360, %v3362
        %v3364 = vsel %vm343, %v3293, 0
        %v3366 = vsel %vm343, %v3295, 0
        %v3368 = vsel %vm343, %v3297, 0
        %v3370 = vsel %vm343, %v3299, 0
        %v3372 = vsel %vm343, %v3301, 0
        %v3374 = vsel %vm343, %v3303, 0
        %v3376 = vsel %vm343, %v3305, 0
        %v3378 = vsel %vm343, %v3307, 0
        %v3380 = vsel %vm343, %v3309, 0
        %v3382 = vsel %vm343, %v3311, 0
        %v3384 = vsel %vm343, %v3313, 0
        %v3386 = vsel %vm343, %v3315, 0
        %v3388 = vsel %vm343, %v3317, 0
        %v3390 = vsel %vm343, %v3319, 0
        %v3392 = vsel %vm343, %v3321, 0
        %v3394 = vsel %vm343, %v3323, 0
        %v3396 = vsel %vm343, %v3325, 0
        %v3398 = vsel %vm343, %v3327, 0
        %v3400 = vsel %vm343, %v3329, 0
        %v3402 = vsel %vm343, %v3331, 0
        %v3404 = vsel %vm343, %v3333, 0
        %v3406 = vsel %vm343, %v3335, 0
        %v3408 = vsel %vm343, %v3337, 0
        %v3410 = vsel %vm343, %v3339, 0
        %v3412 = vsel %vm343, %v3341, 0
        %v3414 = vsel %vm343, %v3343, 0
        %v3416 = vsel %vm343, %v3345, 0
        %v3418 = vsel %vm343, %v3347, 0
        %v3420 = vsel %vm343, %v3349, 0
        %v3422 = vsel %vm343, %v3351, 0
        %v3424 = vsel %vm343, %v3353, 0
        %v3426 = vsel %vm343, %v3355, 0
        %v3428 = vsel %vm343, %v3357, 0
        %v3430 = vsel %vm343, %v3359, 0
        %v3432 = vsel %vm343, %v3361, 0
        %v3434 = vsel %vm343, %v3363, 0
        %v3437 = vsel %vm416, %v229, 0
        %3439 = vmatprep.subr.mxu0 0.0
        %3440 = vmatpush1.msra.mxu0 %v3437
        %3441 = vmatprep.subr.mxu0 0.0
        %3442 = vmatpush1.msra.mxu0 0.0
        %3443 = vmatprep.subr.mxu0 0.0
        %3444 = vmatpush1.msra.mxu0 0.0
        %3445 = vmatprep.subr.mxu0 0.0
        %3446 = vmatpush1.msra.mxu0 0.0
        %3447 = vmatprep.subr.mxu0 0.0
        %3448 = vmatpush1.msra.mxu0 0.0
        %3449 = vmatprep.subr.mxu0 0.0
        %3450 = vmatpush1.msra.mxu0 0.0
        %3451 = vmatprep.subr.mxu0 0.0
        %3452 = vmatpush1.msra.mxu0 0.0
        %3453 = vmatprep.subr.mxu0 0.0
        %3454 = vmatpush1.msra.mxu0 0.0
        %3455 = vmatprep.subr.mxu0 0.0
        %3456 = vmatpush1.msra.mxu0 0.0
        %3457 = vmatprep.subr.mxu0 0.0
        %3458 = vmatpush1.msra.mxu0 0.0
        %3459 = vmatprep.subr.mxu0 0.0
        %3460 = vmatpush1.msra.mxu0 0.0
        %3461 = vmatprep.subr.mxu0 0.0
        %3462 = vmatpush1.msra.mxu0 0.0
        %3463 = vmatprep.subr.mxu0 0.0
        %3464 = vmatpush1.msra.mxu0 0.0
        %3465 = vmatprep.subr.mxu0 0.0
        %3466 = vmatpush1.msra.mxu0 0.0
        %3467 = vmatprep.subr.mxu0 0.0
        %3468 = vmatpush1.msra.mxu0 0.0
        %3469 = vmatprep.subr.mxu0 0.0
        %3470 = vmatpush1.msra.mxu0 0.0
        %3471 = vmatprep.subr.mxu0 0.0
        %3472 = vmatpush1.msra.mxu0 0.0
        %3473 = vmatprep.subr.mxu0 0.0
        %3474 = vmatpush1.msra.mxu0 0.0
        %3475 = vmatprep.subr.mxu0 0.0
        %3476 = vmatpush1.msra.mxu0 0.0
        %3477 = vmatprep.subr.mxu0 0.0
        %3478 = vmatpush1.msra.mxu0 0.0
        %3479 = vmatprep.subr.mxu0 0.0
        %3480 = vmatpush1.msra.mxu0 0.0
        %3481 = vmatprep.subr.mxu0 0.0
        %3482 = vmatpush1.msra.mxu0 0.0
        %3483 = vmatprep.subr.mxu0 0.0
        %3484 = vmatpush1.msra.mxu0 0.0
        %3485 = vmatprep.subr.mxu0 0.0
        %3486 = vmatpush1.msra.mxu0 0.0
        %3487 = vmatprep.subr.mxu0 0.0
        %3488 = vmatpush1.msra.mxu0 0.0
        %3489 = vmatprep.subr.mxu0 0.0
        %3490 = vmatpush1.msra.mxu0 0.0
        %3491 = vmatprep.subr.mxu0 0.0
        %3492 = vmatpush1.msra.mxu0 0.0
        %3493 = vmatprep.subr.mxu0 0.0
        %3494 = vmatpush1.msra.mxu0 0.0
        %3495 = vmatprep.subr.mxu0 0.0
        %3496 = vmatpush1.msra.mxu0 0.0
        %3497 = vmatprep.subr.mxu0 0.0
        %3498 = vmatpush1.msra.mxu0 0.0
        %3499 = vmatprep.subr.mxu0 0.0
        %3500 = vmatpush1.msra.mxu0 0.0
        %3501 = vmatprep.subr.mxu0 0.0
        %3502 = vmatpush1.msra.mxu0 0.0
        %3503 = vmatprep.mubr.f32.mxu0 0.0
        %3504 = vmatmul.mubr.f32.gmra.mrb[0].mxu0 %v3364
        %v3505 = vpop.f32.mrb[0].mxu0
        %v3506 = vadd.f32 0.0, %v3505
        %v3507 = vpop.f32.mrb[0].mxu0
        %3508 = vmatprep.mubr.f32.mxu0 0.0
        %3509 = vmatmul.mubr.f32.gmra.mrb[0].mxu0 %v3366
        %v3510 = vpop.f32.mrb[0].mxu0
        %v3511 = vadd.f32 0.0, %v3510
        %v3512 = vpop.f32.mrb[0].mxu0
        %3513 = vmatprep.mubr.f32.mxu0 0.0
        %3514 = vmatmul.mubr.f32.gmra.mrb[0].mxu0 %v3368
        %v3515 = vpop.f32.mrb[0].mxu0
        %v3516 = vadd.f32 0.0, %v3515
        %v3517 = vpop.f32.mrb[0].mxu0
        %3518 = vmatprep.mubr.f32.mxu0 0.0
        %3519 = vmatmul.mubr.f32.gmra.mrb[0].mxu0 %v3370
        %v3520 = vpop.f32.mrb[0].mxu0
        %v3521 = vadd.f32 0.0, %v3520
        %v3522 = vpop.f32.mrb[0].mxu0
        %3523 = vmatprep.mubr.f32.mxu0 0.0
        %3524 = vmatmul.mubr.f32.gmra.mrb[0].mxu0 %v3372
        %v3525 = vpop.f32.mrb[0].mxu0
        %v3526 = vadd.f32 0.0, %v3525
        %v3527 = vpop.f32.mrb[0].mxu0
        %3528 = vmatprep.mubr.f32.mxu0 0.0
        %3529 = vmatmul.mubr.f32.gmra.mrb[0].mxu0 %v3374
        %v3530 = vpop.f32.mrb[0].mxu0
        %v3531 = vadd.f32 0.0, %v3530
        %v3532 = vpop.f32.mrb[0].mxu0
        %3533 = vmatprep.mubr.f32.mxu0 0.0
        %3534 = vmatmul.mubr.f32.gmra.mrb[0].mxu0 %v3376
        %v3535 = vpop.f32.mrb[0].mxu0
        %v3536 = vadd.f32 0.0, %v3535
        %v3537 = vpop.f32.mrb[0].mxu0
        %3538 = vmatprep.mubr.f32.mxu0 0.0
        %3539 = vmatmul.mubr.f32.gmra.mrb[0].mxu0 %v3378
        %v3540 = vpop.f32.mrb[0].mxu0
        %v3541 = vadd.f32 0.0, %v3540
        %v3542 = vpop.f32.mrb[0].mxu0
        %3543 = vmatprep.mubr.f32.mxu0 0.0
        %3544 = vmatmul.mubr.f32.gmra.mrb[0].mxu0 %v3380
        %v3545 = vpop.f32.mrb[0].mxu0
        %v3546 = vadd.f32 0.0, %v3545
        %v3547 = vpop.f32.mrb[0].mxu0
        %3548 = vmatprep.mubr.f32.mxu0 0.0
        %3549 = vmatmul.mubr.f32.gmra.mrb[0].mxu0 %v3382
        %v3550 = vpop.f32.mrb[0].mxu0
        %v3551 = vadd.f32 0.0, %v3550
        %v3552 = vpop.f32.mrb[0].mxu0
        %3553 = vmatprep.mubr.f32.mxu0 0.0
        %3554 = vmatmul.mubr.f32.gmra.mrb[0].mxu0 %v3384
        %v3555 = vpop.f32.mrb[0].mxu0
        %v3556 = vadd.f32 0.0, %v3555
        %v3557 = vpop.f32.mrb[0].mxu0
        %3558 = vmatprep.mubr.f32.mxu0 0.0
        %3559 = vmatmul.mubr.f32.gmra.mrb[0].mxu0 %v3386
        %v3560 = vpop.f32.mrb[0].mxu0
        %v3561 = vadd.f32 0.0, %v3560
        %v3562 = vpop.f32.mrb[0].mxu0
        %3563 = vmatprep.mubr.f32.mxu0 0.0
        %3564 = vmatmul.mubr.f32.gmra.mrb[0].mxu0 %v3388
        %v3565 = vpop.f32.mrb[0].mxu0
        %v3566 = vadd.f32 0.0, %v3565
        %v3567 = vpop.f32.mrb[0].mxu0
        %3568 = vmatprep.mubr.f32.mxu0 0.0
        %3569 = vmatmul.mubr.f32.gmra.mrb[0].mxu0 %v3390
        %v3570 = vpop.f32.mrb[0].mxu0
        %v3571 = vadd.f32 0.0, %v3570
        %v3572 = vpop.f32.mrb[0].mxu0
        %3573 = vmatprep.mubr.f32.mxu0 0.0
        %3574 = vmatmul.mubr.f32.gmra.mrb[0].mxu0 %v3392
        %v3575 = vpop.f32.mrb[0].mxu0
        %v3576 = vadd.f32 0.0, %v3575
        %v3577 = vpop.f32.mrb[0].mxu0
        %3578 = vmatprep.mubr.f32.mxu0 0.0
        %3579 = vmatmul.mubr.f32.gmra.mrb[0].mxu0 %v3394
        %v3580 = vpop.f32.mrb[0].mxu0
        %v3581 = vadd.f32 0.0, %v3580
        %v3582 = vpop.f32.mrb[0].mxu0
        %3583 = vmatprep.mubr.f32.mxu0 0.0
        %3584 = vmatmul.mubr.f32.gmra.mrb[0].mxu0 %v3396
        %v3585 = vpop.f32.mrb[0].mxu0
        %v3586 = vadd.f32 0.0, %v3585
        %v3587 = vpop.f32.mrb[0].mxu0
        %3588 = vmatprep.mubr.f32.mxu0 0.0
        %3589 = vmatmul.mubr.f32.gmra.mrb[0].mxu0 %v3398
        %v3590 = vpop.f32.mrb[0].mxu0
        %v3591 = vadd.f32 0.0, %v3590
        %v3592 = vpop.f32.mrb[0].mxu0
        %3593 = vmatprep.mubr.f32.mxu0 0.0
        %3594 = vmatmul.mubr.f32.gmra.mrb[0].mxu0 %v3400
        %v3595 = vpop.f32.mrb[0].mxu0
        %v3596 = vadd.f32 0.0, %v3595
        %v3597 = vpop.f32.mrb[0].mxu0
        %3598 = vmatprep.mubr.f32.mxu0 0.0
        %3599 = vmatmul.mubr.f32.gmra.mrb[0].mxu0 %v3402
        %v3600 = vpop.f32.mrb[0].mxu0
        %v3601 = vadd.f32 0.0, %v3600
        %v3602 = vpop.f32.mrb[0].mxu0
        %3603 = vmatprep.mubr.f32.mxu0 0.0
        %3604 = vmatmul.mubr.f32.gmra.mrb[0].mxu0 %v3404
        %v3605 = vpop.f32.mrb[0].mxu0
        %v3606 = vadd.f32 0.0, %v3605
        %v3607 = vpop.f32.mrb[0].mxu0
        %3608 = vmatprep.mubr.f32.mxu0 0.0
        %3609 = vmatmul.mubr.f32.gmra.mrb[0].mxu0 %v3406
        %v3610 = vpop.f32.mrb[0].mxu0
        %v3611 = vadd.f32 0.0, %v3610
        %v3612 = vpop.f32.mrb[0].mxu0
        %3613 = vmatprep.mubr.f32.mxu0 0.0
        %3614 = vmatmul.mubr.f32.gmra.mrb[0].mxu0 %v3408
        %v3615 = vpop.f32.mrb[0].mxu0
        %v3616 = vadd.f32 0.0, %v3615
        %v3617 = vpop.f32.mrb[0].mxu0
        %3618 = vmatprep.mubr.f32.mxu0 0.0
        %3619 = vmatmul.mubr.f32.gmra.mrb[0].mxu0 %v3410
        %v3620 = vpop.f32.mrb[0].mxu0
        %v3621 = vadd.f32 0.0, %v3620
        %v3622 = vpop.f32.mrb[0].mxu0
        %3623 = vmatprep.mubr.f32.mxu0 0.0
        %3624 = vmatmul.mubr.f32.gmra.mrb[0].mxu0 %v3412
        %v3625 = vpop.f32.mrb[0].mxu0
        %v3626 = vadd.f32 0.0, %v3625
        %v3627 = vpop.f32.mrb[0].mxu0
        %3628 = vmatprep.mubr.f32.mxu0 0.0
        %3629 = vmatmul.mubr.f32.gmra.mrb[0].mxu0 %v3414
        %v3630 = vpop.f32.mrb[0].mxu0
        %v3631 = vadd.f32 0.0, %v3630
        %v3632 = vpop.f32.mrb[0].mxu0
        %3633 = vmatprep.mubr.f32.mxu0 0.0
        %3634 = vmatmul.mubr.f32.gmra.mrb[0].mxu0 %v3416
        %v3635 = vpop.f32.mrb[0].mxu0
        %v3636 = vadd.f32 0.0, %v3635
        %v3637 = vpop.f32.mrb[0].mxu0
        %3638 = vmatprep.mubr.f32.mxu0 0.0
        %3639 = vmatmul.mubr.f32.gmra.mrb[0].mxu0 %v3418
        %v3640 = vpop.f32.mrb[0].mxu0
        %v3641 = vadd.f32 0.0, %v3640
        %v3642 = vpop.f32.mrb[0].mxu0
        %3643 = vmatprep.mubr.f32.mxu0 0.0
        %3644 = vmatmul.mubr.f32.gmra.mrb[0].mxu0 %v3420
        %v3645 = vpop.f32.mrb[0].mxu0
        %v3646 = vadd.f32 0.0, %v3645
        %v3647 = vpop.f32.mrb[0].mxu0
        %3648 = vmatprep.mubr.f32.mxu0 0.0
        %3649 = vmatmul.mubr.f32.gmra.mrb[0].mxu0 %v3422
        %v3650 = vpop.f32.mrb[0].mxu0
        %v3651 = vadd.f32 0.0, %v3650
        %v3652 = vpop.f32.mrb[0].mxu0
        %3653 = vmatprep.mubr.f32.mxu0 0.0
        %3654 = vmatmul.mubr.f32.gmra.mrb[0].mxu0 %v3424
        %v3655 = vpop.f32.mrb[0].mxu0
        %v3656 = vadd.f32 0.0, %v3655
        %v3657 = vpop.f32.mrb[0].mxu0
        %3658 = vmatprep.mubr.f32.mxu0 0.0
        %3659 = vmatmul.mubr.f32.gmra.mrb[0].mxu0 %v3426
        %v3660 = vpop.f32.mrb[0].mxu0
        %v3661 = vadd.f32 0.0, %v3660
        %v3662 = vpop.f32.mrb[0].mxu0
        %3663 = vmatprep.mubr.f32.mxu0 0.0
        %3664 = vmatmul.mubr.f32.gmra.mrb[0].mxu0 %v3428
        %v3665 = vpop.f32.mrb[0].mxu0
        %v3666 = vadd.f32 0.0, %v3665
        %v3667 = vpop.f32.mrb[0].mxu0
        %3668 = vmatprep.mubr.f32.mxu0 0.0
        %3669 = vmatmul.mubr.f32.gmra.mrb[0].mxu0 %v3430
        %v3670 = vpop.f32.mrb[0].mxu0
        %v3671 = vadd.f32 0.0, %v3670
        %v3672 = vpop.f32.mrb[0].mxu0
        %3673 = vmatprep.mubr.f32.mxu0 0.0
        %3674 = vmatmul.mubr.f32.gmra.mrb[0].mxu0 %v3432
        %v3675 = vpop.f32.mrb[0].mxu0
        %v3676 = vadd.f32 0.0, %v3675
        %v3677 = vpop.f32.mrb[0].mxu0
        %3678 = vmatprep.mubr.f32.mxu0 0.0
        %3679 = vmatmul.mubr.f32.gmra.mrb[0].mxu0 %v3434
        %v3680 = vpop.f32.mrb[0].mxu0
        %v3681 = vadd.f32 0.0, %v3680
        %v3682 = vpop.f32.mrb[0].mxu0
        %3683 = vdwg.mxu0
        %v3684 = vadd.f32 %v3254, %v3506
        %v3685 = vadd.f32 %v3255, %v3511
        %v3686 = vadd.f32 %v3256, %v3516
        %v3687 = vadd.f32 %v3257, %v3521
        %v3688 = vadd.f32 %v3258, %v3526
        %v3689 = vadd.f32 %v3259, %v3531
        %v3690 = vadd.f32 %v3260, %v3536
        %v3691 = vadd.f32 %v3261, %v3541
        %v3692 = vadd.f32 %v3262, %v3546
        %v3693 = vadd.f32 %v3263, %v3551
        %v3694 = vadd.f32 %v3264, %v3556
        %v3695 = vadd.f32 %v3265, %v3561
        %v3696 = vadd.f32 %v3266, %v3566
        %v3697 = vadd.f32 %v3267, %v3571
        %v3698 = vadd.f32 %v3268, %v3576
        %v3699 = vadd.f32 %v3269, %v3581
        %v3700 = vadd.f32 %v3270, %v3586
        %v3701 = vadd.f32 %v3271, %v3591
        %v3702 = vadd.f32 %v3272, %v3596
        %v3703 = vadd.f32 %v3273, %v3601
        %v3704 = vadd.f32 %v3274, %v3606
        %v3705 = vadd.f32 %v3275, %v3611
        %v3706 = vadd.f32 %v3276, %v3616
        %v3707 = vadd.f32 %v3277, %v3621
        %v3708 = vadd.f32 %v3278, %v3626
        %v3709 = vadd.f32 %v3279, %v3631
        %v3710 = vadd.f32 %v3280, %v3636
        %v3711 = vadd.f32 %v3281, %v3641
        %v3712 = vadd.f32 %v3282, %v3646
        %v3713 = vadd.f32 %v3283, %v3651
        %v3714 = vadd.f32 %v3284, %v3656
        %v3715 = vadd.f32 %v3285, %v3661
        %v3716 = vadd.f32 %v3286, %v3666
        %v3717 = vadd.f32 %v3287, %v3671
        %v3718 = vadd.f32 %v3288, %v3676
        %v3719 = vadd.f32 %v3289, %v3681
        %v3720 = vld [vmem:[%s2] sm:$0x1]
        %v3722 = vlaneseq
        %v3723 = vshrl.u32 %v3722, 7
        %v3724 = vsub.s32 0, %v3723
        %v3725 = vrot.slane %v3720, %v3724
        %v3727 = vadd.f32 %v3684, %v3725
        %v3728 = vadd.f32 %v3685, %v3725
        %v3729 = vadd.f32 %v3686, %v3725
        %v3730 = vadd.f32 %v3687, %v3725
        %v3731 = vadd.f32 %v3688, %v3725
        %v3732 = vadd.f32 %v3689, %v3725
        %v3733 = vadd.f32 %v3690, %v3725
        %v3734 = vadd.f32 %v3691, %v3725
        %v3735 = vadd.f32 %v3692, %v3725
        %v3736 = vadd.f32 %v3693, %v3725
        %v3737 = vadd.f32 %v3694, %v3725
        %v3738 = vadd.f32 %v3695, %v3725
        %v3739 = vadd.f32 %v3696, %v3725
        %v3740 = vadd.f32 %v3697, %v3725
        %v3741 = vadd.f32 %v3698, %v3725
        %v3742 = vadd.f32 %v3699, %v3725
        %v3743 = vadd.f32 %v3700, %v3725
        %v3744 = vadd.f32 %v3701, %v3725
        %v3745 = vadd.f32 %v3702, %v3725
        %v3746 = vadd.f32 %v3703, %v3725
        %v3747 = vadd.f32 %v3704, %v3725
        %v3748 = vadd.f32 %v3705, %v3725
        %v3749 = vadd.f32 %v3706, %v3725
        %v3750 = vadd.f32 %v3707, %v3725
        %v3751 = vadd.f32 %v3708, %v3725
        %v3752 = vadd.f32 %v3709, %v3725
        %v3753 = vadd.f32 %v3710, %v3725
        %v3754 = vadd.f32 %v3711, %v3725
        %v3755 = vadd.f32 %v3712, %v3725
        %v3756 = vadd.f32 %v3713, %v3725
        %v3757 = vadd.f32 %v3714, %v3725
        %v3758 = vadd.f32 %v3715, %v3725
        %v3759 = vadd.f32 %v3716, %v3725
        %v3760 = vadd.f32 %v3717, %v3725
        %v3761 = vadd.f32 %v3718, %v3725
        %v3762 = vadd.f32 %v3719, %v3725
        %v3799 = vcombine.high %v3727, %v3727
        %v3801 = vunpack.c.l.s4 1983009808
        %v3802 = vunpack.c.0.s8 %v3801
        %v3803 = vlaneseq
        %v3804 = vshrl.u32 %v3803, 7
        %v3805 = vsub.s32 %v3802, %v3804
        %v3806 = vrot.slane %v3727, %v3805
        %v3808 = vunpack.c.l.s4 1983009808
        %v3809 = vunpack.c.0.s8 %v3808
        %v3810 = vlaneseq
        %v3811 = vshrl.u32 %v3810, 7
        %v3812 = vsub.s32 %v3809, %v3811
        %v3813 = vrot.slane %v3799, %v3812
        %v3814 = vcombine.high %v3806, %v3806
        %v3815 = vcombine.high %v3813, %v3813
        %v3816 = vcombine.high %v3728, %v3728
        %v3818 = vunpack.c.l.s4 1983009808
        %v3819 = vunpack.c.0.s8 %v3818
        %v3820 = vlaneseq
        %v3821 = vshrl.u32 %v3820, 7
        %v3822 = vsub.s32 %v3819, %v3821
        %v3823 = vrot.slane %v3728, %v3822
        %v3825 = vunpack.c.l.s4 1983009808
        %v3826 = vunpack.c.0.s8 %v3825
        %v3827 = vlaneseq
        %v3828 = vshrl.u32 %v3827, 7
        %v3829 = vsub.s32 %v3826, %v3828
        %v3830 = vrot.slane %v3816, %v3829
        %v3831 = vcombine.high %v3823, %v3823
        %v3832 = vcombine.high %v3830, %v3830
        %v3833 = vcombine.high %v3729, %v3729
        %v3835 = vunpack.c.l.s4 1983009808
        %v3836 = vunpack.c.0.s8 %v3835
        %v3837 = vlaneseq
        %v3838 = vshrl.u32 %v3837, 7
        %v3839 = vsub.s32 %v3836, %v3838
        %v3840 = vrot.slane %v3729, %v3839
        %v3842 = vunpack.c.l.s4 1983009808
        %v3843 = vunpack.c.0.s8 %v3842
        %v3844 = vlaneseq
        %v3845 = vshrl.u32 %v3844, 7
        %v3846 = vsub.s32 %v3843, %v3845
        %v3847 = vrot.slane %v3833, %v3846
        %v3848 = vcombine.high %v3840, %v3840
        %v3849 = vcombine.high %v3847, %v3847
        %v3850 = vcombine.high %v3730, %v3730
        %v3852 = vunpack.c.l.s4 1983009808
        %v3853 = vunpack.c.0.s8 %v3852
        %v3854 = vlaneseq
        %v3855 = vshrl.u32 %v3854, 7
        %v3856 = vsub.s32 %v3853, %v3855
        %v3857 = vrot.slane %v3730, %v3856
        %v3859 = vunpack.c.l.s4 1983009808
        %v3860 = vunpack.c.0.s8 %v3859
        %v3861 = vlaneseq
        %v3862 = vshrl.u32 %v3861, 7
        %v3863 = vsub.s32 %v3860, %v3862
        %v3864 = vrot.slane %v3850, %v3863
        %v3865 = vcombine.high %v3857, %v3857
        %v3866 = vcombine.high %v3864, %v3864
        %v3867 = vcombine.high %v3731, %v3731
        %v3869 = vunpack.c.l.s4 1983009808
        %v3870 = vunpack.c.0.s8 %v3869
        %v3871 = vlaneseq
        %v3872 = vshrl.u32 %v3871, 7
        %v3873 = vsub.s32 %v3870, %v3872
        %v3874 = vrot.slane %v3731, %v3873
        %v3876 = vunpack.c.l.s4 1983009808
        %v3877 = vunpack.c.0.s8 %v3876
        %v3878 = vlaneseq
        %v3879 = vshrl.u32 %v3878, 7
        %v3880 = vsub.s32 %v3877, %v3879
        %v3881 = vrot.slane %v3867, %v3880
        %v3882 = vcombine.high %v3881, %v3881
        %v3883 = vcombine.high %v3732, %v3732
        %v3885 = vunpack.c.l.s4 1983009808
        %v3886 = vunpack.c.0.s8 %v3885
        %v3887 = vlaneseq
        %v3888 = vshrl.u32 %v3887, 7
        %v3889 = vsub.s32 %v3886, %v3888
        %v3890 = vrot.slane %v3732, %v3889
        %v3892 = vunpack.c.l.s4 1983009808
        %v3893 = vunpack.c.0.s8 %v3892
        %v3894 = vlaneseq
        %v3895 = vshrl.u32 %v3894, 7
        %v3896 = vsub.s32 %v3893, %v3895
        %v3897 = vrot.slane %v3883, %v3896
        %v3898 = vcombine.high %v3890, %v3890
        %v3899 = vcombine.high %v3897, %v3897
        %v3900 = vcombine.high %v3733, %v3733
        %v3902 = vunpack.c.l.s4 1983009808
        %v3903 = vunpack.c.0.s8 %v3902
        %v3904 = vlaneseq
        %v3905 = vshrl.u32 %v3904, 7
        %v3906 = vsub.s32 %v3903, %v3905
        %v3907 = vrot.slane %v3733, %v3906
        %v3909 = vunpack.c.l.s4 1983009808
        %v3910 = vunpack.c.0.s8 %v3909
        %v3911 = vlaneseq
        %v3912 = vshrl.u32 %v3911, 7
        %v3913 = vsub.s32 %v3910, %v3912
        %v3914 = vrot.slane %v3900, %v3913
        %v3915 = vcombine.high %v3907, %v3907
        %v3916 = vcombine.high %v3914, %v3914
        %v3917 = vcombine.high %v3734, %v3734
        %v3919 = vunpack.c.l.s4 1983009808
        %v3920 = vunpack.c.0.s8 %v3919
        %v3921 = vlaneseq
        %v3922 = vshrl.u32 %v3921, 7
        %v3923 = vsub.s32 %v3920, %v3922
        %v3924 = vrot.slane %v3734, %v3923
        %v3926 = vunpack.c.l.s4 1983009808
        %v3927 = vunpack.c.0.s8 %v3926
        %v3928 = vlaneseq
        %v3929 = vshrl.u32 %v3928, 7
        %v3930 = vsub.s32 %v3927, %v3929
        %v3931 = vrot.slane %v3917, %v3930
        %v3932 = vcombine.high %v3924, %v3924
        %v3933 = vcombine.high %v3931, %v3931
        %v3934 = vcombine.high %v3735, %v3735
        %v3936 = vunpack.c.l.s4 1983009808
        %v3937 = vunpack.c.0.s8 %v3936
        %v3938 = vlaneseq
        %v3939 = vshrl.u32 %v3938, 7
        %v3940 = vsub.s32 %v3937, %v3939
        %v3941 = vrot.slane %v3735, %v3940
        %v3943 = vunpack.c.l.s4 1983009808
        %v3944 = vunpack.c.0.s8 %v3943
        %v3945 = vlaneseq
        %v3946 = vshrl.u32 %v3945, 7
        %v3947 = vsub.s32 %v3944, %v3946
        %v3948 = vrot.slane %v3934, %v3947
        %v3949 = vcombine.high %v3941, %v3941
        %v3950 = vcombine.high %v3736, %v3736
        %v3952 = vunpack.c.l.s4 1983009808
        %v3953 = vunpack.c.0.s8 %v3952
        %v3954 = vlaneseq
        %v3955 = vshrl.u32 %v3954, 7
        %v3956 = vsub.s32 %v3953, %v3955
        %v3957 = vrot.slane %v3736, %v3956
        %v3959 = vunpack.c.l.s4 1983009808
        %v3960 = vunpack.c.0.s8 %v3959
        %v3961 = vlaneseq
        %v3962 = vshrl.u32 %v3961, 7
        %v3963 = vsub.s32 %v3960, %v3962
        %v3964 = vrot.slane %v3950, %v3963
        %v3965 = vcombine.high %v3957, %v3957
        %v3966 = vcombine.high %v3964, %v3964
        %v3967 = vcombine.high %v3737, %v3737
        %v3969 = vunpack.c.l.s4 1983009808
        %v3970 = vunpack.c.0.s8 %v3969
        %v3971 = vlaneseq
        %v3972 = vshrl.u32 %v3971, 7
        %v3973 = vsub.s32 %v3970, %v3972
        %v3974 = vrot.slane %v3737, %v3973
        %v3976 = vunpack.c.l.s4 1983009808
        %v3977 = vunpack.c.0.s8 %v3976
        %v3978 = vlaneseq
        %v3979 = vshrl.u32 %v3978, 7
        %v3980 = vsub.s32 %v3977, %v3979
        %v3981 = vrot.slane %v3967, %v3980
        %v3982 = vcombine.high %v3974, %v3974
        %v3983 = vcombine.high %v3981, %v3981
        %v3984 = vcombine.high %v3738, %v3738
        %v3986 = vunpack.c.l.s4 1983009808
        %v3987 = vunpack.c.0.s8 %v3986
        %v3988 = vlaneseq
        %v3989 = vshrl.u32 %v3988, 7
        %v3990 = vsub.s32 %v3987, %v3989
        %v3991 = vrot.slane %v3738, %v3990
        %v3993 = vunpack.c.l.s4 1983009808
        %v3994 = vunpack.c.0.s8 %v3993
        %v3995 = vlaneseq
        %v3996 = vshrl.u32 %v3995, 7
        %v3997 = vsub.s32 %v3994, %v3996
        %v3998 = vrot.slane %v3984, %v3997
        %v3999 = vcombine.high %v3991, %v3991
        %v4000 = vcombine.high %v3998, %v3998
        %v4001 = vcombine.high %v3739, %v3739
        %v4003 = vunpack.c.l.s4 1983009808
        %v4004 = vunpack.c.0.s8 %v4003
        %v4005 = vlaneseq
        %v4006 = vshrl.u32 %v4005, 7
        %v4007 = vsub.s32 %v4004, %v4006
        %v4008 = vrot.slane %v3739, %v4007
        %v4010 = vunpack.c.l.s4 1983009808
        %v4011 = vunpack.c.0.s8 %v4010
        %v4012 = vlaneseq
        %v4013 = vshrl.u32 %v4012, 7
        %v4014 = vsub.s32 %v4011, %v4013
        %v4015 = vrot.slane %v4001, %v4014
        %v4016 = vcombine.high %v4008, %v4008
        %v4017 = vcombine.high %v4015, %v4015
        %v4018 = vcombine.high %v3740, %v3740
        %v4020 = vunpack.c.l.s4 1983009808
        %v4021 = vunpack.c.0.s8 %v4020
        %v4022 = vlaneseq
        %v4023 = vshrl.u32 %v4022, 7
        %v4024 = vsub.s32 %v4021, %v4023
        %v4025 = vrot.slane %v3740, %v4024
        %v4027 = vunpack.c.l.s4 1983009808
        %v4028 = vunpack.c.0.s8 %v4027
        %v4029 = vlaneseq
        %v4030 = vshrl.u32 %v4029, 7
        %v4031 = vsub.s32 %v4028, %v4030
        %v4032 = vrot.slane %v4018, %v4031
        %v4033 = vcombine.high %v4032, %v4032
        %v4034 = vcombine.high %v3741, %v3741
        %v4036 = vunpack.c.l.s4 1983009808
        %v4037 = vunpack.c.0.s8 %v4036
        %v4038 = vlaneseq
        %v4039 = vshrl.u32 %v4038, 7
        %v4040 = vsub.s32 %v4037, %v4039
        %v4041 = vrot.slane %v3741, %v4040
        %v4043 = vunpack.c.l.s4 1983009808
        %v4044 = vunpack.c.0.s8 %v4043
        %v4045 = vlaneseq
        %v4046 = vshrl.u32 %v4045, 7
        %v4047 = vsub.s32 %v4044, %v4046
        %v4048 = vrot.slane %v4034, %v4047
        %v4049 = vcombine.high %v4041, %v4041
        %v4050 = vcombine.high %v4048, %v4048
        %v4051 = vcombine.high %v3742, %v3742
        %v4053 = vunpack.c.l.s4 1983009808
        %v4054 = vunpack.c.0.s8 %v4053
        %v4055 = vlaneseq
        %v4056 = vshrl.u32 %v4055, 7
        %v4057 = vsub.s32 %v4054, %v4056
        %v4058 = vrot.slane %v3742, %v4057
        %v4060 = vunpack.c.l.s4 1983009808
        %v4061 = vunpack.c.0.s8 %v4060
        %v4062 = vlaneseq
        %v4063 = vshrl.u32 %v4062, 7
        %v4064 = vsub.s32 %v4061, %v4063
        %v4065 = vrot.slane %v4051, %v4064
        %v4066 = vcombine.high %v4058, %v4058
        %v4067 = vcombine.high %v4065, %v4065
        %v4068 = vcombine.high %v3743, %v3743
        %v4070 = vunpack.c.l.s4 1983009808
        %v4071 = vunpack.c.0.s8 %v4070
        %v4072 = vlaneseq
        %v4073 = vshrl.u32 %v4072, 7
        %v4074 = vsub.s32 %v4071, %v4073
        %v4075 = vrot.slane %v3743, %v4074
        %v4077 = vunpack.c.l.s4 1983009808
        %v4078 = vunpack.c.0.s8 %v4077
        %v4079 = vlaneseq
        %v4080 = vshrl.u32 %v4079, 7
        %v4081 = vsub.s32 %v4078, %v4080
        %v4082 = vrot.slane %v4068, %v4081
        %v4083 = vcombine.high %v4075, %v4075
        %v4084 = vcombine.high %v4082, %v4082
        %v4085 = vcombine.high %v3744, %v3744
        %v4087 = vunpack.c.l.s4 1983009808
        %v4088 = vunpack.c.0.s8 %v4087
        %v4089 = vlaneseq
        %v4090 = vshrl.u32 %v4089, 7
        %v4091 = vsub.s32 %v4088, %v4090
        %v4092 = vrot.slane %v3744, %v4091
        %v4094 = vunpack.c.l.s4 1983009808
        %v4095 = vunpack.c.0.s8 %v4094
        %v4096 = vlaneseq
        %v4097 = vshrl.u32 %v4096, 7
        %v4098 = vsub.s32 %v4095, %v4097
        %v4099 = vrot.slane %v4085, %v4098
        %v4100 = vcombine.high %v4092, %v4092
        %v4101 = vcombine.high %v3745, %v3745
        %v4103 = vunpack.c.l.s4 1983009808
        %v4104 = vunpack.c.0.s8 %v4103
        %v4105 = vlaneseq
        %v4106 = vshrl.u32 %v4105, 7
        %v4107 = vsub.s32 %v4104, %v4106
        %v4108 = vrot.slane %v3745, %v4107
        %v4110 = vunpack.c.l.s4 1983009808
        %v4111 = vunpack.c.0.s8 %v4110
        %v4112 = vlaneseq
        %v4113 = vshrl.u32 %v4112, 7
        %v4114 = vsub.s32 %v4111, %v4113
        %v4115 = vrot.slane %v4101, %v4114
        %v4116 = vcombine.high %v4108, %v4108
        %v4117 = vcombine.high %v4115, %v4115
        %v4118 = vcombine.high %v3746, %v3746
        %v4120 = vunpack.c.l.s4 1983009808
        %v4121 = vunpack.c.0.s8 %v4120
        %v4122 = vlaneseq
        %v4123 = vshrl.u32 %v4122, 7
        %v4124 = vsub.s32 %v4121, %v4123
        %v4125 = vrot.slane %v3746, %v4124
        %v4127 = vunpack.c.l.s4 1983009808
        %v4128 = vunpack.c.0.s8 %v4127
        %v4129 = vlaneseq
        %v4130 = vshrl.u32 %v4129, 7
        %v4131 = vsub.s32 %v4128, %v4130
        %v4132 = vrot.slane %v4118, %v4131
        %v4133 = vcombine.high %v4125, %v4125
        %v4134 = vcombine.high %v4132, %v4132
        %v4135 = vcombine.high %v3747, %v3747
        %v4137 = vunpack.c.l.s4 1983009808
        %v4138 = vunpack.c.0.s8 %v4137
        %v4139 = vlaneseq
        %v4140 = vshrl.u32 %v4139, 7
        %v4141 = vsub.s32 %v4138, %v4140
        %v4142 = vrot.slane %v3747, %v4141
        %v4144 = vunpack.c.l.s4 1983009808
        %v4145 = vunpack.c.0.s8 %v4144
        %v4146 = vlaneseq
        %v4147 = vshrl.u32 %v4146, 7
        %v4148 = vsub.s32 %v4145, %v4147
        %v4149 = vrot.slane %v4135, %v4148
        %v4150 = vcombine.high %v4142, %v4142
        %v4151 = vcombine.high %v4149, %v4149
        %v4152 = vcombine.high %v3748, %v3748
        %v4154 = vunpack.c.l.s4 1983009808
        %v4155 = vunpack.c.0.s8 %v4154
        %v4156 = vlaneseq
        %v4157 = vshrl.u32 %v4156, 7
        %v4158 = vsub.s32 %v4155, %v4157
        %v4159 = vrot.slane %v3748, %v4158
        %v4161 = vunpack.c.l.s4 1983009808
        %v4162 = vunpack.c.0.s8 %v4161
        %v4163 = vlaneseq
        %v4164 = vshrl.u32 %v4163, 7
        %v4165 = vsub.s32 %v4162, %v4164
        %v4166 = vrot.slane %v4152, %v4165
        %v4167 = vcombine.high %v4159, %v4159
        %v4168 = vcombine.high %v4166, %v4166
        %v4169 = vcombine.high %v3749, %v3749
        %v4171 = vunpack.c.l.s4 1983009808
        %v4172 = vunpack.c.0.s8 %v4171
        %v4173 = vlaneseq
        %v4174 = vshrl.u32 %v4173, 7
        %v4175 = vsub.s32 %v4172, %v4174
        %v4176 = vrot.slane %v3749, %v4175
        %v4178 = vunpack.c.l.s4 1983009808
        %v4179 = vunpack.c.0.s8 %v4178
        %v4180 = vlaneseq
        %v4181 = vshrl.u32 %v4180, 7
        %v4182 = vsub.s32 %v4179, %v4181
        %v4183 = vrot.slane %v4169, %v4182
        %v4184 = vcombine.high %v4183, %v4183
        %v4185 = vcombine.high %v3750, %v3750
        %v4187 = vunpack.c.l.s4 1983009808
        %v4188 = vunpack.c.0.s8 %v4187
        %v4189 = vlaneseq
        %v4190 = vshrl.u32 %v4189, 7
        %v4191 = vsub.s32 %v4188, %v4190
        %v4192 = vrot.slane %v3750, %v4191
        %v4194 = vunpack.c.l.s4 1983009808
        %v4195 = vunpack.c.0.s8 %v4194
        %v4196 = vlaneseq
        %v4197 = vshrl.u32 %v4196, 7
        %v4198 = vsub.s32 %v4195, %v4197
        %v4199 = vrot.slane %v4185, %v4198
        %v4200 = vcombine.high %v4192, %v4192
        %v4201 = vcombine.high %v4199, %v4199
        %v4202 = vcombine.high %v3751, %v3751
        %v4204 = vunpack.c.l.s4 1983009808
        %v4205 = vunpack.c.0.s8 %v4204
        %v4206 = vlaneseq
        %v4207 = vshrl.u32 %v4206, 7
        %v4208 = vsub.s32 %v4205, %v4207
        %v4209 = vrot.slane %v3751, %v4208
        %v4211 = vunpack.c.l.s4 1983009808
        %v4212 = vunpack.c.0.s8 %v4211
        %v4213 = vlaneseq
        %v4214 = vshrl.u32 %v4213, 7
        %v4215 = vsub.s32 %v4212, %v4214
        %v4216 = vrot.slane %v4202, %v4215
        %v4217 = vcombine.high %v4209, %v4209
        %v4218 = vcombine.high %v4216, %v4216
        %v4219 = vcombine.high %v3752, %v3752
        %v4221 = vunpack.c.l.s4 1983009808
        %v4222 = vunpack.c.0.s8 %v4221
        %v4223 = vlaneseq
        %v4224 = vshrl.u32 %v4223, 7
        %v4225 = vsub.s32 %v4222, %v4224
        %v4226 = vrot.slane %v3752, %v4225
        %v4228 = vunpack.c.l.s4 1983009808
        %v4229 = vunpack.c.0.s8 %v4228
        %v4230 = vlaneseq
        %v4231 = vshrl.u32 %v4230, 7
        %v4232 = vsub.s32 %v4229, %v4231
        %v4233 = vrot.slane %v4219, %v4232
        %v4234 = vcombine.high %v4226, %v4226
        %v4235 = vcombine.high %v4233, %v4233
        %v4236 = vcombine.high %v3753, %v3753
        %v4238 = vunpack.c.l.s4 1983009808
        %v4239 = vunpack.c.0.s8 %v4238
        %v4240 = vlaneseq
        %v4241 = vshrl.u32 %v4240, 7
        %v4242 = vsub.s32 %v4239, %v4241
        %v4243 = vrot.slane %v3753, %v4242
        %v4245 = vunpack.c.l.s4 1983009808
        %v4246 = vunpack.c.0.s8 %v4245
        %v4247 = vlaneseq
        %v4248 = vshrl.u32 %v4247, 7
        %v4249 = vsub.s32 %v4246, %v4248
        %v4250 = vrot.slane %v4236, %v4249
        %v4251 = vcombine.high %v4243, %v4243
        %v4252 = vcombine.high %v3754, %v3754
        %v4254 = vunpack.c.l.s4 1983009808
        %v4255 = vunpack.c.0.s8 %v4254
        %v4256 = vlaneseq
        %v4257 = vshrl.u32 %v4256, 7
        %v4258 = vsub.s32 %v4255, %v4257
        %v4259 = vrot.slane %v3754, %v4258
        %v4261 = vunpack.c.l.s4 1983009808
        %v4262 = vunpack.c.0.s8 %v4261
        %v4263 = vlaneseq
        %v4264 = vshrl.u32 %v4263, 7
        %v4265 = vsub.s32 %v4262, %v4264
        %v4266 = vrot.slane %v4252, %v4265
        %v4267 = vcombine.high %v4259, %v4259
        %v4268 = vcombine.high %v4266, %v4266
        %v4269 = vcombine.high %v3755, %v3755
        %v4271 = vunpack.c.l.s4 1983009808
        %v4272 = vunpack.c.0.s8 %v4271
        %v4273 = vlaneseq
        %v4274 = vshrl.u32 %v4273, 7
        %v4275 = vsub.s32 %v4272, %v4274
        %v4276 = vrot.slane %v3755, %v4275
        %v4278 = vunpack.c.l.s4 1983009808
        %v4279 = vunpack.c.0.s8 %v4278
        %v4280 = vlaneseq
        %v4281 = vshrl.u32 %v4280, 7
        %v4282 = vsub.s32 %v4279, %v4281
        %v4283 = vrot.slane %v4269, %v4282
        %v4284 = vcombine.high %v4276, %v4276
        %v4285 = vcombine.high %v4283, %v4283
        %v4286 = vcombine.high %v3756, %v3756
        %v4288 = vunpack.c.l.s4 1983009808
        %v4289 = vunpack.c.0.s8 %v4288
        %v4290 = vlaneseq
        %v4291 = vshrl.u32 %v4290, 7
        %v4292 = vsub.s32 %v4289, %v4291
        %v4293 = vrot.slane %v3756, %v4292
        %v4295 = vunpack.c.l.s4 1983009808
        %v4296 = vunpack.c.0.s8 %v4295
        %v4297 = vlaneseq
        %v4298 = vshrl.u32 %v4297, 7
        %v4299 = vsub.s32 %v4296, %v4298
        %v4300 = vrot.slane %v4286, %v4299
        %v4301 = vcombine.high %v4293, %v4293
        %v4302 = vcombine.high %v4300, %v4300
        %v4303 = vcombine.high %v3757, %v3757
        %v4305 = vunpack.c.l.s4 1983009808
        %v4306 = vunpack.c.0.s8 %v4305
        %v4307 = vlaneseq
        %v4308 = vshrl.u32 %v4307, 7
        %v4309 = vsub.s32 %v4306, %v4308
        %v4310 = vrot.slane %v3757, %v4309
        %v4312 = vunpack.c.l.s4 1983009808
        %v4313 = vunpack.c.0.s8 %v4312
        %v4314 = vlaneseq
        %v4315 = vshrl.u32 %v4314, 7
        %v4316 = vsub.s32 %v4313, %v4315
        %v4317 = vrot.slane %v4303, %v4316
        %v4318 = vcombine.high %v4310, %v4310
        %v4319 = vcombine.high %v4317, %v4317
        %v4320 = vcombine.high %v3758, %v3758
        %v4322 = vunpack.c.l.s4 1983009808
        %v4323 = vunpack.c.0.s8 %v4322
        %v4324 = vlaneseq
        %v4325 = vshrl.u32 %v4324, 7
        %v4326 = vsub.s32 %v4323, %v4325
        %v4327 = vrot.slane %v3758, %v4326
        %v4329 = vunpack.c.l.s4 1983009808
        %v4330 = vunpack.c.0.s8 %v4329
        %v4331 = vlaneseq
        %v4332 = vshrl.u32 %v4331, 7
        %v4333 = vsub.s32 %v4330, %v4332
        %v4334 = vrot.slane %v4320, %v4333
        %v4335 = vcombine.high %v4334, %v4334
        %v4336 = vcombine.high %v3759, %v3759
        %v4338 = vunpack.c.l.s4 1983009808
        %v4339 = vunpack.c.0.s8 %v4338
        %v4340 = vlaneseq
        %v4341 = vshrl.u32 %v4340, 7
        %v4342 = vsub.s32 %v4339, %v4341
        %v4343 = vrot.slane %v3759, %v4342
        %v4345 = vunpack.c.l.s4 1983009808
        %v4346 = vunpack.c.0.s8 %v4345
        %v4347 = vlaneseq
        %v4348 = vshrl.u32 %v4347, 7
        %v4349 = vsub.s32 %v4346, %v4348
        %v4350 = vrot.slane %v4336, %v4349
        %v4351 = vcombine.high %v4343, %v4343
        %v4352 = vcombine.high %v4350, %v4350
        %v4353 = vcombine.high %v3760, %v3760
        %v4355 = vunpack.c.l.s4 1983009808
        %v4356 = vunpack.c.0.s8 %v4355
        %v4357 = vlaneseq
        %v4358 = vshrl.u32 %v4357, 7
        %v4359 = vsub.s32 %v4356, %v4358
        %v4360 = vrot.slane %v3760, %v4359
        %v4362 = vunpack.c.l.s4 1983009808
        %v4363 = vunpack.c.0.s8 %v4362
        %v4364 = vlaneseq
        %v4365 = vshrl.u32 %v4364, 7
        %v4366 = vsub.s32 %v4363, %v4365
        %v4367 = vrot.slane %v4353, %v4366
        %v4368 = vcombine.high %v4360, %v4360
        %v4369 = vcombine.high %v4367, %v4367
        %v4370 = vcombine.high %v3761, %v3761
        %v4372 = vunpack.c.l.s4 1983009808
        %v4373 = vunpack.c.0.s8 %v4372
        %v4374 = vlaneseq
        %v4375 = vshrl.u32 %v4374, 7
        %v4376 = vsub.s32 %v4373, %v4375
        %v4377 = vrot.slane %v3761, %v4376
        %v4379 = vunpack.c.l.s4 1983009808
        %v4380 = vunpack.c.0.s8 %v4379
        %v4381 = vlaneseq
        %v4382 = vshrl.u32 %v4381, 7
        %v4383 = vsub.s32 %v4380, %v4382
        %v4384 = vrot.slane %v4370, %v4383
        %v4385 = vcombine.high %v4377, %v4377
        %v4386 = vcombine.high %v4384, %v4384
        %v4387 = vcombine.high %v3762, %v3762
        %v4389 = vunpack.c.l.s4 1983009808
        %v4390 = vunpack.c.0.s8 %v4389
        %v4391 = vlaneseq
        %v4392 = vshrl.u32 %v4391, 7
        %v4393 = vsub.s32 %v4390, %v4392
        %v4394 = vrot.slane %v3762, %v4393
        %v4396 = vunpack.c.l.s4 1983009808
        %v4397 = vunpack.c.0.s8 %v4396
        %v4398 = vlaneseq
        %v4399 = vshrl.u32 %v4398, 7
        %v4400 = vsub.s32 %v4397, %v4399
        %v4401 = vrot.slane %v4387, %v4400
        %v4402 = vcombine.high %v4394, %v4394
        %v4531 = vcombine.low %v3806, %v3848
        %v4533 = vunpack.c.l.s4 1934713408
        %v4534 = vunpack.c.0.s8 %v4533
        %v4535 = vlaneseq
        %v4536 = vshrl.u32 %v4535, 7
        %v4537 = vsub.s32 %v4534, %v4536
        %v4538 = vrot.slane %v4531, %v4537
        %v4539 = vcombine.high %v4538, 0.0
        %v4540 = vcombine.low %v3881, %v3916
        %v4542 = vunpack.c.l.s4 1934713408
        %v4543 = vunpack.c.0.s8 %v4542
        %v4544 = vlaneseq
        %v4545 = vshrl.u32 %v4544, 7
        %v4546 = vsub.s32 %v4543, %v4545
        %v4547 = vrot.slane %v4540, %v4546
        %v4548 = vcombine.high %v4547, 0.0
        %v4549 = vcombine.low %v3957, %v3999
        %v4551 = vunpack.c.l.s4 1934713408
        %v4552 = vunpack.c.0.s8 %v4551
        %v4553 = vlaneseq
        %v4554 = vshrl.u32 %v4553, 7
        %v4555 = vsub.s32 %v4552, %v4554
        %v4556 = vrot.slane %v4549, %v4555
        %v4557 = vcombine.high %v4556, 0.0
        %v4558 = vcombine.low %v4032, %v4067
        %v4560 = vunpack.c.l.s4 1934713408
        %v4561 = vunpack.c.0.s8 %v4560
        %v4562 = vlaneseq
        %v4563 = vshrl.u32 %v4562, 7
        %v4564 = vsub.s32 %v4561, %v4563
        %v4565 = vrot.slane %v4558, %v4564
        %v4566 = vcombine.high %v4565, 0.0
        %v4567 = vcombine.low %v4108, %v4150
        %v4569 = vunpack.c.l.s4 1934713408
        %v4570 = vunpack.c.0.s8 %v4569
        %v4571 = vlaneseq
        %v4572 = vshrl.u32 %v4571, 7
        %v4573 = vsub.s32 %v4570, %v4572
        %v4574 = vrot.slane %v4567, %v4573
        %v4575 = vcombine.high %v4574, 0.0
        %v4576 = vcombine.low %v4183, %v4218
        %v4578 = vunpack.c.l.s4 1934713408
        %v4579 = vunpack.c.0.s8 %v4578
        %v4580 = vlaneseq
        %v4581 = vshrl.u32 %v4580, 7
        %v4582 = vsub.s32 %v4579, %v4581
        %v4583 = vrot.slane %v4576, %v4582
        %v4584 = vcombine.high %v4583, 0.0
        %v4585 = vcombine.low %v4259, %v4301
        %v4587 = vunpack.c.l.s4 1934713408
        %v4588 = vunpack.c.0.s8 %v4587
        %v4589 = vlaneseq
        %v4590 = vshrl.u32 %v4589, 7
        %v4591 = vsub.s32 %v4588, %v4590
        %v4592 = vrot.slane %v4585, %v4591
        %v4593 = vcombine.high %v4592, 0.0
        %v4594 = vcombine.low %v4334, %v4369
        %v4596 = vunpack.c.l.s4 1934713408
        %v4597 = vunpack.c.0.s8 %v4596
        %v4598 = vlaneseq
        %v4599 = vshrl.u32 %v4598, 7
        %v4600 = vsub.s32 %v4597, %v4599
        %v4601 = vrot.slane %v4594, %v4600
        %v4602 = vcombine.high %v4601, 0.0
        %v4603 = vcombine.low %v3814, %v3847
        %v4605 = vunpack.c.l.s4 1934713408
        %v4606 = vunpack.c.0.s8 %v4605
        %v4607 = vlaneseq
        %v4608 = vshrl.u32 %v4607, 7
        %v4609 = vsub.s32 %v4606, %v4608
        %v4610 = vrot.slane %v4603, %v4609
        %v4611 = vcombine.high %v4610, 0.0
        %v4612 = vcombine.low %v3882, %v3924
        %v4614 = vunpack.c.l.s4 1934713408
        %v4615 = vunpack.c.0.s8 %v4614
        %v4616 = vlaneseq
        %v4617 = vshrl.u32 %v4616, 7
        %v4618 = vsub.s32 %v4615, %v4617
        %v4619 = vrot.slane %v4612, %v4618
        %v4620 = vcombine.high %v4619, 0.0
        %v4621 = vcombine.low %v3965, %v3998
        %v4623 = vunpack.c.l.s4 1934713408
        %v4624 = vunpack.c.0.s8 %v4623
        %v4625 = vlaneseq
        %v4626 = vshrl.u32 %v4625, 7
        %v4627 = vsub.s32 %v4624, %v4626
        %v4628 = vrot.slane %v4621, %v4627
        %v4629 = vcombine.high %v4628, 0.0
        %v4630 = vcombine.low %v4033, %v4075
        %v4632 = vunpack.c.l.s4 1934713408
        %v4633 = vunpack.c.0.s8 %v4632
        %v4634 = vlaneseq
        %v4635 = vshrl.u32 %v4634, 7
        %v4636 = vsub.s32 %v4633, %v4635
        %v4637 = vrot.slane %v4630, %v4636
        %v4638 = vcombine.high %v4637, 0.0
        %v4639 = vcombine.low %v4116, %v4149
        %v4641 = vunpack.c.l.s4 1934713408
        %v4642 = vunpack.c.0.s8 %v4641
        %v4643 = vlaneseq
        %v4644 = vshrl.u32 %v4643, 7
        %v4645 = vsub.s32 %v4642, %v4644
        %v4646 = vrot.slane %v4639, %v4645
        %v4647 = vcombine.high %v4646, 0.0
        %v4648 = vcombine.low %v4184, %v4226
        %v4650 = vunpack.c.l.s4 1934713408
        %v4651 = vunpack.c.0.s8 %v4650
        %v4652 = vlaneseq
        %v4653 = vshrl.u32 %v4652, 7
        %v4654 = vsub.s32 %v4651, %v4653
        %v4655 = vrot.slane %v4648, %v4654
        %v4656 = vcombine.high %v4655, 0.0
        %v4657 = vcombine.low %v4267, %v4300
        %v4659 = vunpack.c.l.s4 1934713408
        %v4660 = vunpack.c.0.s8 %v4659
        %v4661 = vlaneseq
        %v4662 = vshrl.u32 %v4661, 7
        %v4663 = vsub.s32 %v4660, %v4662
        %v4664 = vrot.slane %v4657, %v4663
        %v4665 = vcombine.high %v4664, 0.0
        %v4666 = vcombine.low %v4335, %v4377
        %v4668 = vunpack.c.l.s4 1934713408
        %v4669 = vunpack.c.0.s8 %v4668
        %v4670 = vlaneseq
        %v4671 = vshrl.u32 %v4670, 7
        %v4672 = vsub.s32 %v4669, %v4671
        %v4673 = vrot.slane %v4666, %v4672
        %v4674 = vcombine.high %v4673, 0.0
        %v4675 = vcombine.low %v3813, %v3849
        %v4677 = vunpack.c.l.s4 1934713408
        %v4678 = vunpack.c.0.s8 %v4677
        %v4679 = vlaneseq
        %v4680 = vshrl.u32 %v4679, 7
        %v4681 = vsub.s32 %v4678, %v4680
        %v4682 = vrot.slane %v4675, %v4681
        %v4683 = vcombine.high %v4682, 0.0
        %v4684 = vcombine.low %v3890, %v3932
        %v4686 = vunpack.c.l.s4 1934713408
        %v4687 = vunpack.c.0.s8 %v4686
        %v4688 = vlaneseq
        %v4689 = vshrl.u32 %v4688, 7
        %v4690 = vsub.s32 %v4687, %v4689
        %v4691 = vrot.slane %v4684, %v4690
        %v4692 = vcombine.high %v4691, 0.0
        %v4693 = vcombine.low %v3964, %v4000
        %v4695 = vunpack.c.l.s4 1934713408
        %v4696 = vunpack.c.0.s8 %v4695
        %v4697 = vlaneseq
        %v4698 = vshrl.u32 %v4697, 7
        %v4699 = vsub.s32 %v4696, %v4698
        %v4700 = vrot.slane %v4693, %v4699
        %v4701 = vcombine.high %v4700, 0.0
        %v4702 = vcombine.low %v4041, %v4083
        %v4704 = vunpack.c.l.s4 1934713408
        %v4705 = vunpack.c.0.s8 %v4704
        %v4706 = vlaneseq
        %v4707 = vshrl.u32 %v4706, 7
        %v4708 = vsub.s32 %v4705, %v4707
        %v4709 = vrot.slane %v4702, %v4708
        %v4710 = vcombine.high %v4709, 0.0
        %v4711 = vcombine.low %v4115, %v4151
        %v4713 = vunpack.c.l.s4 1934713408
        %v4714 = vunpack.c.0.s8 %v4713
        %v4715 = vlaneseq
        %v4716 = vshrl.u32 %v4715, 7
        %v4717 = vsub.s32 %v4714, %v4716
        %v4718 = vrot.slane %v4711, %v4717
        %v4719 = vcombine.high %v4718, 0.0
        %v4720 = vcombine.low %v4192, %v4234
        %v4722 = vunpack.c.l.s4 1934713408
        %v4723 = vunpack.c.0.s8 %v4722
        %v4724 = vlaneseq
        %v4725 = vshrl.u32 %v4724, 7
        %v4726 = vsub.s32 %v4723, %v4725
        %v4727 = vrot.slane %v4720, %v4726
        %v4728 = vcombine.high %v4727, 0.0
        %v4729 = vcombine.low %v4266, %v4302
        %v4731 = vunpack.c.l.s4 1934713408
        %v4732 = vunpack.c.0.s8 %v4731
        %v4733 = vlaneseq
        %v4734 = vshrl.u32 %v4733, 7
        %v4735 = vsub.s32 %v4732, %v4734
        %v4736 = vrot.slane %v4729, %v4735
        %v4737 = vcombine.high %v4736, 0.0
        %v4738 = vcombine.low %v4343, %v4385
        %v4740 = vunpack.c.l.s4 1934713408
        %v4741 = vunpack.c.0.s8 %v4740
        %v4742 = vlaneseq
        %v4743 = vshrl.u32 %v4742, 7
        %v4744 = vsub.s32 %v4741, %v4743
        %v4745 = vrot.slane %v4738, %v4744
        %v4746 = vcombine.high %v4745, 0.0
        %v4747 = vcombine.low %v3815, %v3857
        %v4749 = vunpack.c.l.s4 1934713408
        %v4750 = vunpack.c.0.s8 %v4749
        %v4751 = vlaneseq
        %v4752 = vshrl.u32 %v4751, 7
        %v4753 = vsub.s32 %v4750, %v4752
        %v4754 = vrot.slane %v4747, %v4753
        %v4755 = vcombine.high %v4754, 0.0
        %v4756 = vcombine.low %v3898, %v3931
        %v4758 = vunpack.c.l.s4 1934713408
        %v4759 = vunpack.c.0.s8 %v4758
        %v4760 = vlaneseq
        %v4761 = vshrl.u32 %v4760, 7
        %v4762 = vsub.s32 %v4759, %v4761
        %v4763 = vrot.slane %v4756, %v4762
        %v4764 = vcombine.high %v4763, 0.0
        %v4765 = vcombine.low %v3966, %v4008
        %v4767 = vunpack.c.l.s4 1934713408
        %v4768 = vunpack.c.0.s8 %v4767
        %v4769 = vlaneseq
        %v4770 = vshrl.u32 %v4769, 7
        %v4771 = vsub.s32 %v4768, %v4770
        %v4772 = vrot.slane %v4765, %v4771
        %v4773 = vcombine.high %v4772, 0.0
        %v4774 = vcombine.low %v4049, %v4082
        %v4776 = vunpack.c.l.s4 1934713408
        %v4777 = vunpack.c.0.s8 %v4776
        %v4778 = vlaneseq
        %v4779 = vshrl.u32 %v4778, 7
        %v4780 = vsub.s32 %v4777, %v4779
        %v4781 = vrot.slane %v4774, %v4780
        %v4782 = vcombine.high %v4781, 0.0
        %v4783 = vcombine.low %v4117, %v4159
        %v4785 = vunpack.c.l.s4 1934713408
        %v4786 = vunpack.c.0.s8 %v4785
        %v4787 = vlaneseq
        %v4788 = vshrl.u32 %v4787, 7
        %v4789 = vsub.s32 %v4786, %v4788
        %v4790 = vrot.slane %v4783, %v4789
        %v4791 = vcombine.high %v4790, 0.0
        %v4792 = vcombine.low %v4200, %v4233
        %v4794 = vunpack.c.l.s4 1934713408
        %v4795 = vunpack.c.0.s8 %v4794
        %v4796 = vlaneseq
        %v4797 = vshrl.u32 %v4796, 7
        %v4798 = vsub.s32 %v4795, %v4797
        %v4799 = vrot.slane %v4792, %v4798
        %v4800 = vcombine.high %v4799, 0.0
        %v4801 = vcombine.low %v4268, %v4310
        %v4803 = vunpack.c.l.s4 1934713408
        %v4804 = vunpack.c.0.s8 %v4803
        %v4805 = vlaneseq
        %v4806 = vshrl.u32 %v4805, 7
        %v4807 = vsub.s32 %v4804, %v4806
        %v4808 = vrot.slane %v4801, %v4807
        %v4809 = vcombine.high %v4808, 0.0
        %v4810 = vcombine.low %v4351, %v4384
        %v4812 = vunpack.c.l.s4 1934713408
        %v4813 = vunpack.c.0.s8 %v4812
        %v4814 = vlaneseq
        %v4815 = vshrl.u32 %v4814, 7
        %v4816 = vsub.s32 %v4813, %v4815
        %v4817 = vrot.slane %v4810, %v4816
        %v4818 = vcombine.high %v4817, 0.0
        %v4819 = vcombine.low %v3823, %v3865
        %v4821 = vunpack.c.l.s4 1934713408
        %v4822 = vunpack.c.0.s8 %v4821
        %v4823 = vlaneseq
        %v4824 = vshrl.u32 %v4823, 7
        %v4825 = vsub.s32 %v4822, %v4824
        %v4826 = vrot.slane %v4819, %v4825
        %v4827 = vcombine.high %v4826, 0.0
        %v4828 = vcombine.low %v3897, %v3933
        %v4830 = vunpack.c.l.s4 1934713408
        %v4831 = vunpack.c.0.s8 %v4830
        %v4832 = vlaneseq
        %v4833 = vshrl.u32 %v4832, 7
        %v4834 = vsub.s32 %v4831, %v4833
        %v4835 = vrot.slane %v4828, %v4834
        %v4836 = vcombine.high %v4835, 0.0
        %v4837 = vcombine.low %v3974, %v4016
        %v4839 = vunpack.c.l.s4 1934713408
        %v4840 = vunpack.c.0.s8 %v4839
        %v4841 = vlaneseq
        %v4842 = vshrl.u32 %v4841, 7
        %v4843 = vsub.s32 %v4840, %v4842
        %v4844 = vrot.slane %v4837, %v4843
        %v4845 = vcombine.high %v4844, 0.0
        %v4846 = vcombine.low %v4048, %v4084
        %v4848 = vunpack.c.l.s4 1934713408
        %v4849 = vunpack.c.0.s8 %v4848
        %v4850 = vlaneseq
        %v4851 = vshrl.u32 %v4850, 7
        %v4852 = vsub.s32 %v4849, %v4851
        %v4853 = vrot.slane %v4846, %v4852
        %v4854 = vcombine.high %v4853, 0.0
        %v4855 = vcombine.low %v4125, %v4167
        %v4857 = vunpack.c.l.s4 1934713408
        %v4858 = vunpack.c.0.s8 %v4857
        %v4859 = vlaneseq
        %v4860 = vshrl.u32 %v4859, 7
        %v4861 = vsub.s32 %v4858, %v4860
        %v4862 = vrot.slane %v4855, %v4861
        %v4863 = vcombine.high %v4862, 0.0
        %v4864 = vcombine.low %v4199, %v4235
        %v4866 = vunpack.c.l.s4 1934713408
        %v4867 = vunpack.c.0.s8 %v4866
        %v4868 = vlaneseq
        %v4869 = vshrl.u32 %v4868, 7
        %v4870 = vsub.s32 %v4867, %v4869
        %v4871 = vrot.slane %v4864, %v4870
        %v4872 = vcombine.high %v4871, 0.0
        %v4873 = vcombine.low %v4276, %v4318
        %v4875 = vunpack.c.l.s4 1934713408
        %v4876 = vunpack.c.0.s8 %v4875
        %v4877 = vlaneseq
        %v4878 = vshrl.u32 %v4877, 7
        %v4879 = vsub.s32 %v4876, %v4878
        %v4880 = vrot.slane %v4873, %v4879
        %v4881 = vcombine.high %v4880, 0.0
        %v4882 = vcombine.low %v4350, %v4386
        %v4884 = vunpack.c.l.s4 1934713408
        %v4885 = vunpack.c.0.s8 %v4884
        %v4886 = vlaneseq
        %v4887 = vshrl.u32 %v4886, 7
        %v4888 = vsub.s32 %v4885, %v4887
        %v4889 = vrot.slane %v4882, %v4888
        %v4890 = vcombine.high %v4889, 0.0
        %v4891 = vcombine.low %v3831, %v3864
        %v4893 = vunpack.c.l.s4 1934713408
        %v4894 = vunpack.c.0.s8 %v4893
        %v4895 = vlaneseq
        %v4896 = vshrl.u32 %v4895, 7
        %v4897 = vsub.s32 %v4894, %v4896
        %v4898 = vrot.slane %v4891, %v4897
        %v4899 = vcombine.high %v4898, 0.0
        %v4900 = vcombine.low %v3899, %v3941
        %v4902 = vunpack.c.l.s4 1934713408
        %v4903 = vunpack.c.0.s8 %v4902
        %v4904 = vlaneseq
        %v4905 = vshrl.u32 %v4904, 7
        %v4906 = vsub.s32 %v4903, %v4905
        %v4907 = vrot.slane %v4900, %v4906
        %v4908 = vcombine.high %v4907, 0.0
        %v4909 = vcombine.low %v3982, %v4015
        %v4911 = vunpack.c.l.s4 1934713408
        %v4912 = vunpack.c.0.s8 %v4911
        %v4913 = vlaneseq
        %v4914 = vshrl.u32 %v4913, 7
        %v4915 = vsub.s32 %v4912, %v4914
        %v4916 = vrot.slane %v4909, %v4915
        %v4917 = vcombine.high %v4916, 0.0
        %v4918 = vcombine.low %v4050, %v4092
        %v4920 = vunpack.c.l.s4 1934713408
        %v4921 = vunpack.c.0.s8 %v4920
        %v4922 = vlaneseq
        %v4923 = vshrl.u32 %v4922, 7
        %v4924 = vsub.s32 %v4921, %v4923
        %v4925 = vrot.slane %v4918, %v4924
        %v4926 = vcombine.high %v4925, 0.0
        %v4927 = vcombine.low %v4133, %v4166
        %v4929 = vunpack.c.l.s4 1934713408
        %v4930 = vunpack.c.0.s8 %v4929
        %v4931 = vlaneseq
        %v4932 = vshrl.u32 %v4931, 7
        %v4933 = vsub.s32 %v4930, %v4932
        %v4934 = vrot.slane %v4927, %v4933
        %v4935 = vcombine.high %v4934, 0.0
        %v4936 = vcombine.low %v4201, %v4243
        %v4938 = vunpack.c.l.s4 1934713408
        %v4939 = vunpack.c.0.s8 %v4938
        %v4940 = vlaneseq
        %v4941 = vshrl.u32 %v4940, 7
        %v4942 = vsub.s32 %v4939, %v4941
        %v4943 = vrot.slane %v4936, %v4942
        %v4944 = vcombine.high %v4943, 0.0
        %v4945 = vcombine.low %v4284, %v4317
        %v4947 = vunpack.c.l.s4 1934713408
        %v4948 = vunpack.c.0.s8 %v4947
        %v4949 = vlaneseq
        %v4950 = vshrl.u32 %v4949, 7
        %v4951 = vsub.s32 %v4948, %v4950
        %v4952 = vrot.slane %v4945, %v4951
        %v4953 = vcombine.high %v4952, 0.0
        %v4954 = vcombine.low %v4352, %v4394
        %v4956 = vunpack.c.l.s4 1934713408
        %v4957 = vunpack.c.0.s8 %v4956
        %v4958 = vlaneseq
        %v4959 = vshrl.u32 %v4958, 7
        %v4960 = vsub.s32 %v4957, %v4959
        %v4961 = vrot.slane %v4954, %v4960
        %v4962 = vcombine.high %v4961, 0.0
        %v4963 = vcombine.low %v3830, %v3866
        %v4965 = vunpack.c.l.s4 1934713408
        %v4966 = vunpack.c.0.s8 %v4965
        %v4967 = vlaneseq
        %v4968 = vshrl.u32 %v4967, 7
        %v4969 = vsub.s32 %v4966, %v4968
        %v4970 = vrot.slane %v4963, %v4969
        %v4971 = vcombine.high %v4970, 0.0
        %v4972 = vcombine.low %v3907, %v3949
        %v4974 = vunpack.c.l.s4 1934713408
        %v4975 = vunpack.c.0.s8 %v4974
        %v4976 = vlaneseq
        %v4977 = vshrl.u32 %v4976, 7
        %v4978 = vsub.s32 %v4975, %v4977
        %v4979 = vrot.slane %v4972, %v4978
        %v4980 = vcombine.high %v4979, 0.0
        %v4981 = vcombine.low %v3981, %v4017
        %v4983 = vunpack.c.l.s4 1934713408
        %v4984 = vunpack.c.0.s8 %v4983
        %v4985 = vlaneseq
        %v4986 = vshrl.u32 %v4985, 7
        %v4987 = vsub.s32 %v4984, %v4986
        %v4988 = vrot.slane %v4981, %v4987
        %v4989 = vcombine.high %v4988, 0.0
        %v4990 = vcombine.low %v4058, %v4100
        %v4992 = vunpack.c.l.s4 1934713408
        %v4993 = vunpack.c.0.s8 %v4992
        %v4994 = vlaneseq
        %v4995 = vshrl.u32 %v4994, 7
        %v4996 = vsub.s32 %v4993, %v4995
        %v4997 = vrot.slane %v4990, %v4996
        %v4998 = vcombine.high %v4997, 0.0
        %v4999 = vcombine.low %v4132, %v4168
        %v5001 = vunpack.c.l.s4 1934713408
        %v5002 = vunpack.c.0.s8 %v5001
        %v5003 = vlaneseq
        %v5004 = vshrl.u32 %v5003, 7
        %v5005 = vsub.s32 %v5002, %v5004
        %v5006 = vrot.slane %v4999, %v5005
        %v5007 = vcombine.high %v5006, 0.0
        %v5008 = vcombine.low %v4209, %v4251
        %v5010 = vunpack.c.l.s4 1934713408
        %v5011 = vunpack.c.0.s8 %v5010
        %v5012 = vlaneseq
        %v5013 = vshrl.u32 %v5012, 7
        %v5014 = vsub.s32 %v5011, %v5013
        %v5015 = vrot.slane %v5008, %v5014
        %v5016 = vcombine.high %v5015, 0.0
        %v5017 = vcombine.low %v4283, %v4319
        %v5019 = vunpack.c.l.s4 1934713408
        %v5020 = vunpack.c.0.s8 %v5019
        %v5021 = vlaneseq
        %v5022 = vshrl.u32 %v5021, 7
        %v5023 = vsub.s32 %v5020, %v5022
        %v5024 = vrot.slane %v5017, %v5023
        %v5025 = vcombine.high %v5024, 0.0
        %v5026 = vcombine.low %v4360, %v4402
        %v5028 = vunpack.c.l.s4 1934713408
        %v5029 = vunpack.c.0.s8 %v5028
        %v5030 = vlaneseq
        %v5031 = vshrl.u32 %v5030, 7
        %v5032 = vsub.s32 %v5029, %v5031
        %v5033 = vrot.slane %v5026, %v5032
        %v5034 = vcombine.high %v5033, 0.0
        %v5035 = vcombine.low %v3832, %v3874
        %v5037 = vunpack.c.l.s4 1934713408
        %v5038 = vunpack.c.0.s8 %v5037
        %v5039 = vlaneseq
        %v5040 = vshrl.u32 %v5039, 7
        %v5041 = vsub.s32 %v5038, %v5040
        %v5042 = vrot.slane %v5035, %v5041
        %v5043 = vcombine.high %v5042, 0.0
        %v5044 = vcombine.low %v3915, %v3948
        %v5046 = vunpack.c.l.s4 1934713408
        %v5047 = vunpack.c.0.s8 %v5046
        %v5048 = vlaneseq
        %v5049 = vshrl.u32 %v5048, 7
        %v5050 = vsub.s32 %v5047, %v5049
        %v5051 = vrot.slane %v5044, %v5050
        %v5052 = vcombine.high %v5051, 0.0
        %v5053 = vcombine.low %v3983, %v4025
        %v5055 = vunpack.c.l.s4 1934713408
        %v5056 = vunpack.c.0.s8 %v5055
        %v5057 = vlaneseq
        %v5058 = vshrl.u32 %v5057, 7
        %v5059 = vsub.s32 %v5056, %v5058
        %v5060 = vrot.slane %v5053, %v5059
        %v5061 = vcombine.high %v5060, 0.0
        %v5062 = vcombine.low %v4066, %v4099
        %v5064 = vunpack.c.l.s4 1934713408
        %v5065 = vunpack.c.0.s8 %v5064
        %v5066 = vlaneseq
        %v5067 = vshrl.u32 %v5066, 7
        %v5068 = vsub.s32 %v5065, %v5067
        %v5069 = vrot.slane %v5062, %v5068
        %v5070 = vcombine.high %v5069, 0.0
        %v5071 = vcombine.low %v4134, %v4176
        %v5073 = vunpack.c.l.s4 1934713408
        %v5074 = vunpack.c.0.s8 %v5073
        %v5075 = vlaneseq
        %v5076 = vshrl.u32 %v5075, 7
        %v5077 = vsub.s32 %v5074, %v5076
        %v5078 = vrot.slane %v5071, %v5077
        %v5079 = vcombine.high %v5078, 0.0
        %v5080 = vcombine.low %v4217, %v4250
        %v5082 = vunpack.c.l.s4 1934713408
        %v5083 = vunpack.c.0.s8 %v5082
        %v5084 = vlaneseq
        %v5085 = vshrl.u32 %v5084, 7
        %v5086 = vsub.s32 %v5083, %v5085
        %v5087 = vrot.slane %v5080, %v5086
        %v5088 = vcombine.high %v5087, 0.0
        %v5089 = vcombine.low %v4285, %v4327
        %v5091 = vunpack.c.l.s4 1934713408
        %v5092 = vunpack.c.0.s8 %v5091
        %v5093 = vlaneseq
        %v5094 = vshrl.u32 %v5093, 7
        %v5095 = vsub.s32 %v5092, %v5094
        %v5096 = vrot.slane %v5089, %v5095
        %v5097 = vcombine.high %v5096, 0.0
        %v5098 = vcombine.low %v4368, %v4401
        %v5100 = vunpack.c.l.s4 1934713408
        %v5101 = vunpack.c.0.s8 %v5100
        %v5102 = vlaneseq
        %v5103 = vshrl.u32 %v5102, 7
        %v5104 = vsub.s32 %v5101, %v5103
        %v5105 = vrot.slane %v5098, %v5104
        %v5106 = vcombine.high %v5105, 0.0
        %v5115 = vcombine.low %v4538, %v4547
        %v5116 = vcombine.low %v4556, %v4565
        %v5118 = vunpack.c.l.s4 1983009808
        %v5119 = vunpack.c.0.s8 %v5118
        %v5120 = vlaneseq
        %v5121 = vshrl.u32 %v5120, 7
        %v5122 = vsub.s32 %v5119, %v5121
        %v5123 = vrot.slane %v5115, %v5122
        %v5125 = vunpack.c.l.s4 1983009808
        %v5126 = vunpack.c.0.s8 %v5125
        %v5127 = vlaneseq
        %v5128 = vshrl.u32 %v5127, 7
        %v5129 = vsub.s32 %v5126, %v5128
        %v5130 = vrot.slane %v5116, %v5129
        %v5131 = vcombine.low %v5123, %v5130
        %v5132 = vcombine.low %v4574, %v4583
        %v5133 = vcombine.low %v4592, %v4601
        %v5135 = vunpack.c.l.s4 1983009808
        %v5136 = vunpack.c.0.s8 %v5135
        %v5137 = vlaneseq
        %v5138 = vshrl.u32 %v5137, 7
        %v5139 = vsub.s32 %v5136, %v5138
        %v5140 = vrot.slane %v5132, %v5139
        %v5142 = vunpack.c.l.s4 1983009808
        %v5143 = vunpack.c.0.s8 %v5142
        %v5144 = vlaneseq
        %v5145 = vshrl.u32 %v5144, 7
        %v5146 = vsub.s32 %v5143, %v5145
        %v5147 = vrot.slane %v5133, %v5146
        %v5148 = vcombine.low %v5140, %v5147
        %v5159 = vcombine.low %v4539, %v4548
        %v5160 = vcombine.low %v4557, %v4566
        %v5162 = vunpack.c.l.s4 1983009808
        %v5163 = vunpack.c.0.s8 %v5162
        %v5164 = vlaneseq
        %v5165 = vshrl.u32 %v5164, 7
        %v5166 = vsub.s32 %v5163, %v5165
        %v5167 = vrot.slane %v5159, %v5166
        %v5169 = vunpack.c.l.s4 1983009808
        %v5170 = vunpack.c.0.s8 %v5169
        %v5171 = vlaneseq
        %v5172 = vshrl.u32 %v5171, 7
        %v5173 = vsub.s32 %v5170, %v5172
        %v5174 = vrot.slane %v5160, %v5173
        %v5175 = vcombine.low %v5167, %v5174
        %v5176 = vcombine.low %v4575, %v4584
        %v5177 = vcombine.low %v4593, %v4602
        %v5179 = vunpack.c.l.s4 1983009808
        %v5180 = vunpack.c.0.s8 %v5179
        %v5181 = vlaneseq
        %v5182 = vshrl.u32 %v5181, 7
        %v5183 = vsub.s32 %v5180, %v5182
        %v5184 = vrot.slane %v5176, %v5183
        %v5186 = vunpack.c.l.s4 1983009808
        %v5187 = vunpack.c.0.s8 %v5186
        %v5188 = vlaneseq
        %v5189 = vshrl.u32 %v5188, 7
        %v5190 = vsub.s32 %v5187, %v5189
        %v5191 = vrot.slane %v5177, %v5190
        %v5192 = vcombine.low %v5184, %v5191
        %5193 = vrot.lane.b32.xlu0 %v5175, 8
        %v5194 = vpop.permute.xlu0 %5193
        %5195 = vrot.lane.b32.xlu0 %v5192, 8
        %v5196 = vpop.permute.xlu0 %5195
        %v5207 = vcombine.low %v4610, %v4619
        %v5208 = vcombine.low %v4628, %v4637
        %v5210 = vunpack.c.l.s4 1983009808
        %v5211 = vunpack.c.0.s8 %v5210
        %v5212 = vlaneseq
        %v5213 = vshrl.u32 %v5212, 7
        %v5214 = vsub.s32 %v5211, %v5213
        %v5215 = vrot.slane %v5207, %v5214
        %v5217 = vunpack.c.l.s4 1983009808
        %v5218 = vunpack.c.0.s8 %v5217
        %v5219 = vlaneseq
        %v5220 = vshrl.u32 %v5219, 7
        %v5221 = vsub.s32 %v5218, %v5220
        %v5222 = vrot.slane %v5208, %v5221
        %v5223 = vcombine.low %v5215, %v5222
        %v5224 = vcombine.low %v4646, %v4655
        %v5225 = vcombine.low %v4664, %v4673
        %v5227 = vunpack.c.l.s4 1983009808
        %v5228 = vunpack.c.0.s8 %v5227
        %v5229 = vlaneseq
        %v5230 = vshrl.u32 %v5229, 7
        %v5231 = vsub.s32 %v5228, %v5230
        %v5232 = vrot.slane %v5224, %v5231
        %v5234 = vunpack.c.l.s4 1983009808
        %v5235 = vunpack.c.0.s8 %v5234
        %v5236 = vlaneseq
        %v5237 = vshrl.u32 %v5236, 7
        %v5238 = vsub.s32 %v5235, %v5237
        %v5239 = vrot.slane %v5225, %v5238
        %v5240 = vcombine.low %v5232, %v5239
        %5241 = vrot.lane.b32.xlu0 %v5223, 16
        %v5242 = vpop.permute.xlu0 %5241
        %5243 = vrot.lane.b32.xlu0 %v5240, 16
        %v5244 = vpop.permute.xlu0 %5243
        %v5255 = vcombine.low %v4611, %v4620
        %v5256 = vcombine.low %v4629, %v4638
        %v5258 = vunpack.c.l.s4 1983009808
        %v5259 = vunpack.c.0.s8 %v5258
        %v5260 = vlaneseq
        %v5261 = vshrl.u32 %v5260, 7
        %v5262 = vsub.s32 %v5259, %v5261
        %v5263 = vrot.slane %v5255, %v5262
        %v5265 = vunpack.c.l.s4 1983009808
        %v5266 = vunpack.c.0.s8 %v5265
        %v5267 = vlaneseq
        %v5268 = vshrl.u32 %v5267, 7
        %v5269 = vsub.s32 %v5266, %v5268
        %v5270 = vrot.slane %v5256, %v5269
        %v5271 = vcombine.low %v5263, %v5270
        %v5272 = vcombine.low %v4647, %v4656
        %v5273 = vcombine.low %v4665, %v4674
        %v5275 = vunpack.c.l.s4 1983009808
        %v5276 = vunpack.c.0.s8 %v5275
        %v5277 = vlaneseq
        %v5278 = vshrl.u32 %v5277, 7
        %v5279 = vsub.s32 %v5276, %v5278
        %v5280 = vrot.slane %v5272, %v5279
        %v5282 = vunpack.c.l.s4 1983009808
        %v5283 = vunpack.c.0.s8 %v5282
        %v5284 = vlaneseq
        %v5285 = vshrl.u32 %v5284, 7
        %v5286 = vsub.s32 %v5283, %v5285
        %v5287 = vrot.slane %v5273, %v5286
        %v5288 = vcombine.low %v5280, %v5287
        %5289 = vrot.lane.b32.xlu0 %v5271, 24
        %v5290 = vpop.permute.xlu0 %5289
        %5291 = vrot.lane.b32.xlu0 %v5288, 24
        %v5292 = vpop.permute.xlu0 %5291
        %v5303 = vcombine.low %v4682, %v4691
        %v5304 = vcombine.low %v4700, %v4709
        %v5306 = vunpack.c.l.s4 1983009808
        %v5307 = vunpack.c.0.s8 %v5306
        %v5308 = vlaneseq
        %v5309 = vshrl.u32 %v5308, 7
        %v5310 = vsub.s32 %v5307, %v5309
        %v5311 = vrot.slane %v5303, %v5310
        %v5313 = vunpack.c.l.s4 1983009808
        %v5314 = vunpack.c.0.s8 %v5313
        %v5315 = vlaneseq
        %v5316 = vshrl.u32 %v5315, 7
        %v5317 = vsub.s32 %v5314, %v5316
        %v5318 = vrot.slane %v5304, %v5317
        %v5319 = vcombine.low %v5311, %v5318
        %v5320 = vcombine.low %v4718, %v4727
        %v5321 = vcombine.low %v4736, %v4745
        %v5323 = vunpack.c.l.s4 1983009808
        %v5324 = vunpack.c.0.s8 %v5323
        %v5325 = vlaneseq
        %v5326 = vshrl.u32 %v5325, 7
        %v5327 = vsub.s32 %v5324, %v5326
        %v5328 = vrot.slane %v5320, %v5327
        %v5330 = vunpack.c.l.s4 1983009808
        %v5331 = vunpack.c.0.s8 %v5330
        %v5332 = vlaneseq
        %v5333 = vshrl.u32 %v5332, 7
        %v5334 = vsub.s32 %v5331, %v5333
        %v5335 = vrot.slane %v5321, %v5334
        %v5336 = vcombine.low %v5328, %v5335
        %5337 = vrot.lane.b32.xlu0 %v5319, 32
        %v5338 = vpop.permute.xlu0 %5337
        %5339 = vrot.lane.b32.xlu0 %v5336, 32
        %v5340 = vpop.permute.xlu0 %5339
        %v5351 = vcombine.low %v4683, %v4692
        %v5352 = vcombine.low %v4701, %v4710
        %v5354 = vunpack.c.l.s4 1983009808
        %v5355 = vunpack.c.0.s8 %v5354
        %v5356 = vlaneseq
        %v5357 = vshrl.u32 %v5356, 7
        %v5358 = vsub.s32 %v5355, %v5357
        %v5359 = vrot.slane %v5351, %v5358
        %v5361 = vunpack.c.l.s4 1983009808
        %v5362 = vunpack.c.0.s8 %v5361
        %v5363 = vlaneseq
        %v5364 = vshrl.u32 %v5363, 7
        %v5365 = vsub.s32 %v5362, %v5364
        %v5366 = vrot.slane %v5352, %v5365
        %v5367 = vcombine.low %v5359, %v5366
        %v5368 = vcombine.low %v4719, %v4728
        %v5369 = vcombine.low %v4737, %v4746
        %v5371 = vunpack.c.l.s4 1983009808
        %v5372 = vunpack.c.0.s8 %v5371
        %v5373 = vlaneseq
        %v5374 = vshrl.u32 %v5373, 7
        %v5375 = vsub.s32 %v5372, %v5374
        %v5376 = vrot.slane %v5368, %v5375
        %v5378 = vunpack.c.l.s4 1983009808
        %v5379 = vunpack.c.0.s8 %v5378
        %v5380 = vlaneseq
        %v5381 = vshrl.u32 %v5380, 7
        %v5382 = vsub.s32 %v5379, %v5381
        %v5383 = vrot.slane %v5369, %v5382
        %v5384 = vcombine.low %v5376, %v5383
        %5385 = vrot.lane.b32.xlu0 %v5367, 40
        %v5386 = vpop.permute.xlu0 %5385
        %5387 = vrot.lane.b32.xlu0 %v5384, 40
        %v5388 = vpop.permute.xlu0 %5387
        %v5399 = vcombine.low %v4754, %v4763
        %v5400 = vcombine.low %v4772, %v4781
        %v5402 = vunpack.c.l.s4 1983009808
        %v5403 = vunpack.c.0.s8 %v5402
        %v5404 = vlaneseq
        %v5405 = vshrl.u32 %v5404, 7
        %v5406 = vsub.s32 %v5403, %v5405
        %v5407 = vrot.slane %v5399, %v5406
        %v5409 = vunpack.c.l.s4 1983009808
        %v5410 = vunpack.c.0.s8 %v5409
        %v5411 = vlaneseq
        %v5412 = vshrl.u32 %v5411, 7
        %v5413 = vsub.s32 %v5410, %v5412
        %v5414 = vrot.slane %v5400, %v5413
        %v5415 = vcombine.low %v5407, %v5414
        %v5416 = vcombine.low %v4790, %v4799
        %v5417 = vcombine.low %v4808, %v4817
        %v5419 = vunpack.c.l.s4 1983009808
        %v5420 = vunpack.c.0.s8 %v5419
        %v5421 = vlaneseq
        %v5422 = vshrl.u32 %v5421, 7
        %v5423 = vsub.s32 %v5420, %v5422
        %v5424 = vrot.slane %v5416, %v5423
        %v5426 = vunpack.c.l.s4 1983009808
        %v5427 = vunpack.c.0.s8 %v5426
        %v5428 = vlaneseq
        %v5429 = vshrl.u32 %v5428, 7
        %v5430 = vsub.s32 %v5427, %v5429
        %v5431 = vrot.slane %v5417, %v5430
        %v5432 = vcombine.low %v5424, %v5431
        %5433 = vrot.lane.b32.xlu0 %v5415, 48
        %v5434 = vpop.permute.xlu0 %5433
        %5435 = vrot.lane.b32.xlu0 %v5432, 48
        %v5436 = vpop.permute.xlu0 %5435
        %v5447 = vcombine.low %v4755, %v4764
        %v5448 = vcombine.low %v4773, %v4782
        %v5450 = vunpack.c.l.s4 1983009808
        %v5451 = vunpack.c.0.s8 %v5450
        %v5452 = vlaneseq
        %v5453 = vshrl.u32 %v5452, 7
        %v5454 = vsub.s32 %v5451, %v5453
        %v5455 = vrot.slane %v5447, %v5454
        %v5457 = vunpack.c.l.s4 1983009808
        %v5458 = vunpack.c.0.s8 %v5457
        %v5459 = vlaneseq
        %v5460 = vshrl.u32 %v5459, 7
        %v5461 = vsub.s32 %v5458, %v5460
        %v5462 = vrot.slane %v5448, %v5461
        %v5463 = vcombine.low %v5455, %v5462
        %v5464 = vcombine.low %v4791, %v4800
        %v5465 = vcombine.low %v4809, %v4818
        %v5467 = vunpack.c.l.s4 1983009808
        %v5468 = vunpack.c.0.s8 %v5467
        %v5469 = vlaneseq
        %v5470 = vshrl.u32 %v5469, 7
        %v5471 = vsub.s32 %v5468, %v5470
        %v5472 = vrot.slane %v5464, %v5471
        %v5474 = vunpack.c.l.s4 1983009808
        %v5475 = vunpack.c.0.s8 %v5474
        %v5476 = vlaneseq
        %v5477 = vshrl.u32 %v5476, 7
        %v5478 = vsub.s32 %v5475, %v5477
        %v5479 = vrot.slane %v5465, %v5478
        %v5480 = vcombine.low %v5472, %v5479
        %5481 = vrot.lane.b32.xlu0 %v5463, 56
        %v5482 = vpop.permute.xlu0 %5481
        %5483 = vrot.lane.b32.xlu0 %v5480, 56
        %v5484 = vpop.permute.xlu0 %5483
        %v5495 = vcombine.low %v4826, %v4835
        %v5496 = vcombine.low %v4844, %v4853
        %v5498 = vunpack.c.l.s4 1983009808
        %v5499 = vunpack.c.0.s8 %v5498
        %v5500 = vlaneseq
        %v5501 = vshrl.u32 %v5500, 7
        %v5502 = vsub.s32 %v5499, %v5501
        %v5503 = vrot.slane %v5495, %v5502
        %v5505 = vunpack.c.l.s4 1983009808
        %v5506 = vunpack.c.0.s8 %v5505
        %v5507 = vlaneseq
        %v5508 = vshrl.u32 %v5507, 7
        %v5509 = vsub.s32 %v5506, %v5508
        %v5510 = vrot.slane %v5496, %v5509
        %v5511 = vcombine.low %v5503, %v5510
        %v5512 = vcombine.low %v4862, %v4871
        %v5513 = vcombine.low %v4880, %v4889
        %v5515 = vunpack.c.l.s4 1983009808
        %v5516 = vunpack.c.0.s8 %v5515
        %v5517 = vlaneseq
        %v5518 = vshrl.u32 %v5517, 7
        %v5519 = vsub.s32 %v5516, %v5518
        %v5520 = vrot.slane %v5512, %v5519
        %v5522 = vunpack.c.l.s4 1983009808
        %v5523 = vunpack.c.0.s8 %v5522
        %v5524 = vlaneseq
        %v5525 = vshrl.u32 %v5524, 7
        %v5526 = vsub.s32 %v5523, %v5525
        %v5527 = vrot.slane %v5513, %v5526
        %v5528 = vcombine.low %v5520, %v5527
        %5529 = vrot.lane.b32.xlu0 %v5511, 64
        %v5530 = vpop.permute.xlu0 %5529
        %5531 = vrot.lane.b32.xlu0 %v5528, 64
        %v5532 = vpop.permute.xlu0 %5531
        %v5543 = vcombine.low %v4827, %v4836
        %v5544 = vcombine.low %v4845, %v4854
        %v5546 = vunpack.c.l.s4 1983009808
        %v5547 = vunpack.c.0.s8 %v5546
        %v5548 = vlaneseq
        %v5549 = vshrl.u32 %v5548, 7
        %v5550 = vsub.s32 %v5547, %v5549
        %v5551 = vrot.slane %v5543, %v5550
        %v5553 = vunpack.c.l.s4 1983009808
        %v5554 = vunpack.c.0.s8 %v5553
        %v5555 = vlaneseq
        %v5556 = vshrl.u32 %v5555, 7
        %v5557 = vsub.s32 %v5554, %v5556
        %v5558 = vrot.slane %v5544, %v5557
        %v5559 = vcombine.low %v5551, %v5558
        %v5560 = vcombine.low %v4863, %v4872
        %v5561 = vcombine.low %v4881, %v4890
        %v5563 = vunpack.c.l.s4 1983009808
        %v5564 = vunpack.c.0.s8 %v5563
        %v5565 = vlaneseq
        %v5566 = vshrl.u32 %v5565, 7
        %v5567 = vsub.s32 %v5564, %v5566
        %v5568 = vrot.slane %v5560, %v5567
        %v5570 = vunpack.c.l.s4 1983009808
        %v5571 = vunpack.c.0.s8 %v5570
        %v5572 = vlaneseq
        %v5573 = vshrl.u32 %v5572, 7
        %v5574 = vsub.s32 %v5571, %v5573
        %v5575 = vrot.slane %v5561, %v5574
        %v5576 = vcombine.low %v5568, %v5575
        %5577 = vrot.lane.b32.xlu0 %v5559, 72
        %v5578 = vpop.permute.xlu0 %5577
        %5579 = vrot.lane.b32.xlu0 %v5576, 72
        %v5580 = vpop.permute.xlu0 %5579
        %v5591 = vcombine.low %v4898, %v4907
        %v5592 = vcombine.low %v4916, %v4925
        %v5594 = vunpack.c.l.s4 1983009808
        %v5595 = vunpack.c.0.s8 %v5594
        %v5596 = vlaneseq
        %v5597 = vshrl.u32 %v5596, 7
        %v5598 = vsub.s32 %v5595, %v5597
        %v5599 = vrot.slane %v5591, %v5598
        %v5601 = vunpack.c.l.s4 1983009808
        %v5602 = vunpack.c.0.s8 %v5601
        %v5603 = vlaneseq
        %v5604 = vshrl.u32 %v5603, 7
        %v5605 = vsub.s32 %v5602, %v5604
        %v5606 = vrot.slane %v5592, %v5605
        %v5607 = vcombine.low %v5599, %v5606
        %v5608 = vcombine.low %v4934, %v4943
        %v5609 = vcombine.low %v4952, %v4961
        %v5611 = vunpack.c.l.s4 1983009808
        %v5612 = vunpack.c.0.s8 %v5611
        %v5613 = vlaneseq
        %v5614 = vshrl.u32 %v5613, 7
        %v5615 = vsub.s32 %v5612, %v5614
        %v5616 = vrot.slane %v5608, %v5615
        %v5618 = vunpack.c.l.s4 1983009808
        %v5619 = vunpack.c.0.s8 %v5618
        %v5620 = vlaneseq
        %v5621 = vshrl.u32 %v5620, 7
        %v5622 = vsub.s32 %v5619, %v5621
        %v5623 = vrot.slane %v5609, %v5622
        %v5624 = vcombine.low %v5616, %v5623
        %5625 = vrot.lane.b32.xlu0 %v5607, 80
        %v5626 = vpop.permute.xlu0 %5625
        %5627 = vrot.lane.b32.xlu0 %v5624, 80
        %v5628 = vpop.permute.xlu0 %5627
        %v5639 = vcombine.low %v4899, %v4908
        %v5640 = vcombine.low %v4917, %v4926
        %v5642 = vunpack.c.l.s4 1983009808
        %v5643 = vunpack.c.0.s8 %v5642
        %v5644 = vlaneseq
        %v5645 = vshrl.u32 %v5644, 7
        %v5646 = vsub.s32 %v5643, %v5645
        %v5647 = vrot.slane %v5639, %v5646
        %v5649 = vunpack.c.l.s4 1983009808
        %v5650 = vunpack.c.0.s8 %v5649
        %v5651 = vlaneseq
        %v5652 = vshrl.u32 %v5651, 7
        %v5653 = vsub.s32 %v5650, %v5652
        %v5654 = vrot.slane %v5640, %v5653
        %v5655 = vcombine.low %v5647, %v5654
        %v5656 = vcombine.low %v4935, %v4944
        %v5657 = vcombine.low %v4953, %v4962
        %v5659 = vunpack.c.l.s4 1983009808
        %v5660 = vunpack.c.0.s8 %v5659
        %v5661 = vlaneseq
        %v5662 = vshrl.u32 %v5661, 7
        %v5663 = vsub.s32 %v5660, %v5662
        %v5664 = vrot.slane %v5656, %v5663
        %v5666 = vunpack.c.l.s4 1983009808
        %v5667 = vunpack.c.0.s8 %v5666
        %v5668 = vlaneseq
        %v5669 = vshrl.u32 %v5668, 7
        %v5670 = vsub.s32 %v5667, %v5669
        %v5671 = vrot.slane %v5657, %v5670
        %v5672 = vcombine.low %v5664, %v5671
        %5673 = vrot.lane.b32.xlu0 %v5655, 88
        %v5674 = vpop.permute.xlu0 %5673
        %5675 = vrot.lane.b32.xlu0 %v5672, 88
        %v5676 = vpop.permute.xlu0 %5675
        %v5687 = vcombine.low %v4970, %v4979
        %v5688 = vcombine.low %v4988, %v4997
        %v5690 = vunpack.c.l.s4 1983009808
        %v5691 = vunpack.c.0.s8 %v5690
        %v5692 = vlaneseq
        %v5693 = vshrl.u32 %v5692, 7
        %v5694 = vsub.s32 %v5691, %v5693
        %v5695 = vrot.slane %v5687, %v5694
        %v5697 = vunpack.c.l.s4 1983009808
        %v5698 = vunpack.c.0.s8 %v5697
        %v5699 = vlaneseq
        %v5700 = vshrl.u32 %v5699, 7
        %v5701 = vsub.s32 %v5698, %v5700
        %v5702 = vrot.slane %v5688, %v5701
        %v5703 = vcombine.low %v5695, %v5702
        %v5704 = vcombine.low %v5006, %v5015
        %v5705 = vcombine.low %v5024, %v5033
        %v5707 = vunpack.c.l.s4 1983009808
        %v5708 = vunpack.c.0.s8 %v5707
        %v5709 = vlaneseq
        %v5710 = vshrl.u32 %v5709, 7
        %v5711 = vsub.s32 %v5708, %v5710
        %v5712 = vrot.slane %v5704, %v5711
        %v5714 = vunpack.c.l.s4 1983009808
        %v5715 = vunpack.c.0.s8 %v5714
        %v5716 = vlaneseq
        %v5717 = vshrl.u32 %v5716, 7
        %v5718 = vsub.s32 %v5715, %v5717
        %v5719 = vrot.slane %v5705, %v5718
        %v5720 = vcombine.low %v5712, %v5719
        %5721 = vrot.lane.b32.xlu0 %v5703, 96
        %v5722 = vpop.permute.xlu0 %5721
        %5723 = vrot.lane.b32.xlu0 %v5720, 96
        %v5724 = vpop.permute.xlu0 %5723
        %v5735 = vcombine.low %v4971, %v4980
        %v5736 = vcombine.low %v4989, %v4998
        %v5738 = vunpack.c.l.s4 1983009808
        %v5739 = vunpack.c.0.s8 %v5738
        %v5740 = vlaneseq
        %v5741 = vshrl.u32 %v5740, 7
        %v5742 = vsub.s32 %v5739, %v5741
        %v5743 = vrot.slane %v5735, %v5742
        %v5745 = vunpack.c.l.s4 1983009808
        %v5746 = vunpack.c.0.s8 %v5745
        %v5747 = vlaneseq
        %v5748 = vshrl.u32 %v5747, 7
        %v5749 = vsub.s32 %v5746, %v5748
        %v5750 = vrot.slane %v5736, %v5749
        %v5751 = vcombine.low %v5743, %v5750
        %v5752 = vcombine.low %v5007, %v5016
        %v5753 = vcombine.low %v5025, %v5034
        %v5755 = vunpack.c.l.s4 1983009808
        %v5756 = vunpack.c.0.s8 %v5755
        %v5757 = vlaneseq
        %v5758 = vshrl.u32 %v5757, 7
        %v5759 = vsub.s32 %v5756, %v5758
        %v5760 = vrot.slane %v5752, %v5759
        %v5762 = vunpack.c.l.s4 1983009808
        %v5763 = vunpack.c.0.s8 %v5762
        %v5764 = vlaneseq
        %v5765 = vshrl.u32 %v5764, 7
        %v5766 = vsub.s32 %v5763, %v5765
        %v5767 = vrot.slane %v5753, %v5766
        %v5768 = vcombine.low %v5760, %v5767
        %5769 = vrot.lane.b32.xlu0 %v5751, 104
        %v5770 = vpop.permute.xlu0 %5769
        %5771 = vrot.lane.b32.xlu0 %v5768, 104
        %v5772 = vpop.permute.xlu0 %5771
        %v5783 = vcombine.low %v5042, %v5051
        %v5784 = vcombine.low %v5060, %v5069
        %v5786 = vunpack.c.l.s4 1983009808
        %v5787 = vunpack.c.0.s8 %v5786
        %v5788 = vlaneseq
        %v5789 = vshrl.u32 %v5788, 7
        %v5790 = vsub.s32 %v5787, %v5789
        %v5791 = vrot.slane %v5783, %v5790
        %v5793 = vunpack.c.l.s4 1983009808
        %v5794 = vunpack.c.0.s8 %v5793
        %v5795 = vlaneseq
        %v5796 = vshrl.u32 %v5795, 7
        %v5797 = vsub.s32 %v5794, %v5796
        %v5798 = vrot.slane %v5784, %v5797
        %v5799 = vcombine.low %v5791, %v5798
        %v5800 = vcombine.low %v5078, %v5087
        %v5801 = vcombine.low %v5096, %v5105
        %v5803 = vunpack.c.l.s4 1983009808
        %v5804 = vunpack.c.0.s8 %v5803
        %v5805 = vlaneseq
        %v5806 = vshrl.u32 %v5805, 7
        %v5807 = vsub.s32 %v5804, %v5806
        %v5808 = vrot.slane %v5800, %v5807
        %v5810 = vunpack.c.l.s4 1983009808
        %v5811 = vunpack.c.0.s8 %v5810
        %v5812 = vlaneseq
        %v5813 = vshrl.u32 %v5812, 7
        %v5814 = vsub.s32 %v5811, %v5813
        %v5815 = vrot.slane %v5801, %v5814
        %v5816 = vcombine.low %v5808, %v5815
        %5817 = vrot.lane.b32.xlu0 %v5799, 112
        %v5818 = vpop.permute.xlu0 %5817
        %5819 = vrot.lane.b32.xlu0 %v5816, 112
        %v5820 = vpop.permute.xlu0 %5819
        %v5831 = vcombine.low %v5043, %v5052
        %v5832 = vcombine.low %v5061, %v5070
        %v5834 = vunpack.c.l.s4 1983009808
        %v5835 = vunpack.c.0.s8 %v5834
        %v5836 = vlaneseq
        %v5837 = vshrl.u32 %v5836, 7
        %v5838 = vsub.s32 %v5835, %v5837
        %v5839 = vrot.slane %v5831, %v5838
        %v5841 = vunpack.c.l.s4 1983009808
        %v5842 = vunpack.c.0.s8 %v5841
        %v5843 = vlaneseq
        %v5844 = vshrl.u32 %v5843, 7
        %v5845 = vsub.s32 %v5842, %v5844
        %v5846 = vrot.slane %v5832, %v5845
        %v5847 = vcombine.low %v5839, %v5846
        %v5848 = vcombine.low %v5079, %v5088
        %v5849 = vcombine.low %v5097, %v5106
        %v5851 = vunpack.c.l.s4 1983009808
        %v5852 = vunpack.c.0.s8 %v5851
        %v5853 = vlaneseq
        %v5854 = vshrl.u32 %v5853, 7
        %v5855 = vsub.s32 %v5852, %v5854
        %v5856 = vrot.slane %v5848, %v5855
        %v5858 = vunpack.c.l.s4 1983009808
        %v5859 = vunpack.c.0.s8 %v5858
        %v5860 = vlaneseq
        %v5861 = vshrl.u32 %v5860, 7
        %v5862 = vsub.s32 %v5859, %v5861
        %v5863 = vrot.slane %v5849, %v5862
        %v5864 = vcombine.low %v5856, %v5863
        %5865 = vrot.lane.b32.xlu0 %v5847, 120
        %v5866 = vpop.permute.xlu0 %5865
        %5867 = vrot.lane.b32.xlu0 %v5864, 120
        %v5868 = vpop.permute.xlu0 %5867
        %vm5871 = vcmask 64512
        %v5872 = vsel %vm5871, %v5131, %v5194
        %v5873 = vsel %vm5871, %v5148, %v5196
        %vm5874 = vcmask 130048
        %v5875 = vsel %vm5874, %v5872, %v5242
        %v5876 = vsel %vm5874, %v5873, %v5244
        %vm5877 = vcmask 195584
        %v5878 = vsel %vm5877, %v5875, %v5290
        %v5879 = vsel %vm5877, %v5876, %v5292
        %vm5880 = vcmask 261120
        %v5881 = vsel %vm5880, %v5878, %v5338
        %v5882 = vsel %vm5880, %v5879, %v5340
        %vm5883 = vcmask 326656
        %v5884 = vsel %vm5883, %v5881, %v5386
        %v5885 = vsel %vm5883, %v5882, %v5388
        %vm5886 = vcmask 392192
        %v5887 = vsel %vm5886, %v5884, %v5434
        %v5888 = vsel %vm5886, %v5885, %v5436
        %vm5889 = vcmask 457728
        %v5890 = vsel %vm5889, %v5887, %v5482
        %v5891 = vsel %vm5889, %v5888, %v5484
        %vm5892 = vcmask 523264
        %v5893 = vsel %vm5892, %v5890, %v5530
        %v5894 = vsel %vm5892, %v5891, %v5532
        %vm5895 = vcmask 588800
        %v5896 = vsel %vm5895, %v5893, %v5578
        %v5897 = vsel %vm5895, %v5894, %v5580
        %vm5898 = vcmask 654336
        %v5899 = vsel %vm5898, %v5896, %v5626
        %v5900 = vsel %vm5898, %v5897, %v5628
        %vm5901 = vcmask 719872
        %v5902 = vsel %vm5901, %v5899, %v5674
        %v5903 = vsel %vm5901, %v5900, %v5676
        %vm5904 = vcmask 785408
        %v5905 = vsel %vm5904, %v5902, %v5722
        %v5906 = vsel %vm5904, %v5903, %v5724
        %vm5907 = vcmask 850944
        %v5908 = vsel %vm5907, %v5905, %v5770
        %v5909 = vsel %vm5907, %v5906, %v5772
        %vm5910 = vcmask 916480
        %v5911 = vsel %vm5910, %v5908, %v5818
        %v5912 = vsel %vm5910, %v5909, %v5820
        %vm5913 = vcmask 982016
        %v5914 = vsel %vm5913, %v5911, %v5866
        %v5915 = vsel %vm5913, %v5912, %v5868
        %5916 = vst [vmem:[%s177] sm:$0xff] %v5914
        %5917 = vst [vmem:[%s177 + $0x8] sm:$0xff] %v5915
        %s5918 = sand.u32 %s107, 1
        %s5919 = scalar_lea.sflag [#allocation3], %s5918
        %s5920 = sand.u32 %s107, 1
        %s5921 = smul.addr %s5920, 16
        %s5922 = scalar_lea.vmem [#allocation2], %s5921
        // Predicated region
        $region33: #{tpu_custom_call.1} parent=31 // pred_check
          %p5923 = pneg %p117
        $region34: #{tpu_custom_call.1} parent=31 // pred_check_branch
          %5925 = sbr.rel (%p5923) target = $region36
        $region35: #{tpu_custom_call.1} parent=31 // pred_region
          %s5926 = smul.u32 2, %s22
          %s5928 = ssub.s32 256, 256
          %5929 = vsyncadd %s5919, %s5928
          %s5930 = smul.addr %s21, 2
          %s5931 = sadd.s32 %s5926, %s5930
          %s5932 = smul.addr %s5931, 128
          %s5933 = scalar_lea.hbm %s3, %s5932
          %s5934 = sshll.u32 %s5922, 4
          %s5935 = int_to_ptr.vmem [resolvable:$true] %s5934
          %5940 = dma.vmem_to_hbm [thread:$0]  %s5935, 256, %s5933, %s5919, 128, 128, 8
        $region36: #{tpu_custom_call.1} parent=31 // pred_fallthru
          _
      $region32: #{tpu_custom_call.1} parent=5 // pred_fallthru
        _
      %p5941 = scmp.le.s32.totalorder 2, %s12
      // Predicated region
      $region37: #{tpu_custom_call.1} parent=5 // pred_check
        %p5942 = pneg %p5941
      $region38: #{tpu_custom_call.1} parent=5 // pred_check_branch
        %5944 = sbr.rel (%p5942) target = $region40
      $region39: #{tpu_custom_call.1} parent=5 // pred_region
        %s5945 = ssub.s32 %s12, 2
        // Predicated region
        $region41: #{tpu_custom_call.1} parent=39 // pred_check
          %p5946 = pneg %p123
        $region42: #{tpu_custom_call.1} parent=39 // pred_check_branch
          %5948 = sbr.rel (%p5946) target = $region44
        $region43: #{tpu_custom_call.1} parent=39 // pred_region
          %s5949 = sand.u32 %s108, 1
          %s5950 = scalar_lea.sflag [#allocation3], %s5949
          %s5951 = sand.u32 %s108, 1
          %s5952 = smul.addr %s5951, 16
          %s5953 = scalar_lea.vmem [#allocation2], %s5952
          %5954 = dma.done %s5950, 256
        $region44: #{tpu_custom_call.1} parent=39 // pred_fallthru
          _
      $region40: #{tpu_custom_call.1} parent=5 // pred_fallthru
        _
    $region6: #{tpu_custom_call.1} parent=1 // loop_footer
      %s16 = sadd.s32 1, %s12
    $region7: #{tpu_custom_call.1} parent=1 // loop_footer_branch
      %11 = sbr.rel target = $region3
    $region8: #{tpu_custom_call.1} parent=1 // loop_exit
      _
    %5955 = vsyncpa [#allocation3], 1
    %s5956 = scalar_lea.sflag [#allocation3], 1
    %5957 = vsyncpa %s5956, 1

</llo_original>
